<compile_context>
chip_gen: v7x
topology: tpu7x:2x2x1
jax: 0.10.0
libtpu: 0.0.40
codegen_flags: <defaults>
</compile_context>

<pallas_src>
import jax
import jax.numpy as jnp
import numpy as np
from jax import lax
from jax.experimental import pallas as pl
from jax.experimental.pallas import tpu as pltpu

EPS = 1e-5                       # BatchNorm2d default eps
VMEM_LIMIT = 32 * 1024 * 1024    # safe scoped-VMEM budget on v5e/v6e/v7x
TF_MAX = 2048                    # max frequency lanes per tile


def _round_up(x, m):
    return ((x + m - 1) // m) * m


def _cout_block(cout):
    """Cout tile: whole thing when small, else a multiple-of-8 divisor <= 64."""
    if cout <= 64:
        return cout
    for cand in range(64, 7, -8):
        if cout % cand == 0:
            return cand
    return cout


def _cin_block(cin):
    """Cin tile (grid reduction axis): small so the in-kernel unroll stays short."""
    if cin <= 8 or cin % 8 != 0:
        return cin
    return 8


def _channel_block(c):
    """Channel-group size for the BN kernels (multiple of 8, or whole C)."""
    for cand in (32, 16, 8):
        if c % cand == 0 and c >= cand:
            return cand
    return c


def _freq_tiles(f):
    fp = _round_up(f, 128)           # lane-dense stores (no masked vst)
    if fp > TF_MAX:
        tf = TF_MAX
        fp = _round_up(fp, tf)
    else:
        tf = fp
    return fp, tf


# ----------------------------------------------------------------------------
# Kernel 1: frequency-domain "conv" = per-frequency complex multiply,
# accumulated over Cin tiles:  out[b, co, f] = sum_ci x[b, ci, f] * k[co, ci, f]
# ----------------------------------------------------------------------------
def _freq_conv_kernel(xr_ref, xi_ref, kr_ref, ki_ref, or_ref, oi_ref):
    # Blocks:  x*: (1, TCIN, TF)   k*: (TCIN, TCO, TF)   out*: (1, TCO, TF)
    # Output block is revisited across the last ('arbitrary') Cin grid axis and
    # acts as the accumulator.
    @pl.when(pl.program_id(3) == 0)
    def _():
        or_ref[...] = jnp.zeros_like(or_ref)
        oi_ref[...] = jnp.zeros_like(oi_ref)

    xr_all = xr_ref[0]               # (TCIN, TF)
    xi_all = xi_ref[0]
    tcin = xr_all.shape[0]

    accr = None
    acci = None
    # Unrolled VPU multiply-accumulate over the small Cin tile: live set is
    # O(TCO*TF) (two accumulators), not O(TCO*TCIN*TF) broadcast temporaries,
    # and there is no cross-sublane reduction.
    for c in range(tcin):
        xr = xr_all[c:c + 1, :]      # (1, TF)  -> sublane-broadcast vs (TCO, TF)
        xi = xi_all[c:c + 1, :]
        kr = kr_ref[c]               # (TCO, TF)
        ki = ki_ref[c]
        tr = xr * kr - xi * ki
        ti = xr * ki + xi * kr
        accr = tr if accr is None else accr + tr
        acci = ti if acci is None else acci + ti

    or_ref[0] += accr
    oi_ref[0] += acci


def fft_conv2d(x, w):
    """fftConv2d.forward: rfft2 -> frequency-domain channel contraction -> irfft2."""
    B, Cin, H, W = x.shape
    Cout = w.shape[0]
    Wf = W // 2 + 1
    F = H * Wf
    fp, tf = _freq_tiles(F)

    # TODO(synk): rfft2 / irfft2 have no Pallas primitive; they stay in XLA.
    x_f = jnp.fft.rfft2(x)           # (B, Cin, H, Wf) complex64
    k_f = jnp.fft.rfft2(w)           # (Cout, Cin, H, Wf) complex64

    pad = ((0, 0), (0, 0), (0, fp - F))
    # Activations: (B, Cin, F) padded to a lane-dense multiple of 128.
    xr = jnp.pad(jnp.real(x_f).reshape(B, Cin, F).astype(jnp.float32), pad)
    xi = jnp.pad(jnp.imag(x_f).reshape(B, Cin, F).astype(jnp.float32), pad)
    # Weights Cin-major: (Cin, Cout, F) so the reduction dim is the leading
    # block axis (the transpose fuses with the real/imag extraction copy).
    kr = jnp.pad(jnp.moveaxis(jnp.real(k_f), 1, 0)
                 .reshape(Cin, Cout, F).astype(jnp.float32), pad)
    ki = jnp.pad(jnp.moveaxis(jnp.imag(k_f), 1, 0)
                 .reshape(Cin, Cout, F).astype(jnp.float32), pad)

    tco = _cout_block(Cout)
    tcin = _cin_block(Cin)
    grid = (B, Cout // tco, fp // tf, Cin // tcin)

    x_spec = pl.BlockSpec((1, tcin, tf), lambda b, co, f, c: (b, c, f))
    k_spec = pl.BlockSpec((tcin, tco, tf), lambda b, co, f, c: (c, co, f))
    o_spec = pl.BlockSpec((1, tco, tf), lambda b, co, f, c: (b, co, f))

    outr, outi = pl.pallas_call(
        _freq_conv_kernel,
        grid=grid,
        in_specs=[x_spec, x_spec, k_spec, k_spec],
        out_specs=(o_spec, o_spec),
        out_shape=(jax.ShapeDtypeStruct((B, Cout, fp), jnp.float32),
                   jax.ShapeDtypeStruct((B, Cout, fp), jnp.float32)),
        compiler_params=pltpu.CompilerParams(
            dimension_semantics=("parallel", "parallel", "parallel", "arbitrary"),
            vmem_limit_bytes=VMEM_LIMIT),
    )(xr, xi, kr, ki)

    out_f = lax.complex(outr[:, :, :F], outi[:, :, :F]).reshape(B, Cout, H, Wf)
    return jnp.fft.irfft2(out_f, s=(H, W))   # (B, Cout, H, W) float32


# ----------------------------------------------------------------------------
# BatchNorm2d (training semantics: batch mean, biased var) helpers/kernels.
# Data layout stays (B, C, H*W) -- channel groups tiled via BlockSpec, no
# host-side transposes.
# ----------------------------------------------------------------------------
def _bn_stats(z):
    # z: (B, Cb, HW) -> per-channel biased mean / variance over B*HW.
    n = z.shape[0] * z.shape[2]
    mean = jnp.sum(jnp.sum(z, axis=2, keepdims=True), axis=0, keepdims=True) / n
    zc = z - mean
    var = jnp.sum(jnp.sum(zc * zc, axis=2, keepdims=True), axis=0, keepdims=True) / n
    return zc, var


def _bn_relu_kernel(z_ref, g_ref, b_ref, o_ref):
    zc, var = _bn_stats(z_ref[...])
    y = zc * lax.rsqrt(var + EPS) * g_ref[...][None] + b_ref[...][None]
    o_ref[...] = jnp.maximum(y, 0.0)


def bn_relu(z_nchw, gamma, beta):
    B, C, H, W = z_nchw.shape
    HW = H * W
    z = z_nchw.reshape(B, C, HW)              # free reshape, no transpose
    cb = _channel_block(C)
    # NOTE: for very large B*H*W a two-pass N-tiled reduction (per-channel
    # sum/sumsq accumulators) would be needed; full-N blocks are fine here.
    out = pl.pallas_call(
        _bn_relu_kernel,
        grid=(C // cb,),
        in_specs=[pl.BlockSpec((B, cb, HW), lambda c: (0, c, 0)),
                  pl.BlockSpec((cb, 1), lambda c: (c, 0)),
                  pl.BlockSpec((cb, 1), lambda c: (c, 0))],
        out_specs=pl.BlockSpec((B, cb, HW), lambda c: (0, c, 0)),
        out_shape=jax.ShapeDtypeStruct((B, C, HW), jnp.float32),
        compiler_params=pltpu.CompilerParams(
            dimension_semantics=("parallel",),
            vmem_limit_bytes=VMEM_LIMIT),
    )(z, gamma.reshape(C, 1), beta.reshape(C, 1))
    return out.reshape(B, C, H, W)


# ----------------------------------------------------------------------------
# Fused [1x1-conv skip + BatchNorm2d + add + ReLU].
# ----------------------------------------------------------------------------
def _bn_skip_relu_kernel(z_ref, x_ref, w_ref, bias_ref, g_ref, b_ref, o_ref):
    # z: (B, Cb, HW)  x: (B, Cin, HW)  w: (Cin, Cb, 1)  bias/g/b: (Cb, 1)
    zc, var = _bn_stats(z_ref[...])
    y = zc * lax.rsqrt(var + EPS) * g_ref[...][None] + b_ref[...][None]

    # 1x1-conv skip: Cin/Cout far below MXU width -> VPU broadcast-MAC over Cin
    # instead of a padded MXU matmul.
    x = x_ref[...]
    skip = None
    for ci in range(x.shape[1]):
        term = w_ref[ci][None] * x[:, ci:ci + 1, :]   # (1,Cb,1) * (B,1,HW)
        skip = term if skip is None else skip + term
    skip = skip + bias_ref[...][None]

    o_ref[...] = jnp.maximum(y + skip, 0.0)


def bn_skip_relu(z_nchw, x_nchw, w_skip, b_skip, gamma, beta):
    B, Cout, H, W = z_nchw.shape
    Cin = x_nchw.shape[1]
    HW = H * W
    z = z_nchw.reshape(B, Cout, HW)
    x = x_nchw.reshape(B, Cin, HW)
    wT = jnp.transpose(w_skip, (1, 0)).reshape(Cin, Cout, 1)   # tiny
    cb = _channel_block(Cout)
    out = pl.pallas_call(
        _bn_skip_relu_kernel,
        grid=(Cout // cb,),
        in_specs=[pl.BlockSpec((B, cb, HW), lambda c: (0, c, 0)),
                  pl.BlockSpec((B, Cin, HW), lambda c: (0, 0, 0)),
                  pl.BlockSpec((Cin, cb, 1), lambda c: (0, c, 0)),
                  pl.BlockSpec((cb, 1), lambda c: (c, 0)),
                  pl.BlockSpec((cb, 1), lambda c: (c, 0)),
                  pl.BlockSpec((cb, 1), lambda c: (c, 0))],
        out_specs=pl.BlockSpec((B, cb, HW), lambda c: (0, c, 0)),
        out_shape=jax.ShapeDtypeStruct((B, Cout, HW), jnp.float32),
        compiler_params=pltpu.CompilerParams(
            dimension_semantics=("parallel",),
            vmem_limit_bytes=VMEM_LIMIT),
    )(z, x, wT, b_skip.reshape(Cout, 1), gamma.reshape(Cout, 1),
      beta.reshape(Cout, 1))
    return out.reshape(B, Cout, H, W)


# ----------------------------------------------------------------------------
# FFTResBlock.forward
# ----------------------------------------------------------------------------
def fft_res_block(x, params):
    z1 = fft_conv2d(x, params["w1"])                                  # conv1
    a1 = bn_relu(z1, params["gamma1"], params["beta1"])               # bn1 + relu
    z2 = fft_conv2d(a1, params["w2"])                                 # conv2
    return bn_skip_relu(z2, x, params["w_skip"], params["b_skip"],    # skip+bn2+relu
                        params["gamma2"], params["beta2"])


# ----------------------------------------------------------------------------
# Pure-JAX reference (mirrors the PyTorch forward, training-mode batchnorm).
# ----------------------------------------------------------------------------
def reference(x, p):
    def fftconv(xx, w):
        H, W = xx.shape[-2:]
        xf = jnp.fft.rfft2(xx)
        kf = jnp.fft.rfft2(w)
        of = jnp.sum(xf[:, None] * kf[None, ...], axis=2)
        return jnp.fft.irfft2(of, s=(H, W))

    def bn(z, g, b):
        mean = jnp.mean(z, axis=(0, 2, 3), keepdims=True)
        var = jnp.mean((z - mean) ** 2, axis=(0, 2, 3), keepdims=True)
        return ((z - mean) / jnp.sqrt(var + EPS)
                * g[None, :, None, None] + b[None, :, None, None])

    skip = (jnp.einsum("oc,bchw->bohw", p["w_skip"], x)
            + p["b_skip"][None, :, None, None])
    z = jnp.maximum(bn(fftconv(x, p["w1"]), p["gamma1"], p["beta1"]), 0.0)
    z = bn(fftconv(z, p["w2"]), p["gamma2"], p["beta2"])
    return jnp.maximum(skip + z, 0.0)


if __name__ == "__main__":
    B, Cin, Cout, H, W = 2, 4, 8, 16, 16

    key = jax.random.PRNGKey(0)
    k1, k2, k3, k4, k5, k6, k7, k8 = jax.random.split(key, 8)

    # xavier-uniform-like bounds for the FFT conv weights (full-size kernels)
    bound1 = (6.0 / ((Cin + Cout) * H * W)) ** 0.5
    bound2 = (6.0 / ((Cout + Cout) * H * W)) ** 0.5
    bskip_bound = 1.0 / (Cin ** 0.5)

    params = {
        "w1": jax.random.uniform(k1, (Cout, Cin, H, W), jnp.float32, -bound1, bound1),
        "w2": jax.random.uniform(k2, (Cout, Cout, H, W), jnp.float32, -bound2, bound2),
        "gamma1": 1.0 + 0.1 * jax.random.normal(k3, (Cout,), jnp.float32),
        "beta1": 0.1 * jax.random.normal(k4, (Cout,), jnp.float32),
        "gamma2": 1.0 + 0.1 * jax.random.normal(k5, (Cout,), jnp.float32),
        "beta2": 0.1 * jax.random.normal(k6, (Cout,), jnp.float32),
        "w_skip": jax.random.uniform(k7, (Cout, Cin), jnp.float32,
                                     -bskip_bound, bskip_bound),
        "b_skip": jax.random.uniform(k8, (Cout,), jnp.float32,
                                     -bskip_bound, bskip_bound),
    }

    x = jax.random.normal(jax.random.PRNGKey(42), (B, Cin, H, W), jnp.float32)

    out = jax.block_until_ready(jax.jit(fft_res_block)(x, params))
    ref = jax.block_until_ready(reference(x, params))

    assert out.shape == (B, Cout, H, W), out.shape
    np.testing.assert_allclose(np.asarray(out), np.asarray(ref),
                               rtol=2e-3, atol=2e-3)
    print("KERNEL_OK")
</pallas_src>

<mosaic_0001>
module attributes {stable_mosaic.version = 11 : i64} {
  func.func @_freq_conv_kernel(%arg0: i32, %arg1: i32, %arg2: i32, %arg3: i32, %arg4: memref<1x4x256xf32, #tpu.memory_space<vmem>>, %arg5: memref<1x4x256xf32, #tpu.memory_space<vmem>>, %arg6: memref<4x8x256xf32, #tpu.memory_space<vmem>>, %arg7: memref<4x8x256xf32, #tpu.memory_space<vmem>>, %arg8: memref<1x8x256xf32, #tpu.memory_space<vmem>>, %arg9: memref<1x8x256xf32, #tpu.memory_space<vmem>>) attributes {dimension_semantics = [#tpu.dimension_semantics<parallel>, #tpu.dimension_semantics<parallel>, #tpu.dimension_semantics<parallel>, #tpu.dimension_semantics<arbitrary>], iteration_bounds = array<i64: 2, 1, 1, 1>, scalar_prefetch = 0 : i64, scratch_operands = 0 : i64, tpu.core_type = #tpu.core_type<tc>, window_params = [{transform_indices = @transform_0, window_bounds = array<i64: 1, 4, 256>}, {transform_indices = @transform_1, window_bounds = array<i64: 1, 4, 256>}, {transform_indices = @transform_2, window_bounds = array<i64: 4, 8, 256>}, {transform_indices = @transform_3, window_bounds = array<i64: 4, 8, 256>}, {transform_indices = @transform_4, window_bounds = array<i64: 1, 8, 256>}, {transform_indices = @transform_5, window_bounds = array<i64: 1, 8, 256>}]} {
    %c0_i32 = arith.constant 0 : i32
    %0 = arith.cmpi eq, %arg3, %c0_i32 : i32
    %1 = arith.extui %0 : i1 to i32
    %c0_i32_0 = arith.constant 0 : i32
    %2 = arith.cmpi ne, %1, %c0_i32_0 : i32
    scf.if %2 {
      %cst = arith.constant 0.000000e+00 : f32
      %89 = vector.broadcast %cst : f32 to vector<1x8x256xf32>
      %c0_39 = arith.constant 0 : index
      %c0_40 = arith.constant 0 : index
      %c0_41 = arith.constant 0 : index
      %90 = vector.load %arg8[%c0_39, %c0_40, %c0_41] : memref<1x8x256xf32, #tpu.memory_space<vmem>>, vector<1x8x256xf32>
      tpu.vector_store %arg8[%c0_39, %c0_40, %c0_41], %89 {strides = array<i32>} : memref<1x8x256xf32, #tpu.memory_space<vmem>>, vector<1x8x256xf32>,
      %cst_42 = arith.constant 0.000000e+00 : f32
      %91 = vector.broadcast %cst_42 : f32 to vector<1x8x256xf32>
      %c0_43 = arith.constant 0 : index
      %c0_44 = arith.constant 0 : index
      %c0_45 = arith.constant 0 : index
      %92 = vector.load %arg9[%c0_43, %c0_44, %c0_45] : memref<1x8x256xf32, #tpu.memory_space<vmem>>, vector<1x8x256xf32>
      tpu.vector_store %arg9[%c0_43, %c0_44, %c0_45], %91 {strides = array<i32>} : memref<1x8x256xf32, #tpu.memory_space<vmem>>, vector<1x8x256xf32>,
    } else {
    }
    %c0 = arith.constant 0 : index
    %c0_1 = arith.constant 0 : index
    %c0_2 = arith.constant 0 : index
    %3 = vector.load %arg4[%c0, %c0_1, %c0_2] : memref<1x4x256xf32, #tpu.memory_space<vmem>>, vector<1x4x256xf32>
    %4 = vector.shape_cast %3 : vector<1x4x256xf32> to vector<4x256xf32>
    %c0_3 = arith.constant 0 : index
    %c0_4 = arith.constant 0 : index
    %c0_5 = arith.constant 0 : index
    %5 = vector.load %arg5[%c0_3, %c0_4, %c0_5] : memref<1x4x256xf32, #tpu.memory_space<vmem>>, vector<1x4x256xf32>
    %6 = vector.shape_cast %5 : vector<1x4x256xf32> to vector<4x256xf32>
    %7 = vector.extract_strided_slice %4 {offsets = [0, 0], sizes = [1, 256], strides = [1, 1]} : vector<4x256xf32> to vector<1x256xf32>
    %8 = vector.extract_strided_slice %6 {offsets = [0, 0], sizes = [1, 256], strides = [1, 1]} : vector<4x256xf32> to vector<1x256xf32>
    %c0_6 = arith.constant 0 : index
    %c0_7 = arith.constant 0 : index
    %c0_8 = arith.constant 0 : index
    %9 = vector.load %arg6[%c0_6, %c0_7, %c0_8] : memref<4x8x256xf32, #tpu.memory_space<vmem>>, vector<1x8x256xf32>
    %10 = vector.shape_cast %9 : vector<1x8x256xf32> to vector<8x256xf32>
    %c0_9 = arith.constant 0 : index
    %c0_10 = arith.constant 0 : index
    %c0_11 = arith.constant 0 : index
    %11 = vector.load %arg7[%c0_9, %c0_10, %c0_11] : memref<4x8x256xf32, #tpu.memory_space<vmem>>, vector<1x8x256xf32>
    %12 = vector.shape_cast %11 : vector<1x8x256xf32> to vector<8x256xf32>
    %13 = vector.broadcast %7 : vector<1x256xf32> to vector<8x256xf32>
    %14 = arith.mulf %13, %10 : vector<8x256xf32>
    %15 = vector.broadcast %8 : vector<1x256xf32> to vector<8x256xf32>
    %16 = arith.mulf %15, %12 : vector<8x256xf32>
    %17 = arith.subf %14, %16 : vector<8x256xf32>
    %18 = vector.broadcast %7 : vector<1x256xf32> to vector<8x256xf32>
    %19 = arith.mulf %18, %12 : vector<8x256xf32>
    %20 = vector.broadcast %8 : vector<1x256xf32> to vector<8x256xf32>
    %21 = arith.mulf %20, %10 : vector<8x256xf32>
    %22 = arith.addf %19, %21 : vector<8x256xf32>
    %23 = vector.extract_strided_slice %4 {offsets = [1, 0], sizes = [1, 256], strides = [1, 1]} : vector<4x256xf32> to vector<1x256xf32>
    %24 = vector.extract_strided_slice %6 {offsets = [1, 0], sizes = [1, 256], strides = [1, 1]} : vector<4x256xf32> to vector<1x256xf32>
    %c1 = arith.constant 1 : index
    %c0_12 = arith.constant 0 : index
    %c0_13 = arith.constant 0 : index
    %25 = vector.load %arg6[%c1, %c0_12, %c0_13] : memref<4x8x256xf32, #tpu.memory_space<vmem>>, vector<1x8x256xf32>
    %26 = vector.shape_cast %25 : vector<1x8x256xf32> to vector<8x256xf32>
    %c1_14 = arith.constant 1 : index
    %c0_15 = arith.constant 0 : index
    %c0_16 = arith.constant 0 : index
    %27 = vector.load %arg7[%c1_14, %c0_15, %c0_16] : memref<4x8x256xf32, #tpu.memory_space<vmem>>, vector<1x8x256xf32>
    %28 = vector.shape_cast %27 : vector<1x8x256xf32> to vector<8x256xf32>
    %29 = vector.broadcast %23 : vector<1x256xf32> to vector<8x256xf32>
    %30 = arith.mulf %29, %26 : vector<8x256xf32>
    %31 = vector.broadcast %24 : vector<1x256xf32> to vector<8x256xf32>
    %32 = arith.mulf %31, %28 : vector<8x256xf32>
    %33 = arith.subf %30, %32 : vector<8x256xf32>
    %34 = vector.broadcast %23 : vector<1x256xf32> to vector<8x256xf32>
    %35 = arith.mulf %34, %28 : vector<8x256xf32>
    %36 = vector.broadcast %24 : vector<1x256xf32> to vector<8x256xf32>
    %37 = arith.mulf %36, %26 : vector<8x256xf32>
    %38 = arith.addf %35, %37 : vector<8x256xf32>
    %39 = arith.addf %17, %33 : vector<8x256xf32>
    %40 = arith.addf %22, %38 : vector<8x256xf32>
    %41 = vector.extract_strided_slice %4 {offsets = [2, 0], sizes = [1, 256], strides = [1, 1]} : vector<4x256xf32> to vector<1x256xf32>
    %42 = vector.extract_strided_slice %6 {offsets = [2, 0], sizes = [1, 256], strides = [1, 1]} : vector<4x256xf32> to vector<1x256xf32>
    %c2 = arith.constant 2 : index
    %c0_17 = arith.constant 0 : index
    %c0_18 = arith.constant 0 : index
    %43 = vector.load %arg6[%c2, %c0_17, %c0_18] : memref<4x8x256xf32, #tpu.memory_space<vmem>>, vector<1x8x256xf32>
    %44 = vector.shape_cast %43 : vector<1x8x256xf32> to vector<8x256xf32>
    %c2_19 = arith.constant 2 : index
    %c0_20 = arith.constant 0 : index
    %c0_21 = arith.constant 0 : index
    %45 = vector.load %arg7[%c2_19, %c0_20, %c0_21] : memref<4x8x256xf32, #tpu.memory_space<vmem>>, vector<1x8x256xf32>
    %46 = vector.shape_cast %45 : vector<1x8x256xf32> to vector<8x256xf32>
    %47 = vector.broadcast %41 : vector<1x256xf32> to vector<8x256xf32>
    %48 = arith.mulf %47, %44 : vector<8x256xf32>
    %49 = vector.broadcast %42 : vector<1x256xf32> to vector<8x256xf32>
    %50 = arith.mulf %49, %46 : vector<8x256xf32>
    %51 = arith.subf %48, %50 : vector<8x256xf32>
    %52 = vector.broadcast %41 : vector<1x256xf32> to vector<8x256xf32>
    %53 = arith.mulf %52, %46 : vector<8x256xf32>
    %54 = vector.broadcast %42 : vector<1x256xf32> to vector<8x256xf32>
    %55 = arith.mulf %54, %44 : vector<8x256xf32>
    %56 = arith.addf %53, %55 : vector<8x256xf32>
    %57 = arith.addf %39, %51 : vector<8x256xf32>
    %58 = arith.addf %40, %56 : vector<8x256xf32>
    %59 = vector.extract_strided_slice %4 {offsets = [3, 0], sizes = [1, 256], strides = [1, 1]} : vector<4x256xf32> to vector<1x256xf32>
    %60 = vector.extract_strided_slice %6 {offsets = [3, 0], sizes = [1, 256], strides = [1, 1]} : vector<4x256xf32> to vector<1x256xf32>
    %c3 = arith.constant 3 : index
    %c0_22 = arith.constant 0 : index
    %c0_23 = arith.constant 0 : index
    %61 = vector.load %arg6[%c3, %c0_22, %c0_23] : memref<4x8x256xf32, #tpu.memory_space<vmem>>, vector<1x8x256xf32>
    %62 = vector.shape_cast %61 : vector<1x8x256xf32> to vector<8x256xf32>
    %c3_24 = arith.constant 3 : index
    %c0_25 = arith.constant 0 : index
    %c0_26 = arith.constant 0 : index
    %63 = vector.load %arg7[%c3_24, %c0_25, %c0_26] : memref<4x8x256xf32, #tpu.memory_space<vmem>>, vector<1x8x256xf32>
    %64 = vector.shape_cast %63 : vector<1x8x256xf32> to vector<8x256xf32>
    %65 = vector.broadcast %59 : vector<1x256xf32> to vector<8x256xf32>
    %66 = arith.mulf %65, %62 : vector<8x256xf32>
    %67 = vector.broadcast %60 : vector<1x256xf32> to vector<8x256xf32>
    %68 = arith.mulf %67, %64 : vector<8x256xf32>
    %69 = arith.subf %66, %68 : vector<8x256xf32>
    %70 = vector.broadcast %59 : vector<1x256xf32> to vector<8x256xf32>
    %71 = arith.mulf %70, %64 : vector<8x256xf32>
    %72 = vector.broadcast %60 : vector<1x256xf32> to vector<8x256xf32>
    %73 = arith.mulf %72, %62 : vector<8x256xf32>
    %74 = arith.addf %71, %73 : vector<8x256xf32>
    %75 = arith.addf %57, %69 : vector<8x256xf32>
    %76 = arith.addf %58, %74 : vector<8x256xf32>
    %c0_27 = arith.constant 0 : index
    %c0_28 = arith.constant 0 : index
    %c0_29 = arith.constant 0 : index
    %77 = vector.load %arg8[%c0_27, %c0_28, %c0_29] : memref<1x8x256xf32, #tpu.memory_space<vmem>>, vector<1x8x256xf32>
    %78 = vector.shape_cast %77 : vector<1x8x256xf32> to vector<8x256xf32>
    %79 = arith.addf %78, %75 : vector<8x256xf32>
    %c0_30 = arith.constant 0 : index
    %c0_31 = arith.constant 0 : index
    %c0_32 = arith.constant 0 : index
    %80 = vector.load %arg8[%c0_30, %c0_31, %c0_32] : memref<1x8x256xf32, #tpu.memory_space<vmem>>, vector<1x8x256xf32>
    %81 = vector.shape_cast %80 : vector<1x8x256xf32> to vector<8x256xf32>
    %82 = vector.shape_cast %79 : vector<8x256xf32> to vector<1x8x256xf32>
    tpu.vector_store %arg8[%c0_30, %c0_31, %c0_32], %82 {strides = array<i32>} : memref<1x8x256xf32, #tpu.memory_space<vmem>>, vector<1x8x256xf32>,
    %c0_33 = arith.constant 0 : index
    %c0_34 = arith.constant 0 : index
    %c0_35 = arith.constant 0 : index
    %83 = vector.load %arg9[%c0_33, %c0_34, %c0_35] : memref<1x8x256xf32, #tpu.memory_space<vmem>>, vector<1x8x256xf32>
    %84 = vector.shape_cast %83 : vector<1x8x256xf32> to vector<8x256xf32>
    %85 = arith.addf %84, %76 : vector<8x256xf32>
    %c0_36 = arith.constant 0 : index
    %c0_37 = arith.constant 0 : index
    %c0_38 = arith.constant 0 : index
    %86 = vector.load %arg9[%c0_36, %c0_37, %c0_38] : memref<1x8x256xf32, #tpu.memory_space<vmem>>, vector<1x8x256xf32>
    %87 = vector.shape_cast %86 : vector<1x8x256xf32> to vector<8x256xf32>
    %88 = vector.shape_cast %85 : vector<8x256xf32> to vector<1x8x256xf32>
    tpu.vector_store %arg9[%c0_36, %c0_37, %c0_38], %88 {strides = array<i32>} : memref<1x8x256xf32, #tpu.memory_space<vmem>>, vector<1x8x256xf32>,
    return
  }
  func.func @transform_0(%arg0: i32, %arg1: i32, %arg2: i32, %arg3: i32) -> (i32, i32, i32) {
    %c0_i32 = arith.constant 0 : i32
    return %arg0, %arg3, %arg2 : i32, i32, i32
  }
  func.func @transform_1(%arg0: i32, %arg1: i32, %arg2: i32, %arg3: i32) -> (i32, i32, i32) {
    %c0_i32 = arith.constant 0 : i32
    return %arg0, %arg3, %arg2 : i32, i32, i32
  }
  func.func @transform_2(%arg0: i32, %arg1: i32, %arg2: i32, %arg3: i32) -> (i32, i32, i32) {
    %c0_i32 = arith.constant 0 : i32
    return %arg3, %arg1, %arg2 : i32, i32, i32
  }
  func.func @transform_3(%arg0: i32, %arg1: i32, %arg2: i32, %arg3: i32) -> (i32, i32, i32) {
    %c0_i32 = arith.constant 0 : i32
    return %arg3, %arg1, %arg2 : i32, i32, i32
  }
  func.func @transform_4(%arg0: i32, %arg1: i32, %arg2: i32, %arg3: i32) -> (i32, i32, i32) {
    %c0_i32 = arith.constant 0 : i32
    return %arg0, %arg1, %arg2 : i32, i32, i32
  }
  func.func @transform_5(%arg0: i32, %arg1: i32, %arg2: i32, %arg3: i32) -> (i32, i32, i32) {
    %c0_i32 = arith.constant 0 : i32
    return %arg0, %arg1, %arg2 : i32, i32, i32
  }
}

module attributes {stable_mosaic.version = 11 : i64} {
  func.func @_bn_relu_kernel(%arg0: i32, %arg1: memref<2x8x256xf32, #tpu.memory_space<vmem>>, %arg2: memref<8x1xf32, #tpu.memory_space<vmem>>, %arg3: memref<8x1xf32, #tpu.memory_space<vmem>>, %arg4: memref<2x8x256xf32, #tpu.memory_space<vmem>>) attributes {dimension_semantics = [#tpu.dimension_semantics<parallel>], iteration_bounds = array<i64: 1>, scalar_prefetch = 0 : i64, scratch_operands = 0 : i64, tpu.core_type = #tpu.core_type<tc>, window_params = [{transform_indices = @transform_0, window_bounds = array<i64: 2, 8, 256>}, {transform_indices = @transform_1, window_bounds = array<i64: 8, 1>}, {transform_indices = @transform_2, window_bounds = array<i64: 8, 1>}, {transform_indices = @transform_3, window_bounds = array<i64: 2, 8, 256>}]} {
    %c0 = arith.constant 0 : index
    %c0_0 = arith.constant 0 : index
    %c0_1 = arith.constant 0 : index
    %0 = vector.load %arg1[%c0, %c0_0, %c0_1] : memref<2x8x256xf32, #tpu.memory_space<vmem>>, vector<2x8x256xf32>
    %cst = arith.constant dense<0.000000e+00> : vector<2x8xf32>
    %1 = vector.multi_reduction <add>, %0, %cst [2] : vector<2x8x256xf32> to vector<2x8xf32>
    %2 = vector.shape_cast %1 : vector<2x8xf32> to vector<2x8x1xf32>
    %cst_2 = arith.constant dense<0.000000e+00> : vector<8x1xf32>
    %3 = vector.multi_reduction <add>, %2, %cst_2 [0] : vector<2x8x1xf32> to vector<8x1xf32>
    %4 = vector.shape_cast %3 : vector<8x1xf32> to vector<1x8x1xf32>
    %cst_3 = arith.constant 5.120000e+02 : f32
    %5 = vector.broadcast %cst_3 : f32 to vector<1x8x1xf32>
    %6 = arith.divf %4, %5 : vector<1x8x1xf32>
    %7 = vector.broadcast %6 : vector<1x8x1xf32> to vector<2x8x256xf32>
    %8 = arith.subf %0, %7 : vector<2x8x256xf32>
    %9 = arith.mulf %8, %8 : vector<2x8x256xf32>
    %cst_4 = arith.constant dense<0.000000e+00> : vector<2x8xf32>
    %10 = vector.multi_reduction <add>, %9, %cst_4 [2] : vector<2x8x256xf32> to vector<2x8xf32>
    %11 = vector.shape_cast %10 : vector<2x8xf32> to vector<2x8x1xf32>
    %cst_5 = arith.constant dense<0.000000e+00> : vector<8x1xf32>
    %12 = vector.multi_reduction <add>, %11, %cst_5 [0] : vector<2x8x1xf32> to vector<8x1xf32>
    %13 = vector.shape_cast %12 : vector<8x1xf32> to vector<1x8x1xf32>
    %cst_6 = arith.constant 5.120000e+02 : f32
    %14 = vector.broadcast %cst_6 : f32 to vector<1x8x1xf32>
    %15 = arith.divf %13, %14 : vector<1x8x1xf32>
    %cst_7 = arith.constant 9.99999974E-6 : f32
    %16 = vector.broadcast %cst_7 : f32 to vector<1x8x1xf32>
    %17 = arith.addf %15, %16 : vector<1x8x1xf32>
    %18 = math.rsqrt %17 : vector<1x8x1xf32>
    %19 = vector.broadcast %18 : vector<1x8x1xf32> to vector<2x8x256xf32>
    %20 = arith.mulf %8, %19 : vector<2x8x256xf32>
    %c0_8 = arith.constant 0 : index
    %c0_9 = arith.constant 0 : index
    %21 = vector.load %arg2[%c0_8, %c0_9] : memref<8x1xf32, #tpu.memory_space<vmem>>, vector<8x1xf32>
    %22 = vector.shape_cast %21 : vector<8x1xf32> to vector<1x8x1xf32>
    %23 = vector.broadcast %22 : vector<1x8x1xf32> to vector<2x8x256xf32>
    %24 = arith.mulf %20, %23 : vector<2x8x256xf32>
    %c0_10 = arith.constant 0 : index
    %c0_11 = arith.constant 0 : index
    %25 = vector.load %arg3[%c0_10, %c0_11] : memref<8x1xf32, #tpu.memory_space<vmem>>, vector<8x1xf32>
    %26 = vector.shape_cast %25 : vector<8x1xf32> to vector<1x8x1xf32>
    %27 = vector.broadcast %26 : vector<1x8x1xf32> to vector<2x8x256xf32>
    %28 = arith.addf %24, %27 : vector<2x8x256xf32>
    %cst_12 = arith.constant 0.000000e+00 : f32
    %29 = vector.broadcast %cst_12 : f32 to vector<2x8x256xf32>
    %30 = arith.maximumf %28, %29 : vector<2x8x256xf32>
    %c0_13 = arith.constant 0 : index
    %c0_14 = arith.constant 0 : index
    %c0_15 = arith.constant 0 : index
    %31 = vector.load %arg4[%c0_13, %c0_14, %c0_15] : memref<2x8x256xf32, #tpu.memory_space<vmem>>, vector<2x8x256xf32>
    tpu.vector_store %arg4[%c0_13, %c0_14, %c0_15], %30 {strides = array<i32>} : memref<2x8x256xf32, #tpu.memory_space<vmem>>, vector<2x8x256xf32>,
    return
  }
  func.func @transform_0(%arg0: i32) -> (i32, i32, i32) {
    %c0_i32 = arith.constant 0 : i32
    %c0_i32_0 = arith.constant 0 : i32
    %c0_i32_1 = arith.constant 0 : i32
    return %c0_i32, %arg0, %c0_i32_0 : i32, i32, i32
  }
  func.func @transform_1(%arg0: i32) -> (i32, i32) {
    %c0_i32 = arith.constant 0 : i32
    %c0_i32_0 = arith.constant 0 : i32
    return %arg0, %c0_i32 : i32, i32
  }
  func.func @transform_2(%arg0: i32) -> (i32, i32) {
    %c0_i32 = arith.constant 0 : i32
    %c0_i32_0 = arith.constant 0 : i32
    return %arg0, %c0_i32 : i32, i32
  }
  func.func @transform_3(%arg0: i32) -> (i32, i32, i32) {
    %c0_i32 = arith.constant 0 : i32
    %c0_i32_0 = arith.constant 0 : i32
    %c0_i32_1 = arith.constant 0 : i32
    return %c0_i32, %arg0, %c0_i32_0 : i32, i32, i32
  }
}

module attributes {stable_mosaic.version = 11 : i64} {
  func.func @_freq_conv_kernel(%arg0: i32, %arg1: i32, %arg2: i32, %arg3: i32, %arg4: memref<1x8x256xf32, #tpu.memory_space<vmem>>, %arg5: memref<1x8x256xf32, #tpu.memory_space<vmem>>, %arg6: memref<8x8x256xf32, #tpu.memory_space<vmem>>, %arg7: memref<8x8x256xf32, #tpu.memory_space<vmem>>, %arg8: memref<1x8x256xf32, #tpu.memory_space<vmem>>, %arg9: memref<1x8x256xf32, #tpu.memory_space<vmem>>) attributes {dimension_semantics = [#tpu.dimension_semantics<parallel>, #tpu.dimension_semantics<parallel>, #tpu.dimension_semantics<parallel>, #tpu.dimension_semantics<arbitrary>], iteration_bounds = array<i64: 2, 1, 1, 1>, scalar_prefetch = 0 : i64, scratch_operands = 0 : i64, tpu.core_type = #tpu.core_type<tc>, window_params = [{transform_indices = @transform_0, window_bounds = array<i64: 1, 8, 256>}, {transform_indices = @transform_1, window_bounds = array<i64: 1, 8, 256>}, {transform_indices = @transform_2, window_bounds = array<i64: 8, 8, 256>}, {transform_indices = @transform_3, window_bounds = array<i64: 8, 8, 256>}, {transform_indices = @transform_4, window_bounds = array<i64: 1, 8, 256>}, {transform_indices = @transform_5, window_bounds = array<i64: 1, 8, 256>}]} {
    %c0_i32 = arith.constant 0 : i32
    %0 = arith.cmpi eq, %arg3, %c0_i32 : i32
    %1 = arith.extui %0 : i1 to i32
    %c0_i32_0 = arith.constant 0 : i32
    %2 = arith.cmpi ne, %1, %c0_i32_0 : i32
    scf.if %2 {
      %cst = arith.constant 0.000000e+00 : f32
      %161 = vector.broadcast %cst : f32 to vector<1x8x256xf32>
      %c0_59 = arith.constant 0 : index
      %c0_60 = arith.constant 0 : index
      %c0_61 = arith.constant 0 : index
      %162 = vector.load %arg8[%c0_59, %c0_60, %c0_61] : memref<1x8x256xf32, #tpu.memory_space<vmem>>, vector<1x8x256xf32>
      tpu.vector_store %arg8[%c0_59, %c0_60, %c0_61], %161 {strides = array<i32>} : memref<1x8x256xf32, #tpu.memory_space<vmem>>, vector<1x8x256xf32>,
      %cst_62 = arith.constant 0.000000e+00 : f32
      %163 = vector.broadcast %cst_62 : f32 to vector<1x8x256xf32>
      %c0_63 = arith.constant 0 : index
      %c0_64 = arith.constant 0 : index
      %c0_65 = arith.constant 0 : index
      %164 = vector.load %arg9[%c0_63, %c0_64, %c0_65] : memref<1x8x256xf32, #tpu.memory_space<vmem>>, vector<1x8x256xf32>
      tpu.vector_store %arg9[%c0_63, %c0_64, %c0_65], %163 {strides = array<i32>} : memref<1x8x256xf32, #tpu.memory_space<vmem>>, vector<1x8x256xf32>,
    } else {
    }
    %c0 = arith.constant 0 : index
    %c0_1 = arith.constant 0 : index
    %c0_2 = arith.constant 0 : index
    %3 = vector.load %arg4[%c0, %c0_1, %c0_2] : memref<1x8x256xf32, #tpu.memory_space<vmem>>, vector<1x8x256xf32>
    %4 = vector.shape_cast %3 : vector<1x8x256xf32> to vector<8x256xf32>
    %c0_3 = arith.constant 0 : index
    %c0_4 = arith.constant 0 : index
    %c0_5 = arith.constant 0 : index
    %5 = vector.load %arg5[%c0_3, %c0_4, %c0_5] : memref<1x8x256xf32, #tpu.memory_space<vmem>>, vector<1x8x256xf32>
    %6 = vector.shape_cast %5 : vector<1x8x256xf32> to vector<8x256xf32>
    %7 = vector.extract_strided_slice %4 {offsets = [0, 0], sizes = [1, 256], strides = [1, 1]} : vector<8x256xf32> to vector<1x256xf32>
    %8 = vector.extract_strided_slice %6 {offsets = [0, 0], sizes = [1, 256], strides = [1, 1]} : vector<8x256xf32> to vector<1x256xf32>
    %c0_6 = arith.constant 0 : index
    %c0_7 = arith.constant 0 : index
    %c0_8 = arith.constant 0 : index
    %9 = vector.load %arg6[%c0_6, %c0_7, %c0_8] : memref<8x8x256xf32, #tpu.memory_space<vmem>>, vector<1x8x256xf32>
    %10 = vector.shape_cast %9 : vector<1x8x256xf32> to vector<8x256xf32>
    %c0_9 = arith.constant 0 : index
    %c0_10 = arith.constant 0 : index
    %c0_11 = arith.constant 0 : index
    %11 = vector.load %arg7[%c0_9, %c0_10, %c0_11] : memref<8x8x256xf32, #tpu.memory_space<vmem>>, vector<1x8x256xf32>
    %12 = vector.shape_cast %11 : vector<1x8x256xf32> to vector<8x256xf32>
    %13 = vector.broadcast %7 : vector<1x256xf32> to vector<8x256xf32>
    %14 = arith.mulf %13, %10 : vector<8x256xf32>
    %15 = vector.broadcast %8 : vector<1x256xf32> to vector<8x256xf32>
    %16 = arith.mulf %15, %12 : vector<8x256xf32>
    %17 = arith.subf %14, %16 : vector<8x256xf32>
    %18 = vector.broadcast %7 : vector<1x256xf32> to vector<8x256xf32>
    %19 = arith.mulf %18, %12 : vector<8x256xf32>
    %20 = vector.broadcast %8 : vector<1x256xf32> to vector<8x256xf32>
    %21 = arith.mulf %20, %10 : vector<8x256xf32>
    %22 = arith.addf %19, %21 : vector<8x256xf32>
    %23 = vector.extract_strided_slice %4 {offsets = [1, 0], sizes = [1, 256], strides = [1, 1]} : vector<8x256xf32> to vector<1x256xf32>
    %24 = vector.extract_strided_slice %6 {offsets = [1, 0], sizes = [1, 256], strides = [1, 1]} : vector<8x256xf32> to vector<1x256xf32>
    %c1 = arith.constant 1 : index
    %c0_12 = arith.constant 0 : index
    %c0_13 = arith.constant 0 : index
    %25 = vector.load %arg6[%c1, %c0_12, %c0_13] : memref<8x8x256xf32, #tpu.memory_space<vmem>>, vector<1x8x256xf32>
    %26 = vector.shape_cast %25 : vector<1x8x256xf32> to vector<8x256xf32>
    %c1_14 = arith.constant 1 : index
    %c0_15 = arith.constant 0 : index
    %c0_16 = arith.constant 0 : index
    %27 = vector.load %arg7[%c1_14, %c0_15, %c0_16] : memref<8x8x256xf32, #tpu.memory_space<vmem>>, vector<1x8x256xf32>
    %28 = vector.shape_cast %27 : vector<1x8x256xf32> to vector<8x256xf32>
    %29 = vector.broadcast %23 : vector<1x256xf32> to vector<8x256xf32>
    %30 = arith.mulf %29, %26 : vector<8x256xf32>
    %31 = vector.broadcast %24 : vector<1x256xf32> to vector<8x256xf32>
    %32 = arith.mulf %31, %28 : vector<8x256xf32>
    %33 = arith.subf %30, %32 : vector<8x256xf32>
    %34 = vector.broadcast %23 : vector<1x256xf32> to vector<8x256xf32>
    %35 = arith.mulf %34, %28 : vector<8x256xf32>
    %36 = vector.broadcast %24 : vector<1x256xf32> to vector<8x256xf32>
    %37 = arith.mulf %36, %26 : vector<8x256xf32>
    %38 = arith.addf %35, %37 : vector<8x256xf32>
    %39 = arith.addf %17, %33 : vector<8x256xf32>
    %40 = arith.addf %22, %38 : vector<8x256xf32>
    %41 = vector.extract_strided_slice %4 {offsets = [2, 0], sizes = [1, 256], strides = [1, 1]} : vector<8x256xf32> to vector<1x256xf32>
    %42 = vector.extract_strided_slice %6 {offsets = [2, 0], sizes = [1, 256], strides = [1, 1]} : vector<8x256xf32> to vector<1x256xf32>
    %c2 = arith.constant 2 : index
    %c0_17 = arith.constant 0 : index
    %c0_18 = arith.constant 0 : index
    %43 = vector.load %arg6[%c2, %c0_17, %c0_18] : memref<8x8x256xf32, #tpu.memory_space<vmem>>, vector<1x8x256xf32>
    %44 = vector.shape_cast %43 : vector<1x8x256xf32> to vector<8x256xf32>
    %c2_19 = arith.constant 2 : index
    %c0_20 = arith.constant 0 : index
    %c0_21 = arith.constant 0 : index
    %45 = vector.load %arg7[%c2_19, %c0_20, %c0_21] : memref<8x8x256xf32, #tpu.memory_space<vmem>>, vector<1x8x256xf32>
    %46 = vector.shape_cast %45 : vector<1x8x256xf32> to vector<8x256xf32>
    %47 = vector.broadcast %41 : vector<1x256xf32> to vector<8x256xf32>
    %48 = arith.mulf %47, %44 : vector<8x256xf32>
    %49 = vector.broadcast %42 : vector<1x256xf32> to vector<8x256xf32>
    %50 = arith.mulf %49, %46 : vector<8x256xf32>
    %51 = arith.subf %48, %50 : vector<8x256xf32>
    %52 = vector.broadcast %41 : vector<1x256xf32> to vector<8x256xf32>
    %53 = arith.mulf %52, %46 : vector<8x256xf32>
    %54 = vector.broadcast %42 : vector<1x256xf32> to vector<8x256xf32>
    %55 = arith.mulf %54, %44 : vector<8x256xf32>
    %56 = arith.addf %53, %55 : vector<8x256xf32>
    %57 = arith.addf %39, %51 : vector<8x256xf32>
    %58 = arith.addf %40, %56 : vector<8x256xf32>
    %59 = vector.extract_strided_slice %4 {offsets = [3, 0], sizes = [1, 256], strides = [1, 1]} : vector<8x256xf32> to vector<1x256xf32>
    %60 = vector.extract_strided_slice %6 {offsets = [3, 0], sizes = [1, 256], strides = [1, 1]} : vector<8x256xf32> to vector<1x256xf32>
    %c3 = arith.constant 3 : index
    %c0_22 = arith.constant 0 : index
    %c0_23 = arith.constant 0 : index
    %61 = vector.load %arg6[%c3, %c0_22, %c0_23] : memref<8x8x256xf32, #tpu.memory_space<vmem>>, vector<1x8x256xf32>
    %62 = vector.shape_cast %61 : vector<1x8x256xf32> to vector<8x256xf32>
    %c3_24 = arith.constant 3 : index
    %c0_25 = arith.constant 0 : index
    %c0_26 = arith.constant 0 : index
    %63 = vector.load %arg7[%c3_24, %c0_25, %c0_26] : memref<8x8x256xf32, #tpu.memory_space<vmem>>, vector<1x8x256xf32>
    %64 = vector.shape_cast %63 : vector<1x8x256xf32> to vector<8x256xf32>
    %65 = vector.broadcast %59 : vector<1x256xf32> to vector<8x256xf32>
    %66 = arith.mulf %65, %62 : vector<8x256xf32>
    %67 = vector.broadcast %60 : vector<1x256xf32> to vector<8x256xf32>
    %68 = arith.mulf %67, %64 : vector<8x256xf32>
    %69 = arith.subf %66, %68 : vector<8x256xf32>
    %70 = vector.broadcast %59 : vector<1x256xf32> to vector<8x256xf32>
    %71 = arith.mulf %70, %64 : vector<8x256xf32>
    %72 = vector.broadcast %60 : vector<1x256xf32> to vector<8x256xf32>
    %73 = arith.mulf %72, %62 : vector<8x256xf32>
    %74 = arith.addf %71, %73 : vector<8x256xf32>
    %75 = arith.addf %57, %69 : vector<8x256xf32>
    %76 = arith.addf %58, %74 : vector<8x256xf32>
    %77 = vector.extract_strided_slice %4 {offsets = [4, 0], sizes = [1, 256], strides = [1, 1]} : vector<8x256xf32> to vector<1x256xf32>
    %78 = vector.extract_strided_slice %6 {offsets = [4, 0], sizes = [1, 256], strides = [1, 1]} : vector<8x256xf32> to vector<1x256xf32>
    %c4 = arith.constant 4 : index
    %c0_27 = arith.constant 0 : index
    %c0_28 = arith.constant 0 : index
    %79 = vector.load %arg6[%c4, %c0_27, %c0_28] : memref<8x8x256xf32, #tpu.memory_space<vmem>>, vector<1x8x256xf32>
    %80 = vector.shape_cast %79 : vector<1x8x256xf32> to vector<8x256xf32>
    %c4_29 = arith.constant 4 : index
    %c0_30 = arith.constant 0 : index
    %c0_31 = arith.constant 0 : index
    %81 = vector.load %arg7[%c4_29, %c0_30, %c0_31] : memref<8x8x256xf32, #tpu.memory_space<vmem>>, vector<1x8x256xf32>
    %82 = vector.shape_cast %81 : vector<1x8x256xf32> to vector<8x256xf32>
    %83 = vector.broadcast %77 : vector<1x256xf32> to vector<8x256xf32>
    %84 = arith.mulf %83, %80 : vector<8x256xf32>
    %85 = vector.broadcast %78 : vector<1x256xf32> to vector<8x256xf32>
    %86 = arith.mulf %85, %82 : vector<8x256xf32>
    %87 = arith.subf %84, %86 : vector<8x256xf32>
    %88 = vector.broadcast %77 : vector<1x256xf32> to vector<8x256xf32>
    %89 = arith.mulf %88, %82 : vector<8x256xf32>
    %90 = vector.broadcast %78 : vector<1x256xf32> to vector<8x256xf32>
    %91 = arith.mulf %90, %80 : vector<8x256xf32>
    %92 = arith.addf %89, %91 : vector<8x256xf32>
    %93 = arith.addf %75, %87 : vector<8x256xf32>
    %94 = arith.addf %76, %92 : vector<8x256xf32>
    %95 = vector.extract_strided_slice %4 {offsets = [5, 0], sizes = [1, 256], strides = [1, 1]} : vector<8x256xf32> to vector<1x256xf32>
    %96 = vector.extract_strided_slice %6 {offsets = [5, 0], sizes = [1, 256], strides = [1, 1]} : vector<8x256xf32> to vector<1x256xf32>
    %c5 = arith.constant 5 : index
    %c0_32 = arith.constant 0 : index
    %c0_33 = arith.constant 0 : index
    %97 = vector.load %arg6[%c5, %c0_32, %c0_33] : memref<8x8x256xf32, #tpu.memory_space<vmem>>, vector<1x8x256xf32>
    %98 = vector.shape_cast %97 : vector<1x8x256xf32> to vector<8x256xf32>
    %c5_34 = arith.constant 5 : index
    %c0_35 = arith.constant 0 : index
    %c0_36 = arith.constant 0 : index
    %99 = vector.load %arg7[%c5_34, %c0_35, %c0_36] : memref<8x8x256xf32, #tpu.memory_space<vmem>>, vector<1x8x256xf32>
    %100 = vector.shape_cast %99 : vector<1x8x256xf32> to vector<8x256xf32>
    %101 = vector.broadcast %95 : vector<1x256xf32> to vector<8x256xf32>
    %102 = arith.mulf %101, %98 : vector<8x256xf32>
    %103 = vector.broadcast %96 : vector<1x256xf32> to vector<8x256xf32>
    %104 = arith.mulf %103, %100 : vector<8x256xf32>
    %105 = arith.subf %102, %104 : vector<8x256xf32>
    %106 = vector.broadcast %95 : vector<1x256xf32> to vector<8x256xf32>
    %107 = arith.mulf %106, %100 : vector<8x256xf32>
    %108 = vector.broadcast %96 : vector<1x256xf32> to vector<8x256xf32>
    %109 = arith.mulf %108, %98 : vector<8x256xf32>
    %110 = arith.addf %107, %109 : vector<8x256xf32>
    %111 = arith.addf %93, %105 : vector<8x256xf32>
    %112 = arith.addf %94, %110 : vector<8x256xf32>
    %113 = vector.extract_strided_slice %4 {offsets = [6, 0], sizes = [1, 256], strides = [1, 1]} : vector<8x256xf32> to vector<1x256xf32>
    %114 = vector.extract_strided_slice %6 {offsets = [6, 0], sizes = [1, 256], strides = [1, 1]} : vector<8x256xf32> to vector<1x256xf32>
    %c6 = arith.constant 6 : index
    %c0_37 = arith.constant 0 : index
    %c0_38 = arith.constant 0 : index
    %115 = vector.load %arg6[%c6, %c0_37, %c0_38] : memref<8x8x256xf32, #tpu.memory_space<vmem>>, vector<1x8x256xf32>
    %116 = vector.shape_cast %115 : vector<1x8x256xf32> to vector<8x256xf32>
    %c6_39 = arith.constant 6 : index
    %c0_40 = arith.constant 0 : index
    %c0_41 = arith.constant 0 : index
    %117 = vector.load %arg7[%c6_39, %c0_40, %c0_41] : memref<8x8x256xf32, #tpu.memory_space<vmem>>, vector<1x8x256xf32>
    %118 = vector.shape_cast %117 : vector<1x8x256xf32> to vector<8x256xf32>
    %119 = vector.broadcast %113 : vector<1x256xf32> to vector<8x256xf32>
    %120 = arith.mulf %119, %116 : vector<8x256xf32>
    %121 = vector.broadcast %114 : vector<1x256xf32> to vector<8x256xf32>
    %122 = arith.mulf %121, %118 : vector<8x256xf32>
    %123 = arith.subf %120, %122 : vector<8x256xf32>
    %124 = vector.broadcast %113 : vector<1x256xf32> to vector<8x256xf32>
    %125 = arith.mulf %124, %118 : vector<8x256xf32>
    %126 = vector.broadcast %114 : vector<1x256xf32> to vector<8x256xf32>
    %127 = arith.mulf %126, %116 : vector<8x256xf32>
    %128 = arith.addf %125, %127 : vector<8x256xf32>
    %129 = arith.addf %111, %123 : vector<8x256xf32>
    %130 = arith.addf %112, %128 : vector<8x256xf32>
    %131 = vector.extract_strided_slice %4 {offsets = [7, 0], sizes = [1, 256], strides = [1, 1]} : vector<8x256xf32> to vector<1x256xf32>
    %132 = vector.extract_strided_slice %6 {offsets = [7, 0], sizes = [1, 256], strides = [1, 1]} : vector<8x256xf32> to vector<1x256xf32>
    %c7 = arith.constant 7 : index
    %c0_42 = arith.constant 0 : index
    %c0_43 = arith.constant 0 : index
    %133 = vector.load %arg6[%c7, %c0_42, %c0_43] : memref<8x8x256xf32, #tpu.memory_space<vmem>>, vector<1x8x256xf32>
    %134 = vector.shape_cast %133 : vector<1x8x256xf32> to vector<8x256xf32>
    %c7_44 = arith.constant 7 : index
    %c0_45 = arith.constant 0 : index
    %c0_46 = arith.constant 0 : index
    %135 = vector.load %arg7[%c7_44, %c0_45, %c0_46] : memref<8x8x256xf32, #tpu.memory_space<vmem>>, vector<1x8x256xf32>
    %136 = vector.shape_cast %135 : vector<1x8x256xf32> to vector<8x256xf32>
    %137 = vector.broadcast %131 : vector<1x256xf32> to vector<8x256xf32>
    %138 = arith.mulf %137, %134 : vector<8x256xf32>
    %139 = vector.broadcast %132 : vector<1x256xf32> to vector<8x256xf32>
    %140 = arith.mulf %139, %136 : vector<8x256xf32>
    %141 = arith.subf %138, %140 : vector<8x256xf32>
    %142 = vector.broadcast %131 : vector<1x256xf32> to vector<8x256xf32>
    %143 = arith.mulf %142, %136 : vector<8x256xf32>
    %144 = vector.broadcast %132 : vector<1x256xf32> to vector<8x256xf32>
    %145 = arith.mulf %144, %134 : vector<8x256xf32>
    %146 = arith.addf %143, %145 : vector<8x256xf32>
    %147 = arith.addf %129, %141 : vector<8x256xf32>
    %148 = arith.addf %130, %146 : vector<8x256xf32>
    %c0_47 = arith.constant 0 : index
    %c0_48 = arith.constant 0 : index
    %c0_49 = arith.constant 0 : index
    %149 = vector.load %arg8[%c0_47, %c0_48, %c0_49] : memref<1x8x256xf32, #tpu.memory_space<vmem>>, vector<1x8x256xf32>
    %150 = vector.shape_cast %149 : vector<1x8x256xf32> to vector<8x256xf32>
    %151 = arith.addf %150, %147 : vector<8x256xf32>
    %c0_50 = arith.constant 0 : index
    %c0_51 = arith.constant 0 : index
    %c0_52 = arith.constant 0 : index
    %152 = vector.load %arg8[%c0_50, %c0_51, %c0_52] : memref<1x8x256xf32, #tpu.memory_space<vmem>>, vector<1x8x256xf32>
    %153 = vector.shape_cast %152 : vector<1x8x256xf32> to vector<8x256xf32>
    %154 = vector.shape_cast %151 : vector<8x256xf32> to vector<1x8x256xf32>
    tpu.vector_store %arg8[%c0_50, %c0_51, %c0_52], %154 {strides = array<i32>} : memref<1x8x256xf32, #tpu.memory_space<vmem>>, vector<1x8x256xf32>,
    %c0_53 = arith.constant 0 : index
    %c0_54 = arith.constant 0 : index
    %c0_55 = arith.constant 0 : index
    %155 = vector.load %arg9[%c0_53, %c0_54, %c0_55] : memref<1x8x256xf32, #tpu.memory_space<vmem>>, vector<1x8x256xf32>
    %156 = vector.shape_cast %155 : vector<1x8x256xf32> to vector<8x256xf32>
    %157 = arith.addf %156, %148 : vector<8x256xf32>
    %c0_56 = arith.constant 0 : index
    %c0_57 = arith.constant 0 : index
    %c0_58 = arith.constant 0 : index
    %158 = vector.load %arg9[%c0_56, %c0_57, %c0_58] : memref<1x8x256xf32, #tpu.memory_space<vmem>>, vector<1x8x256xf32>
    %159 = vector.shape_cast %158 : vector<1x8x256xf32> to vector<8x256xf32>
    %160 = vector.shape_cast %157 : vector<8x256xf32> to vector<1x8x256xf32>
    tpu.vector_store %arg9[%c0_56, %c0_57, %c0_58], %160 {strides = array<i32>} : memref<1x8x256xf32, #tpu.memory_space<vmem>>, vector<1x8x256xf32>,
    return
  }
  func.func @transform_0(%arg0: i32, %arg1: i32, %arg2: i32, %arg3: i32) -> (i32, i32, i32) {
    %c0_i32 = arith.constant 0 : i32
    return %arg0, %arg3, %arg2 : i32, i32, i32
  }
  func.func @transform_1(%arg0: i32, %arg1: i32, %arg2: i32, %arg3: i32) -> (i32, i32, i32) {
    %c0_i32 = arith.constant 0 : i32
    return %arg0, %arg3, %arg2 : i32, i32, i32
  }
  func.func @transform_2(%arg0: i32, %arg1: i32, %arg2: i32, %arg3: i32) -> (i32, i32, i32) {
    %c0_i32 = arith.constant 0 : i32
    return %arg3, %arg1, %arg2 : i32, i32, i32
  }
  func.func @transform_3(%arg0: i32, %arg1: i32, %arg2: i32, %arg3: i32) -> (i32, i32, i32) {
    %c0_i32 = arith.constant 0 : i32
    return %arg3, %arg1, %arg2 : i32, i32, i32
  }
  func.func @transform_4(%arg0: i32, %arg1: i32, %arg2: i32, %arg3: i32) -> (i32, i32, i32) {
    %c0_i32 = arith.constant 0 : i32
    return %arg0, %arg1, %arg2 : i32, i32, i32
  }
  func.func @transform_5(%arg0: i32, %arg1: i32, %arg2: i32, %arg3: i32) -> (i32, i32, i32) {
    %c0_i32 = arith.constant 0 : i32
    return %arg0, %arg1, %arg2 : i32, i32, i32
  }
}

module attributes {stable_mosaic.version = 11 : i64} {
  func.func @_bn_skip_relu_kernel(%arg0: i32, %arg1: memref<2x8x256xf32, #tpu.memory_space<vmem>>, %arg2: memref<2x4x256xf32, #tpu.memory_space<vmem>>, %arg3: memref<4x8x1xf32, #tpu.memory_space<vmem>>, %arg4: memref<8x1xf32, #tpu.memory_space<vmem>>, %arg5: memref<8x1xf32, #tpu.memory_space<vmem>>, %arg6: memref<8x1xf32, #tpu.memory_space<vmem>>, %arg7: memref<2x8x256xf32, #tpu.memory_space<vmem>>) attributes {dimension_semantics = [#tpu.dimension_semantics<parallel>], iteration_bounds = array<i64: 1>, scalar_prefetch = 0 : i64, scratch_operands = 0 : i64, tpu.core_type = #tpu.core_type<tc>, window_params = [{transform_indices = @transform_0, window_bounds = array<i64: 2, 8, 256>}, {pipeline_mode = #tpu.pipeline_mode<synchronous>, transform_indices = @transform_1, window_bounds = array<i64: 2, 4, 256>}, {transform_indices = @transform_2, window_bounds = array<i64: 4, 8, 1>}, {transform_indices = @transform_3, window_bounds = array<i64: 8, 1>}, {transform_indices = @transform_4, window_bounds = array<i64: 8, 1>}, {transform_indices = @transform_5, window_bounds = array<i64: 8, 1>}, {transform_indices = @transform_6, window_bounds = array<i64: 2, 8, 256>}]} {
    %c0 = arith.constant 0 : index
    %c0_0 = arith.constant 0 : index
    %c0_1 = arith.constant 0 : index
    %0 = vector.load %arg1[%c0, %c0_0, %c0_1] : memref<2x8x256xf32, #tpu.memory_space<vmem>>, vector<2x8x256xf32>
    %cst = arith.constant dense<0.000000e+00> : vector<2x8xf32>
    %1 = vector.multi_reduction <add>, %0, %cst [2] : vector<2x8x256xf32> to vector<2x8xf32>
    %2 = vector.shape_cast %1 : vector<2x8xf32> to vector<2x8x1xf32>
    %cst_2 = arith.constant dense<0.000000e+00> : vector<8x1xf32>
    %3 = vector.multi_reduction <add>, %2, %cst_2 [0] : vector<2x8x1xf32> to vector<8x1xf32>
    %4 = vector.shape_cast %3 : vector<8x1xf32> to vector<1x8x1xf32>
    %cst_3 = arith.constant 5.120000e+02 : f32
    %5 = vector.broadcast %cst_3 : f32 to vector<1x8x1xf32>
    %6 = arith.divf %4, %5 : vector<1x8x1xf32>
    %7 = vector.broadcast %6 : vector<1x8x1xf32> to vector<2x8x256xf32>
    %8 = arith.subf %0, %7 : vector<2x8x256xf32>
    %9 = arith.mulf %8, %8 : vector<2x8x256xf32>
    %cst_4 = arith.constant dense<0.000000e+00> : vector<2x8xf32>
    %10 = vector.multi_reduction <add>, %9, %cst_4 [2] : vector<2x8x256xf32> to vector<2x8xf32>
    %11 = vector.shape_cast %10 : vector<2x8xf32> to vector<2x8x1xf32>
    %cst_5 = arith.constant dense<0.000000e+00> : vector<8x1xf32>
    %12 = vector.multi_reduction <add>, %11, %cst_5 [0] : vector<2x8x1xf32> to vector<8x1xf32>
    %13 = vector.shape_cast %12 : vector<8x1xf32> to vector<1x8x1xf32>
    %cst_6 = arith.constant 5.120000e+02 : f32
    %14 = vector.broadcast %cst_6 : f32 to vector<1x8x1xf32>
    %15 = arith.divf %13, %14 : vector<1x8x1xf32>
    %cst_7 = arith.constant 9.99999974E-6 : f32
    %16 = vector.broadcast %cst_7 : f32 to vector<1x8x1xf32>
    %17 = arith.addf %15, %16 : vector<1x8x1xf32>
    %18 = math.rsqrt %17 : vector<1x8x1xf32>
    %19 = vector.broadcast %18 : vector<1x8x1xf32> to vector<2x8x256xf32>
    %20 = arith.mulf %8, %19 : vector<2x8x256xf32>
    %c0_8 = arith.constant 0 : index
    %c0_9 = arith.constant 0 : index
    %21 = vector.load %arg5[%c0_8, %c0_9] : memref<8x1xf32, #tpu.memory_space<vmem>>, vector<8x1xf32>
    %22 = vector.shape_cast %21 : vector<8x1xf32> to vector<1x8x1xf32>
    %23 = vector.broadcast %22 : vector<1x8x1xf32> to vector<2x8x256xf32>
    %24 = arith.mulf %20, %23 : vector<2x8x256xf32>
    %c0_10 = arith.constant 0 : index
    %c0_11 = arith.constant 0 : index
    %25 = vector.load %arg6[%c0_10, %c0_11] : memref<8x1xf32, #tpu.memory_space<vmem>>, vector<8x1xf32>
    %26 = vector.shape_cast %25 : vector<8x1xf32> to vector<1x8x1xf32>
    %27 = vector.broadcast %26 : vector<1x8x1xf32> to vector<2x8x256xf32>
    %28 = arith.addf %24, %27 : vector<2x8x256xf32>
    %c0_12 = arith.constant 0 : index
    %c0_13 = arith.constant 0 : index
    %c0_14 = arith.constant 0 : index
    %29 = vector.load %arg2[%c0_12, %c0_13, %c0_14] : memref<2x4x256xf32, #tpu.memory_space<vmem>>, vector<2x4x256xf32>
    %c0_15 = arith.constant 0 : index
    %c0_16 = arith.constant 0 : index
    %c0_17 = arith.constant 0 : index
    %30 = vector.load %arg3[%c0_15, %c0_16, %c0_17] : memref<4x8x1xf32, #tpu.memory_space<vmem>>, vector<1x8x1xf32>
    %31 = vector.shape_cast %30 : vector<1x8x1xf32> to vector<8x1xf32>
    %32 = vector.shape_cast %31 : vector<8x1xf32> to vector<1x8x1xf32>
    %33 = vector.extract_strided_slice %29 {offsets = [0, 0, 0], sizes = [2, 1, 256], strides = [1, 1, 1]} : vector<2x4x256xf32> to vector<2x1x256xf32>
    %34 = vector.broadcast %32 : vector<1x8x1xf32> to vector<2x8x256xf32>
    %35 = vector.broadcast %33 : vector<2x1x256xf32> to vector<2x8x256xf32>
    %36 = arith.mulf %34, %35 : vector<2x8x256xf32>
    %c1 = arith.constant 1 : index
    %c0_18 = arith.constant 0 : index
    %c0_19 = arith.constant 0 : index
    %37 = vector.load %arg3[%c1, %c0_18, %c0_19] : memref<4x8x1xf32, #tpu.memory_space<vmem>>, vector<1x8x1xf32>
    %38 = vector.shape_cast %37 : vector<1x8x1xf32> to vector<8x1xf32>
    %39 = vector.shape_cast %38 : vector<8x1xf32> to vector<1x8x1xf32>
    %40 = vector.extract_strided_slice %29 {offsets = [0, 1, 0], sizes = [2, 1, 256], strides = [1, 1, 1]} : vector<2x4x256xf32> to vector<2x1x256xf32>
    %41 = vector.broadcast %39 : vector<1x8x1xf32> to vector<2x8x256xf32>
    %42 = vector.broadcast %40 : vector<2x1x256xf32> to vector<2x8x256xf32>
    %43 = arith.mulf %41, %42 : vector<2x8x256xf32>
    %44 = arith.addf %36, %43 : vector<2x8x256xf32>
    %c2 = arith.constant 2 : index
    %c0_20 = arith.constant 0 : index
    %c0_21 = arith.constant 0 : index
    %45 = vector.load %arg3[%c2, %c0_20, %c0_21] : memref<4x8x1xf32, #tpu.memory_space<vmem>>, vector<1x8x1xf32>
    %46 = vector.shape_cast %45 : vector<1x8x1xf32> to vector<8x1xf32>
    %47 = vector.shape_cast %46 : vector<8x1xf32> to vector<1x8x1xf32>
    %48 = vector.extract_strided_slice %29 {offsets = [0, 2, 0], sizes = [2, 1, 256], strides = [1, 1, 1]} : vector<2x4x256xf32> to vector<2x1x256xf32>
    %49 = vector.broadcast %47 : vector<1x8x1xf32> to vector<2x8x256xf32>
    %50 = vector.broadcast %48 : vector<2x1x256xf32> to vector<2x8x256xf32>
    %51 = arith.mulf %49, %50 : vector<2x8x256xf32>
    %52 = arith.addf %44, %51 : vector<2x8x256xf32>
    %c3 = arith.constant 3 : index
    %c0_22 = arith.constant 0 : index
    %c0_23 = arith.constant 0 : index
    %53 = vector.load %arg3[%c3, %c0_22, %c0_23] : memref<4x8x1xf32, #tpu.memory_space<vmem>>, vector<1x8x1xf32>
    %54 = vector.shape_cast %53 : vector<1x8x1xf32> to vector<8x1xf32>
    %55 = vector.shape_cast %54 : vector<8x1xf32> to vector<1x8x1xf32>
    %56 = vector.extract_strided_slice %29 {offsets = [0, 3, 0], sizes = [2, 1, 256], strides = [1, 1, 1]} : vector<2x4x256xf32> to vector<2x1x256xf32>
    %57 = vector.broadcast %55 : vector<1x8x1xf32> to vector<2x8x256xf32>
    %58 = vector.broadcast %56 : vector<2x1x256xf32> to vector<2x8x256xf32>
    %59 = arith.mulf %57, %58 : vector<2x8x256xf32>
    %60 = arith.addf %52, %59 : vector<2x8x256xf32>
    %c0_24 = arith.constant 0 : index
    %c0_25 = arith.constant 0 : index
    %61 = vector.load %arg4[%c0_24, %c0_25] : memref<8x1xf32, #tpu.memory_space<vmem>>, vector<8x1xf32>
    %62 = vector.shape_cast %61 : vector<8x1xf32> to vector<1x8x1xf32>
    %63 = vector.broadcast %62 : vector<1x8x1xf32> to vector<2x8x256xf32>
    %64 = arith.addf %60, %63 : vector<2x8x256xf32>
    %65 = arith.addf %28, %64 : vector<2x8x256xf32>
    %cst_26 = arith.constant 0.000000e+00 : f32
    %66 = vector.broadcast %cst_26 : f32 to vector<2x8x256xf32>
    %67 = arith.maximumf %65, %66 : vector<2x8x256xf32>
    %c0_27 = arith.constant 0 : index
    %c0_28 = arith.constant 0 : index
    %c0_29 = arith.constant 0 : index
    %68 = vector.load %arg7[%c0_27, %c0_28, %c0_29] : memref<2x8x256xf32, #tpu.memory_space<vmem>>, vector<2x8x256xf32>
    tpu.vector_store %arg7[%c0_27, %c0_28, %c0_29], %67 {strides = array<i32>} : memref<2x8x256xf32, #tpu.memory_space<vmem>>, vector<2x8x256xf32>,
    return
  }
  func.func @transform_0(%arg0: i32) -> (i32, i32, i32) {
    %c0_i32 = arith.constant 0 : i32
    %c0_i32_0 = arith.constant 0 : i32
    %c0_i32_1 = arith.constant 0 : i32
    return %c0_i32, %arg0, %c0_i32_0 : i32, i32, i32
  }
  func.func @transform_1(%arg0: i32) -> (i32, i32, i32) {
    %c0_i32 = arith.constant 0 : i32
    %c0_i32_0 = arith.constant 0 : i32
    %c0_i32_1 = arith.constant 0 : i32
    %c0_i32_2 = arith.constant 0 : i32
    return %c0_i32, %c0_i32_0, %c0_i32_1 : i32, i32, i32
  }
  func.func @transform_2(%arg0: i32) -> (i32, i32, i32) {
    %c0_i32 = arith.constant 0 : i32
    %c0_i32_0 = arith.constant 0 : i32
    %c0_i32_1 = arith.constant 0 : i32
    return %c0_i32, %arg0, %c0_i32_0 : i32, i32, i32
  }
  func.func @transform_3(%arg0: i32) -> (i32, i32) {
    %c0_i32 = arith.constant 0 : i32
    %c0_i32_0 = arith.constant 0 : i32
    return %arg0, %c0_i32 : i32, i32
  }
  func.func @transform_4(%arg0: i32) -> (i32, i32) {
    %c0_i32 = arith.constant 0 : i32
    %c0_i32_0 = arith.constant 0 : i32
    return %arg0, %c0_i32 : i32, i32
  }
  func.func @transform_5(%arg0: i32) -> (i32, i32) {
    %c0_i32 = arith.constant 0 : i32
    %c0_i32_0 = arith.constant 0 : i32
    return %arg0, %c0_i32 : i32, i32
  }
  func.func @transform_6(%arg0: i32) -> (i32, i32, i32) {
    %c0_i32 = arith.constant 0 : i32
    %c0_i32_0 = arith.constant 0 : i32
    %c0_i32_1 = arith.constant 0 : i32
    return %c0_i32, %arg0, %c0_i32_0 : i32, i32, i32
  }
}

</mosaic_0001>

<llo_original>
// kernel: fft_res_block.4
$region0: #{fft_res_block.4}
  #allocation0 [shape = 'u32[]', space=smem, size = 0x4, offset = 0x4, fixed_abs, tag = 'smem constant byte address 0x4 - core index']
  #allocation1 [shape = 'u32[144,128]{1,0:T(1,128)}', space=vmem, size = 0x12000, scoped, tag = 'internal scratch']
  %s0 = inlined_call_operand.vmem [shape: f32[2,4,256], index: 0, kind: input, shape index: {}]
  %s1 = inlined_call_operand.vmem [shape: f32[2,4,256], index: 1, kind: input, shape index: {}]
  %s2 = inlined_call_operand.vmem [shape: f32[4,8,256], index: 2, kind: input, shape index: {}]
  %s3 = inlined_call_operand.vmem [shape: f32[4,8,256], index: 3, kind: input, shape index: {}]
  %s4 = inlined_call_operand.vmem [shape: f32[2,8,256], index: 4, kind: output, shape index: {0}]
  %s5 = inlined_call_operand.vmem [shape: f32[2,8,256], index: 5, kind: output, shape index: {1}]
  %6 = xla_tuple %s4, %s5
  %s7 = sld [smem:[#allocation0]]
  $region61: #{fft_res_block.4} parent=0
    _
  %s9 = ssub.s32 1, %s7
  %s10 = scalar_select 0, %s9, %s7
  loop: start=0, step=1, limit=4
  $region2: #{fft_res_block.4} parent=0 // loop_pre_header
    _
  $region3: #{fft_res_block.4} parent=0 // loop_header
    %s12 = sphi 0, %s16
    %p13 = scmp.ge.s32.totalorder %s12, 4
    %s19 = sphi 0, %s45
    %s20 = sphi 0, %s41
    %s21 = sphi 0, %s37
    %s22 = sphi 0, %s33
    %s23 = sphi 0, %s19
    %s24 = sphi 0, %s20
    %s25 = sphi 0, %s21
    %s26 = sphi 0, %s22
    %s27 = sphi 0, %s23
    %s28 = sphi 0, %s24
    %s29 = sphi 0, %s25
    %s30 = sphi 0, %s26
    %s52 = sphi 0, %s54
    %s55 = sphi 0, %s52
    %s56 = sphi 0, %s55
    %s72 = sphi 0, %s56
    %s82 = sphi 0, %s84
    %s85 = sphi 0, %s82
    %s86 = sphi 0, %s85
    %s102 = sphi 0, %s86
    %s112 = sphi 0, %s114
    %s115 = sphi 0, %s112
    %s116 = sphi 0, %s115
    %s132 = sphi 0, %s116
    %s142 = sphi 0, %s144
    %s145 = sphi 0, %s142
    %s146 = sphi 0, %s145
    %s162 = sphi 0, %s146
    %s172 = sphi 0, %s174
    %s175 = sphi 0, %s172
    %s176 = sphi 0, %s175
    %s192 = sphi 0, %s176
    %s202 = sphi 0, %s204
    %s205 = sphi 0, %s202
    %s206 = sphi 0, %s205
    %s222 = sphi 0, %s206
  $region4: #{fft_res_block.4} parent=0 // loop_header_branch
    %15 = sbr.rel (%p13) target = $region8
  $region5: #{fft_res_block.4} parent=0 // loop_body
    %s17 = ssub.s32 %s12, 1
    %s18 = ssub.s32 %s12, 2
    %s31 = sadd.s32 1, %s22
    %p32 = scmp.ge.s32.totalorder %s31, 1
    %s33 = scalar_select %p32, 0, %s31
    %s34 = sadd.s32 1, %s21
    %s35 = scalar_select %p32, %s34, %s21
    %p36 = scmp.ge.s32.totalorder %s35, 1
    %s37 = scalar_select %p36, 0, %s35
    %s38 = sadd.s32 1, %s20
    %s39 = scalar_select %p36, %s38, %s20
    %p40 = scmp.ge.s32.totalorder %s39, 1
    %s41 = scalar_select %p40, 0, %s39
    %s42 = sadd.s32 1, %s19
    %s43 = scalar_select %p40, %s42, %s19
    %p44 = scmp.ge.s32.totalorder %s43, 2
    %s45 = scalar_select %p44, 0, %s43
    %s46 = ssub.s32 %s19, %s45
    %s47 = ssub.s32 %s22, %s33
    %s48 = sor.u32 %s46, %s47
    %s49 = ssub.s32 %s21, %s37
    %s50 = sor.u32 %s48, %s49
    %p51 = scmp.eq.s32.totalorder %s50, 0
    %s53 = sadd.s32 %s52, 1
    %s54 = scalar_select %p51, %s52, %s53
    %p57 = pneg %p51
    %p58 = scmp.eq.s32.totalorder %s12, 1
    %p59 = por %p57, %p58
    %p60 = scmp.ne.s32.totalorder %s52, %s55
    %p61 = scmp.eq.s32.totalorder %s12, 0
    %p62 = por %p60, %p61
    %p63 = scmp.ne.s32.totalorder %s52, %s55
    %p64 = scmp.eq.s32.totalorder %s17, 1
    %p65 = por %p63, %p64
    %p66 = scmp.ne.s32.totalorder %s55, %s56
    %p67 = scmp.eq.s32.totalorder %s17, 0
    %p68 = por %p66, %p67
    %p69 = scmp.ne.s32.totalorder %s55, %s56
    %p70 = scmp.eq.s32.totalorder %s18, 1
    %p71 = por %p69, %p70
    %p73 = scmp.ne.s32.totalorder %s56, %s72
    %p74 = scmp.eq.s32.totalorder %s18, 0
    %p75 = por %p73, %p74
    %s76 = ssub.s32 %s19, %s45
    %s77 = ssub.s32 %s22, %s33
    %s78 = sor.u32 %s76, %s77
    %s79 = ssub.s32 %s21, %s37
    %s80 = sor.u32 %s78, %s79
    %p81 = scmp.eq.s32.totalorder %s80, 0
    %s83 = sadd.s32 %s82, 1
    %s84 = scalar_select %p81, %s82, %s83
    %p87 = pneg %p81
    %p88 = scmp.eq.s32.totalorder %s12, 1
    %p89 = por %p87, %p88
    %p90 = scmp.ne.s32.totalorder %s82, %s85
    %p91 = scmp.eq.s32.totalorder %s12, 0
    %p92 = por %p90, %p91
    %p93 = scmp.ne.s32.totalorder %s82, %s85
    %p94 = scmp.eq.s32.totalorder %s17, 1
    %p95 = por %p93, %p94
    %p96 = scmp.ne.s32.totalorder %s85, %s86
    %p97 = scmp.eq.s32.totalorder %s17, 0
    %p98 = por %p96, %p97
    %p99 = scmp.ne.s32.totalorder %s85, %s86
    %p100 = scmp.eq.s32.totalorder %s18, 1
    %p101 = por %p99, %p100
    %p103 = scmp.ne.s32.totalorder %s86, %s102
    %p104 = scmp.eq.s32.totalorder %s18, 0
    %p105 = por %p103, %p104
    %s106 = ssub.s32 %s22, %s33
    %s107 = ssub.s32 %s20, %s41
    %s108 = sor.u32 %s106, %s107
    %s109 = ssub.s32 %s21, %s37
    %s110 = sor.u32 %s108, %s109
    %p111 = scmp.eq.s32.totalorder %s110, 0
    %s113 = sadd.s32 %s112, 1
    %s114 = scalar_select %p111, %s112, %s113
    %p117 = pneg %p111
    %p118 = scmp.eq.s32.totalorder %s12, 1
    %p119 = por %p117, %p118
    %p120 = scmp.ne.s32.totalorder %s112, %s115
    %p121 = scmp.eq.s32.totalorder %s12, 0
    %p122 = por %p120, %p121
    %p123 = scmp.ne.s32.totalorder %s112, %s115
    %p124 = scmp.eq.s32.totalorder %s17, 1
    %p125 = por %p123, %p124
    %p126 = scmp.ne.s32.totalorder %s115, %s116
    %p127 = scmp.eq.s32.totalorder %s17, 0
    %p128 = por %p126, %p127
    %p129 = scmp.ne.s32.totalorder %s115, %s116
    %p130 = scmp.eq.s32.totalorder %s18, 1
    %p131 = por %p129, %p130
    %p133 = scmp.ne.s32.totalorder %s116, %s132
    %p134 = scmp.eq.s32.totalorder %s18, 0
    %p135 = por %p133, %p134
    %s136 = ssub.s32 %s22, %s33
    %s137 = ssub.s32 %s20, %s41
    %s138 = sor.u32 %s136, %s137
    %s139 = ssub.s32 %s21, %s37
    %s140 = sor.u32 %s138, %s139
    %p141 = scmp.eq.s32.totalorder %s140, 0
    %s143 = sadd.s32 %s142, 1
    %s144 = scalar_select %p141, %s142, %s143
    %p147 = pneg %p141
    %p148 = scmp.eq.s32.totalorder %s12, 1
    %p149 = por %p147, %p148
    %p150 = scmp.ne.s32.totalorder %s142, %s145
    %p151 = scmp.eq.s32.totalorder %s12, 0
    %p152 = por %p150, %p151
    %p153 = scmp.ne.s32.totalorder %s142, %s145
    %p154 = scmp.eq.s32.totalorder %s17, 1
    %p155 = por %p153, %p154
    %p156 = scmp.ne.s32.totalorder %s145, %s146
    %p157 = scmp.eq.s32.totalorder %s17, 0
    %p158 = por %p156, %p157
    %p159 = scmp.ne.s32.totalorder %s145, %s146
    %p160 = scmp.eq.s32.totalorder %s18, 1
    %p161 = por %p159, %p160
    %p163 = scmp.ne.s32.totalorder %s146, %s162
    %p164 = scmp.eq.s32.totalorder %s18, 0
    %p165 = por %p163, %p164
    %s166 = ssub.s32 %s19, %s45
    %s167 = ssub.s32 %s20, %s41
    %s168 = sor.u32 %s166, %s167
    %s169 = ssub.s32 %s21, %s37
    %s170 = sor.u32 %s168, %s169
    %p171 = scmp.eq.s32.totalorder %s170, 0
    %s173 = sadd.s32 %s172, 1
    %s174 = scalar_select %p171, %s172, %s173
    %p177 = pneg %p171
    %p178 = scmp.eq.s32.totalorder %s12, 1
    %p179 = por %p177, %p178
    %p180 = scmp.ne.s32.totalorder %s172, %s175
    %p181 = scmp.eq.s32.totalorder %s12, 0
    %p182 = por %p180, %p181
    %p183 = scmp.ne.s32.totalorder %s172, %s175
    %p184 = scmp.eq.s32.totalorder %s17, 1
    %p185 = por %p183, %p184
    %p186 = scmp.ne.s32.totalorder %s175, %s176
    %p187 = scmp.eq.s32.totalorder %s17, 0
    %p188 = por %p186, %p187
    %p189 = scmp.ne.s32.totalorder %s175, %s176
    %p190 = scmp.eq.s32.totalorder %s18, 1
    %p191 = por %p189, %p190
    %p193 = scmp.ne.s32.totalorder %s176, %s192
    %p194 = scmp.eq.s32.totalorder %s18, 0
    %p195 = por %p193, %p194
    %s196 = ssub.s32 %s19, %s45
    %s197 = ssub.s32 %s20, %s41
    %s198 = sor.u32 %s196, %s197
    %s199 = ssub.s32 %s21, %s37
    %s200 = sor.u32 %s198, %s199
    %p201 = scmp.eq.s32.totalorder %s200, 0
    %s203 = sadd.s32 %s202, 1
    %s204 = scalar_select %p201, %s202, %s203
    %p207 = pneg %p201
    %p208 = scmp.eq.s32.totalorder %s12, 1
    %p209 = por %p207, %p208
    %p210 = scmp.ne.s32.totalorder %s202, %s205
    %p211 = scmp.eq.s32.totalorder %s12, 0
    %p212 = por %p210, %p211
    %p213 = scmp.ne.s32.totalorder %s202, %s205
    %p214 = scmp.eq.s32.totalorder %s17, 1
    %p215 = por %p213, %p214
    %p216 = scmp.ne.s32.totalorder %s205, %s206
    %p217 = scmp.eq.s32.totalorder %s17, 0
    %p218 = por %p216, %p217
    %p219 = scmp.ne.s32.totalorder %s205, %s206
    %p220 = scmp.eq.s32.totalorder %s18, 1
    %p221 = por %p219, %p220
    %p223 = scmp.ne.s32.totalorder %s206, %s222
    %p224 = scmp.eq.s32.totalorder %s18, 0
    %p225 = por %p223, %p224
    %p226 = scmp.le.s32.totalorder 1, %s12
    %p227 = scmp.lt.s32.totalorder %s12, 3
    %p228 = pnand %p226, %p227
    %p229 = pneg %p228
    // Predicated region
    $region9: #{fft_res_block.4} parent=5 // pred_check
      _
    $region10: #{fft_res_block.4} parent=5 // pred_check_branch
      %231 = sbr.rel (%p228) target = $region12
    $region11: #{fft_res_block.4} parent=5 // pred_region
      %s232 = ssub.s32 %s12, 1
      // Predicated region
      $region13: #{fft_res_block.4} parent=11 // pred_check
        %p233 = pneg %p128
      $region14: #{fft_res_block.4} parent=11 // pred_check_branch
        %235 = sbr.rel (%p233) target = $region16
      $region15: #{fft_res_block.4} parent=11 // pred_region
        %s236 = smul.u32 4, %s26
        %s237 = smul.u32 2, %s25
        %p238 = scmp.lt.s32.totalorder %s236, 3
        %s239 = scalar_select %p238, %s236, 3
        %p240 = scmp.lt.s32.totalorder %s24, 0
        %s241 = scalar_select %p240, %s24, 0
        %p242 = scmp.lt.s32.totalorder %s237, 1
        %s243 = scalar_select %p242, %s237, 1
        %s244 = smul.addr %s241, 2
        %s245 = sadd.s32 %s243, %s244
        %s246 = smul.addr %s239, 2
        %s247 = sadd.s32 %s245, %s246
        %s248 = smul.addr %s247, 8
        %s249 = scalar_lea.vmem %s2, %s248
        %s250 = smul.u32 4, %s26
        %s251 = smul.u32 2, %s25
      $region16: #{fft_res_block.4} parent=11 // pred_fallthru
        _
      // Predicated region
      $region17: #{fft_res_block.4} parent=11 // pred_check
        %p252 = pneg %p158
      $region18: #{fft_res_block.4} parent=11 // pred_check_branch
        %254 = sbr.rel (%p252) target = $region20
      $region19: #{fft_res_block.4} parent=11 // pred_region
        %s255 = smul.u32 4, %s26
        %s256 = smul.u32 2, %s25
        %p257 = scmp.lt.s32.totalorder %s255, 3
        %s258 = scalar_select %p257, %s255, 3
        %p259 = scmp.lt.s32.totalorder %s24, 0
        %s260 = scalar_select %p259, %s24, 0
        %p261 = scmp.lt.s32.totalorder %s256, 1
        %s262 = scalar_select %p261, %s256, 1
        %s263 = smul.addr %s260, 2
        %s264 = sadd.s32 %s262, %s263
        %s265 = smul.addr %s258, 2
        %s266 = sadd.s32 %s264, %s265
        %s267 = smul.addr %s266, 8
        %s268 = scalar_lea.vmem %s3, %s267
        %s269 = smul.u32 4, %s26
        %s270 = smul.u32 2, %s25
      $region20: #{fft_res_block.4} parent=11 // pred_fallthru
        _
    $region12: #{fft_res_block.4} parent=5 // pred_fallthru
      _
    %p271 = scmp.lt.s32.totalorder %s12, 2
    // Predicated region
    $region21: #{fft_res_block.4} parent=5 // pred_check
      %p272 = pneg %p271
    $region22: #{fft_res_block.4} parent=5 // pred_check_branch
      %274 = sbr.rel (%p272) target = $region24
    $region23: #{fft_res_block.4} parent=5 // pred_region
      // Predicated region
      $region25: #{fft_res_block.4} parent=23 // pred_check
        %p275 = pneg %p62
      $region26: #{fft_res_block.4} parent=23 // pred_check_branch
        %277 = sbr.rel (%p275) target = $region28
      $region27: #{fft_res_block.4} parent=23 // pred_region
        %s278 = smul.u32 2, %s21
        %p279 = scmp.lt.s32.totalorder %s19, 1
        %s280 = scalar_select %p279, %s19, 1
        %p281 = scmp.lt.s32.totalorder %s22, 0
        %s282 = scalar_select %p281, %s22, 0
        %p283 = scmp.lt.s32.totalorder %s278, 1
        %s284 = scalar_select %p283, %s278, 1
        %s285 = smul.addr %s282, 2
        %s286 = sadd.s32 %s284, %s285
        %s287 = smul.addr %s280, 2
        %s288 = sadd.s32 %s286, %s287
        %s289 = smul.addr %s288, 4
        %s290 = scalar_lea.vmem %s0, %s289
        %s291 = smul.u32 2, %s21
      $region28: #{fft_res_block.4} parent=23 // pred_fallthru
        _
      // Predicated region
      $region29: #{fft_res_block.4} parent=23 // pred_check
        %p292 = pneg %p92
      $region30: #{fft_res_block.4} parent=23 // pred_check_branch
        %294 = sbr.rel (%p292) target = $region32
      $region31: #{fft_res_block.4} parent=23 // pred_region
        %s295 = smul.u32 2, %s21
        %p296 = scmp.lt.s32.totalorder %s19, 1
        %s297 = scalar_select %p296, %s19, 1
        %p298 = scmp.lt.s32.totalorder %s22, 0
        %s299 = scalar_select %p298, %s22, 0
        %p300 = scmp.lt.s32.totalorder %s295, 1
        %s301 = scalar_select %p300, %s295, 1
        %s302 = smul.addr %s299, 2
        %s303 = sadd.s32 %s301, %s302
        %s304 = smul.addr %s297, 2
        %s305 = sadd.s32 %s303, %s304
        %s306 = smul.addr %s305, 4
        %s307 = scalar_lea.vmem %s1, %s306
        %s308 = smul.u32 2, %s21
      $region32: #{fft_res_block.4} parent=23 // pred_fallthru
        _
    $region24: #{fft_res_block.4} parent=5 // pred_fallthru
      _
    %p309 = scmp.le.s32.totalorder 1, %s12
    %p310 = scmp.lt.s32.totalorder %s12, 3
    %p311 = pnand %p309, %p310
    %p312 = pneg %p311
    // Predicated region
    $region33: #{fft_res_block.4} parent=5 // pred_check
      _
    $region34: #{fft_res_block.4} parent=5 // pred_check_branch
      %314 = sbr.rel (%p311) target = $region36
    $region35: #{fft_res_block.4} parent=5 // pred_region
      %s315 = ssub.s32 %s12, 1
      %s316 = smul.u32 2, %s25
      %p317 = scmp.lt.s32.totalorder %s23, 1
      %s318 = scalar_select %p317, %s23, 1
      %p319 = scmp.lt.s32.totalorder %s26, 0
      %s320 = scalar_select %p319, %s26, 0
      %p321 = scmp.lt.s32.totalorder %s316, 1
      %s322 = scalar_select %p321, %s316, 1
      %s323 = smul.addr %s320, 2
      %s324 = sadd.s32 %s322, %s323
      %s325 = smul.addr %s318, 2
      %s326 = sadd.s32 %s324, %s325
      %s327 = smul.addr %s326, 4
      %s328 = scalar_lea.vmem %s0, %s327
      %p329 = pneg %p68
      %p330 = pneg %p65
      %s331 = smul.u32 2, %s25
      %p332 = scmp.lt.s32.totalorder %s23, 1
      %s333 = scalar_select %p332, %s23, 1
      %p334 = scmp.lt.s32.totalorder %s26, 0
      %s335 = scalar_select %p334, %s26, 0
      %p336 = scmp.lt.s32.totalorder %s331, 1
      %s337 = scalar_select %p336, %s331, 1
      %s338 = smul.addr %s335, 2
      %s339 = sadd.s32 %s337, %s338
      %s340 = smul.addr %s333, 2
      %s341 = sadd.s32 %s339, %s340
      %s342 = smul.addr %s341, 4
      %s343 = scalar_lea.vmem %s1, %s342
      %p344 = pneg %p98
      %p345 = pneg %p95
      %s346 = smul.u32 4, %s26
      %s347 = smul.u32 2, %s25
      %p348 = scmp.lt.s32.totalorder %s346, 3
      %s349 = scalar_select %p348, %s346, 3
      %p350 = scmp.lt.s32.totalorder %s24, 0
      %s351 = scalar_select %p350, %s24, 0
      %p352 = scmp.lt.s32.totalorder %s347, 1
      %s353 = scalar_select %p352, %s347, 1
      %s354 = smul.addr %s351, 2
      %s355 = sadd.s32 %s353, %s354
      %s356 = smul.addr %s349, 2
      %s357 = sadd.s32 %s355, %s356
      %s358 = smul.addr %s357, 8
      %s359 = scalar_lea.vmem %s2, %s358
      %p360 = pneg %p128
      %p361 = pneg %p125
      %s362 = smul.u32 4, %s26
      %s363 = smul.u32 2, %s25
      %p364 = scmp.lt.s32.totalorder %s362, 3
      %s365 = scalar_select %p364, %s362, 3
      %p366 = scmp.lt.s32.totalorder %s24, 0
      %s367 = scalar_select %p366, %s24, 0
      %p368 = scmp.lt.s32.totalorder %s363, 1
      %s369 = scalar_select %p368, %s363, 1
      %s370 = smul.addr %s367, 2
      %s371 = sadd.s32 %s369, %s370
      %s372 = smul.addr %s365, 2
      %s373 = sadd.s32 %s371, %s372
      %s374 = smul.addr %s373, 8
      %s375 = scalar_lea.vmem %s3, %s374
      %p376 = pneg %p158
      %p377 = pneg %p155
      %p378 = pneg %p188
      %p379 = pneg %p185
      %s380 = smul.u32 2, %s25
      %p381 = scmp.lt.s32.totalorder %s23, 1
      %s382 = scalar_select %p381, %s23, 1
      %p383 = scmp.lt.s32.totalorder %s24, 0
      %s384 = scalar_select %p383, %s24, 0
      %p385 = scmp.lt.s32.totalorder %s380, 1
      %s386 = scalar_select %p385, %s380, 1
      %s387 = smul.addr %s384, 2
      %s388 = sadd.s32 %s386, %s387
      %s389 = smul.addr %s382, 2
      %s390 = sadd.s32 %s388, %s389
      %s391 = smul.addr %s390, 8
      %s392 = scalar_lea.vmem %s4, %s391
      %p393 = pneg %p218
      %p394 = pneg %p215
      %s395 = smul.u32 2, %s25
      %p396 = scmp.lt.s32.totalorder %s23, 1
      %s397 = scalar_select %p396, %s23, 1
      %p398 = scmp.lt.s32.totalorder %s24, 0
      %s399 = scalar_select %p398, %s24, 0
      %p400 = scmp.lt.s32.totalorder %s395, 1
      %s401 = scalar_select %p400, %s395, 1
      %s402 = smul.addr %s399, 2
      %s403 = sadd.s32 %s401, %s402
      %s404 = smul.addr %s397, 2
      %s405 = sadd.s32 %s403, %s404
      %s406 = smul.addr %s405, 8
      %s407 = scalar_lea.vmem %s5, %s406
      %s408 = smul.u32 2, %s25
      %p409 = scmp.lt.s32.totalorder %s23, 1
      %s410 = scalar_select %p409, %s23, 1
      %p411 = scmp.lt.s32.totalorder %s26, 0
      %s412 = scalar_select %p411, %s26, 0
      %p413 = scmp.lt.s32.totalorder %s408, 1
      %s414 = scalar_select %p413, %s408, 1
      %s415 = smul.addr %s412, 2
      %s416 = sadd.s32 %s414, %s415
      %s417 = smul.addr %s410, 2
      %s418 = sadd.s32 %s416, %s417
      %s419 = smul.addr %s418, 4
      %s420 = scalar_lea.vmem %s0, %s419
      %s421 = smul.u32 2, %s25
      %s422 = smul.u32 2, %s25
      %p423 = scmp.lt.s32.totalorder %s23, 1
      %s424 = scalar_select %p423, %s23, 1
      %p425 = scmp.lt.s32.totalorder %s26, 0
      %s426 = scalar_select %p425, %s26, 0
      %p427 = scmp.lt.s32.totalorder %s422, 1
      %s428 = scalar_select %p427, %s422, 1
      %s429 = smul.addr %s426, 2
      %s430 = sadd.s32 %s428, %s429
      %s431 = smul.addr %s424, 2
      %s432 = sadd.s32 %s430, %s431
      %s433 = smul.addr %s432, 4
      %s434 = scalar_lea.vmem %s1, %s433
      %s435 = smul.u32 2, %s25
      %s436 = smul.u32 4, %s26
      %s437 = smul.u32 2, %s25
      %p438 = scmp.lt.s32.totalorder %s436, 3
      %s439 = scalar_select %p438, %s436, 3
      %p440 = scmp.lt.s32.totalorder %s24, 0
      %s441 = scalar_select %p440, %s24, 0
      %p442 = scmp.lt.s32.totalorder %s437, 1
      %s443 = scalar_select %p442, %s437, 1
      %s444 = smul.addr %s441, 2
      %s445 = sadd.s32 %s443, %s444
      %s446 = smul.addr %s439, 2
      %s447 = sadd.s32 %s445, %s446
      %s448 = smul.addr %s447, 8
      %s449 = scalar_lea.vmem %s2, %s448
      %s450 = smul.u32 4, %s26
      %s451 = smul.u32 2, %s25
      %s452 = smul.u32 4, %s26
      %s453 = smul.u32 2, %s25
      %p454 = scmp.lt.s32.totalorder %s452, 3
      %s455 = scalar_select %p454, %s452, 3
      %p456 = scmp.lt.s32.totalorder %s24, 0
      %s457 = scalar_select %p456, %s24, 0
      %p458 = scmp.lt.s32.totalorder %s453, 1
      %s459 = scalar_select %p458, %s453, 1
      %s460 = smul.addr %s457, 2
      %s461 = sadd.s32 %s459, %s460
      %s462 = smul.addr %s455, 2
      %s463 = sadd.s32 %s461, %s462
      %s464 = smul.addr %s463, 8
      %s465 = scalar_lea.vmem %s3, %s464
      %s466 = smul.u32 4, %s26
      %s467 = smul.u32 2, %s25
      %s468 = smul.u32 2, %s25
      %p469 = scmp.lt.s32.totalorder %s23, 1
      %s470 = scalar_select %p469, %s23, 1
      %p471 = scmp.lt.s32.totalorder %s24, 0
      %s472 = scalar_select %p471, %s24, 0
      %p473 = scmp.lt.s32.totalorder %s468, 1
      %s474 = scalar_select %p473, %s468, 1
      %s475 = smul.addr %s472, 2
      %s476 = sadd.s32 %s474, %s475
      %s477 = smul.addr %s470, 2
      %s478 = sadd.s32 %s476, %s477
      %s479 = smul.addr %s478, 8
      %s480 = scalar_lea.vmem %s4, %s479
      %s481 = smul.u32 2, %s25
      %s482 = smul.u32 2, %s25
      %p483 = scmp.lt.s32.totalorder %s23, 1
      %s484 = scalar_select %p483, %s23, 1
      %p485 = scmp.lt.s32.totalorder %s24, 0
      %s486 = scalar_select %p485, %s24, 0
      %p487 = scmp.lt.s32.totalorder %s482, 1
      %s488 = scalar_select %p487, %s482, 1
      %s489 = smul.addr %s486, 2
      %s490 = sadd.s32 %s488, %s489
      %s491 = smul.addr %s484, 2
      %s492 = sadd.s32 %s490, %s491
      %s493 = smul.addr %s492, 8
      %s494 = scalar_lea.vmem %s5, %s493
      %s495 = smul.u32 2, %s25
      %p496 = scmp.eq.s32.totalorder %s26, 0
      // Predicated region
      $region37: #{fft_res_block.4} parent=35 // pred_check
        %p497 = pneg %p496
      $region38: #{fft_res_block.4} parent=35 // pred_check_branch
        %499 = sbr.rel (%p497) target = $region40
      $region39: #{fft_res_block.4} parent=35 // pred_region
        %500 = vst [vmem:[%s480] sm:$0xff] 0.0
        %501 = vst [vmem:[%s480 + $0x8] sm:$0xff] 0.0
        %502 = vst [vmem:[%s494] sm:$0xff] 0.0
        %503 = vst [vmem:[%s494 + $0x8] sm:$0xff] 0.0
      $region40: #{fft_res_block.4} parent=35 // pred_fallthru
        _
      %v504 = vld [vmem:[%s420] sm:$0xff]
      %v505 = vld [vmem:[%s434] sm:$0xff]
      %v506 = vld [vmem:[%s449] sm:$0xff]
      %v507 = vld [vmem:[%s449 + $0x8] sm:$0xff]
      %v508 = vld [vmem:[%s465] sm:$0xff]
      %v509 = vld [vmem:[%s465 + $0x8] sm:$0xff]
      %v511 = vlaneseq
      %v512 = vshrl.u32 %v511, 7
      %v513 = vsub.s32 0, %v512
      %v514 = vrot.slane %v504, %v513
      %v515 = vlaneseq
      %v516 = vshrl.u32 %v515, 7
      %v517 = vsub.s32 4, %v516
      %v518 = vrot.slane %v504, %v517
      %v521 = vlaneseq
      %v522 = vshrl.u32 %v521, 7
      %v523 = vsub.s32 0, %v522
      %v524 = vrot.slane %v514, %v523
      %v525 = vlaneseq
      %v526 = vshrl.u32 %v525, 7
      %v527 = vsub.s32 0, %v526
      %v528 = vrot.slane %v518, %v527
      %v529 = vmul.f32 %v524, %v506
      %v530 = vmul.f32 %v528, %v507
      %v532 = vlaneseq
      %v533 = vshrl.u32 %v532, 7
      %v534 = vsub.s32 0, %v533
      %v535 = vrot.slane %v505, %v534
      %v536 = vlaneseq
      %v537 = vshrl.u32 %v536, 7
      %v538 = vsub.s32 4, %v537
      %v539 = vrot.slane %v505, %v538
      %v542 = vlaneseq
      %v543 = vshrl.u32 %v542, 7
      %v544 = vsub.s32 0, %v543
      %v545 = vrot.slane %v535, %v544
      %v546 = vlaneseq
      %v547 = vshrl.u32 %v546, 7
      %v548 = vsub.s32 0, %v547
      %v549 = vrot.slane %v539, %v548
      %v550 = vmul.f32 %v545, %v508
      %v551 = vmul.f32 %v549, %v509
      %v552 = vsub.f32 %v529, %v550
      %v553 = vsub.f32 %v530, %v551
      %v554 = vmul.f32 %v524, %v508
      %v555 = vmul.f32 %v528, %v509
      %v556 = vmul.f32 %v545, %v506
      %v557 = vmul.f32 %v549, %v507
      %v558 = vadd.f32 %v554, %v556
      %v559 = vadd.f32 %v555, %v557
      %s560 = scalar_lea.vmem %s449, 16
      %v561 = vld [vmem:[%s560] sm:$0xff]
      %v562 = vld [vmem:[%s560 + $0x8] sm:$0xff]
      %s563 = scalar_lea.vmem %s465, 16
      %v564 = vld [vmem:[%s563] sm:$0xff]
      %v565 = vld [vmem:[%s563 + $0x8] sm:$0xff]
      %v566 = vlaneseq
      %v567 = vshrl.u32 %v566, 7
      %v568 = vsub.s32 1, %v567
      %v569 = vrot.slane %v504, %v568
      %v570 = vlaneseq
      %v571 = vshrl.u32 %v570, 7
      %v572 = vsub.s32 5, %v571
      %v573 = vrot.slane %v504, %v572
      %v576 = vlaneseq
      %v577 = vshrl.u32 %v576, 7
      %v578 = vsub.s32 1, %v577
      %v579 = vrot.slane %v569, %v578
      %v580 = vlaneseq
      %v581 = vshrl.u32 %v580, 7
      %v582 = vsub.s32 1, %v581
      %v583 = vrot.slane %v573, %v582
      %v584 = vmul.f32 %v579, %v561
      %v585 = vmul.f32 %v583, %v562
      %v586 = vlaneseq
      %v587 = vshrl.u32 %v586, 7
      %v588 = vsub.s32 1, %v587
      %v589 = vrot.slane %v505, %v588
      %v590 = vlaneseq
      %v591 = vshrl.u32 %v590, 7
      %v592 = vsub.s32 5, %v591
      %v593 = vrot.slane %v505, %v592
      %v596 = vlaneseq
      %v597 = vshrl.u32 %v596, 7
      %v598 = vsub.s32 1, %v597
      %v599 = vrot.slane %v589, %v598
      %v600 = vlaneseq
      %v601 = vshrl.u32 %v600, 7
      %v602 = vsub.s32 1, %v601
      %v603 = vrot.slane %v593, %v602
      %v604 = vmul.f32 %v599, %v564
      %v605 = vmul.f32 %v603, %v565
      %v606 = vsub.f32 %v584, %v604
      %v607 = vsub.f32 %v585, %v605
      %v608 = vmul.f32 %v579, %v564
      %v609 = vmul.f32 %v583, %v565
      %v610 = vmul.f32 %v599, %v561
      %v611 = vmul.f32 %v603, %v562
      %v612 = vadd.f32 %v608, %v610
      %v613 = vadd.f32 %v609, %v611
      %v614 = vadd.f32 %v552, %v606
      %v615 = vadd.f32 %v553, %v607
      %v616 = vadd.f32 %v558, %v612
      %v617 = vadd.f32 %v559, %v613
      %s618 = scalar_lea.vmem %s449, 32
      %v619 = vld [vmem:[%s618] sm:$0xff]
      %v620 = vld [vmem:[%s618 + $0x8] sm:$0xff]
      %s621 = scalar_lea.vmem %s465, 32
      %v622 = vld [vmem:[%s621] sm:$0xff]
      %v623 = vld [vmem:[%s621 + $0x8] sm:$0xff]
      %v624 = vlaneseq
      %v625 = vshrl.u32 %v624, 7
      %v626 = vsub.s32 2, %v625
      %v627 = vrot.slane %v504, %v626
      %v628 = vlaneseq
      %v629 = vshrl.u32 %v628, 7
      %v630 = vsub.s32 6, %v629
      %v631 = vrot.slane %v504, %v630
      %v634 = vlaneseq
      %v635 = vshrl.u32 %v634, 7
      %v636 = vsub.s32 2, %v635
      %v637 = vrot.slane %v627, %v636
      %v638 = vlaneseq
      %v639 = vshrl.u32 %v638, 7
      %v640 = vsub.s32 2, %v639
      %v641 = vrot.slane %v631, %v640
      %v642 = vmul.f32 %v637, %v619
      %v643 = vmul.f32 %v641, %v620
      %v644 = vlaneseq
      %v645 = vshrl.u32 %v644, 7
      %v646 = vsub.s32 2, %v645
      %v647 = vrot.slane %v505, %v646
      %v648 = vlaneseq
      %v649 = vshrl.u32 %v648, 7
      %v650 = vsub.s32 6, %v649
      %v651 = vrot.slane %v505, %v650
      %v654 = vlaneseq
      %v655 = vshrl.u32 %v654, 7
      %v656 = vsub.s32 2, %v655
      %v657 = vrot.slane %v647, %v656
      %v658 = vlaneseq
      %v659 = vshrl.u32 %v658, 7
      %v660 = vsub.s32 2, %v659
      %v661 = vrot.slane %v651, %v660
      %v662 = vmul.f32 %v657, %v622
      %v663 = vmul.f32 %v661, %v623
      %v664 = vsub.f32 %v642, %v662
      %v665 = vsub.f32 %v643, %v663
      %v666 = vmul.f32 %v637, %v622
      %v667 = vmul.f32 %v641, %v623
      %v668 = vmul.f32 %v657, %v619
      %v669 = vmul.f32 %v661, %v620
      %v670 = vadd.f32 %v666, %v668
      %v671 = vadd.f32 %v667, %v669
      %v672 = vadd.f32 %v614, %v664
      %v673 = vadd.f32 %v615, %v665
      %v674 = vadd.f32 %v616, %v670
      %v675 = vadd.f32 %v617, %v671
      %s676 = scalar_lea.vmem %s449, 48
      %v677 = vld [vmem:[%s676] sm:$0xff]
      %v678 = vld [vmem:[%s676 + $0x8] sm:$0xff]
      %s679 = scalar_lea.vmem %s465, 48
      %v680 = vld [vmem:[%s679] sm:$0xff]
      %v681 = vld [vmem:[%s679 + $0x8] sm:$0xff]
      %v682 = vlaneseq
      %v683 = vshrl.u32 %v682, 7
      %v684 = vsub.s32 3, %v683
      %v685 = vrot.slane %v504, %v684
      %v686 = vlaneseq
      %v687 = vshrl.u32 %v686, 7
      %v688 = vsub.s32 7, %v687
      %v689 = vrot.slane %v504, %v688
      %v692 = vlaneseq
      %v693 = vshrl.u32 %v692, 7
      %v694 = vsub.s32 3, %v693
      %v695 = vrot.slane %v685, %v694
      %v696 = vlaneseq
      %v697 = vshrl.u32 %v696, 7
      %v698 = vsub.s32 3, %v697
      %v699 = vrot.slane %v689, %v698
      %v700 = vmul.f32 %v695, %v677
      %v701 = vmul.f32 %v699, %v678
      %v702 = vlaneseq
      %v703 = vshrl.u32 %v702, 7
      %v704 = vsub.s32 3, %v703
      %v705 = vrot.slane %v505, %v704
      %v706 = vlaneseq
      %v707 = vshrl.u32 %v706, 7
      %v708 = vsub.s32 7, %v707
      %v709 = vrot.slane %v505, %v708
      %v712 = vlaneseq
      %v713 = vshrl.u32 %v712, 7
      %v714 = vsub.s32 3, %v713
      %v715 = vrot.slane %v705, %v714
      %v716 = vlaneseq
      %v717 = vshrl.u32 %v716, 7
      %v718 = vsub.s32 3, %v717
      %v719 = vrot.slane %v709, %v718
      %v720 = vmul.f32 %v715, %v680
      %v721 = vmul.f32 %v719, %v681
      %v722 = vsub.f32 %v700, %v720
      %v723 = vsub.f32 %v701, %v721
      %v724 = vmul.f32 %v695, %v680
      %v725 = vmul.f32 %v699, %v681
      %v726 = vmul.f32 %v715, %v677
      %v727 = vmul.f32 %v719, %v678
      %v728 = vadd.f32 %v724, %v726
      %v729 = vadd.f32 %v725, %v727
      %v730 = vadd.f32 %v672, %v722
      %v731 = vadd.f32 %v673, %v723
      %v732 = vadd.f32 %v674, %v728
      %v733 = vadd.f32 %v675, %v729
      %v734 = vld [vmem:[%s480] sm:$0xff]
      %v735 = vld [vmem:[%s480 + $0x8] sm:$0xff]
      %v736 = vadd.f32 %v734, %v730
      %v737 = vadd.f32 %v735, %v731
      %738 = vst [vmem:[%s480] sm:$0xff] %v736
      %739 = vst [vmem:[%s480 + $0x8] sm:$0xff] %v737
      %v740 = vld [vmem:[%s494] sm:$0xff]
      %v741 = vld [vmem:[%s494 + $0x8] sm:$0xff]
      %v742 = vadd.f32 %v740, %v732
      %v743 = vadd.f32 %v741, %v733
      %744 = vst [vmem:[%s494] sm:$0xff] %v742
      %745 = vst [vmem:[%s494 + $0x8] sm:$0xff] %v743
      %s746 = smul.u32 2, %s25
      %p747 = scmp.lt.s32.totalorder %s23, 1
      %s748 = scalar_select %p747, %s23, 1
      %p749 = scmp.lt.s32.totalorder %s24, 0
      %s750 = scalar_select %p749, %s24, 0
      %p751 = scmp.lt.s32.totalorder %s746, 1
      %s752 = scalar_select %p751, %s746, 1
      %s753 = smul.addr %s750, 2
      %s754 = sadd.s32 %s752, %s753
      %s755 = smul.addr %s748, 2
      %s756 = sadd.s32 %s754, %s755
      %s757 = smul.addr %s756, 8
      %s758 = scalar_lea.vmem %s4, %s757
      %s759 = smul.u32 2, %s25
      %p760 = scmp.lt.s32.totalorder %s23, 1
      %s761 = scalar_select %p760, %s23, 1
      %p762 = scmp.lt.s32.totalorder %s24, 0
      %s763 = scalar_select %p762, %s24, 0
      %p764 = scmp.lt.s32.totalorder %s759, 1
      %s765 = scalar_select %p764, %s759, 1
      %s766 = smul.addr %s763, 2
      %s767 = sadd.s32 %s765, %s766
      %s768 = smul.addr %s761, 2
      %s769 = sadd.s32 %s767, %s768
      %s770 = smul.addr %s769, 8
      %s771 = scalar_lea.vmem %s5, %s770
      // Predicated region
      $region41: #{fft_res_block.4} parent=35 // pred_check
        %p772 = pneg %p185
      $region42: #{fft_res_block.4} parent=35 // pred_check_branch
        %774 = sbr.rel (%p772) target = $region44
      $region43: #{fft_res_block.4} parent=35 // pred_region
        %s775 = smul.u32 2, %s25
      $region44: #{fft_res_block.4} parent=35 // pred_fallthru
        _
      // Predicated region
      $region45: #{fft_res_block.4} parent=35 // pred_check
        %p776 = pneg %p215
      $region46: #{fft_res_block.4} parent=35 // pred_check_branch
        %778 = sbr.rel (%p776) target = $region48
      $region47: #{fft_res_block.4} parent=35 // pred_region
        %s779 = smul.u32 2, %s25
      $region48: #{fft_res_block.4} parent=35 // pred_fallthru
        _
    $region36: #{fft_res_block.4} parent=5 // pred_fallthru
      _
    %p780 = scmp.le.s32.totalorder 2, %s12
    // Predicated region
    $region49: #{fft_res_block.4} parent=5 // pred_check
      %p781 = pneg %p780
    $region50: #{fft_res_block.4} parent=5 // pred_check_branch
      %783 = sbr.rel (%p781) target = $region52
    $region51: #{fft_res_block.4} parent=5 // pred_region
      %s784 = ssub.s32 %s12, 2
      // Predicated region
      $region53: #{fft_res_block.4} parent=51 // pred_check
        %p785 = pneg %p191
      $region54: #{fft_res_block.4} parent=51 // pred_check_branch
        %787 = sbr.rel (%p785) target = $region56
      $region55: #{fft_res_block.4} parent=51 // pred_region
        %s788 = smul.u32 2, %s29
        %p789 = scmp.lt.s32.totalorder %s27, 1
        %s790 = scalar_select %p789, %s27, 1
        %p791 = scmp.lt.s32.totalorder %s28, 0
        %s792 = scalar_select %p791, %s28, 0
        %p793 = scmp.lt.s32.totalorder %s788, 1
        %s794 = scalar_select %p793, %s788, 1
        %s795 = smul.addr %s792, 2
        %s796 = sadd.s32 %s794, %s795
        %s797 = smul.addr %s790, 2
        %s798 = sadd.s32 %s796, %s797
        %s799 = smul.addr %s798, 8
        %s800 = scalar_lea.vmem %s4, %s799
      $region56: #{fft_res_block.4} parent=51 // pred_fallthru
        _
      // Predicated region
      $region57: #{fft_res_block.4} parent=51 // pred_check
        %p801 = pneg %p221
      $region58: #{fft_res_block.4} parent=51 // pred_check_branch
        %803 = sbr.rel (%p801) target = $region60
      $region59: #{fft_res_block.4} parent=51 // pred_region
        %s804 = smul.u32 2, %s29
        %p805 = scmp.lt.s32.totalorder %s27, 1
        %s806 = scalar_select %p805, %s27, 1
        %p807 = scmp.lt.s32.totalorder %s28, 0
        %s808 = scalar_select %p807, %s28, 0
        %p809 = scmp.lt.s32.totalorder %s804, 1
        %s810 = scalar_select %p809, %s804, 1
        %s811 = smul.addr %s808, 2
        %s812 = sadd.s32 %s810, %s811
        %s813 = smul.addr %s806, 2
        %s814 = sadd.s32 %s812, %s813
        %s815 = smul.addr %s814, 8
        %s816 = scalar_lea.vmem %s5, %s815
      $region60: #{fft_res_block.4} parent=51 // pred_fallthru
        _
    $region52: #{fft_res_block.4} parent=5 // pred_fallthru
      _
  $region6: #{fft_res_block.4} parent=0 // loop_footer
    %s16 = sadd.s32 1, %s12
  $region7: #{fft_res_block.4} parent=0 // loop_footer_branch
    %11 = sbr.rel target = $region3
  $region8: #{fft_res_block.4} parent=0 // loop_exit
    _

// kernel: reverse.5
$region0: #{reverse.5}
  %s0 = inlined_call_operand.vmem [shape: f32[2,8,16,7], index: 0, kind: input, shape index: {}]
  %s1 = inlined_call_operand.vmem [shape: f32[2,8,16,7], index: 1, kind: output, shape index: {}]
  $region1: #{reverse.5} parent=0
    #allocation0 [shape = 'u8[131072]{0}', space=vmem, size = 0x20000, scoped, tag = 'operand span for operand 0']
    #allocation1 [shape = 'u8[65536]{0}', space=vmem, size = 0x10000, scoped, tag = 'operand span for operand 1']
    %s2 = scalar_lea.vmem [#allocation0], 8
    // Predicated region
    $region2: #{reverse.5} parent=1 // pred_check
      _
    $region3: #{reverse.5} parent=1 // pred_check_branch
      %4 = sbr.rel (0) target = $region5
    $region4: #{reverse.5} parent=1 // pred_region
      // Predicated region
      $region6: #{reverse.5} parent=4 // pred_check
        _
      $region7: #{reverse.5} parent=4 // pred_check_branch
        %6 = sbr.rel (0) target = $region9
      $region8: #{reverse.5} parent=4 // pred_region
        // Predicated region
        $region21: #{reverse.5} parent=8 // pred_check
          _
        $region22: #{reverse.5} parent=8 // pred_check_branch
          %51 = sbr.rel (0) target = $region24
        $region23: #{reverse.5} parent=8 // pred_region
          loop: start=0, step=1, limit=1
          $region25: #{reverse.5} parent=23 // loop_pre_header
            _
          $region26: #{reverse.5} parent=23 // loop_header
            %s53 = sphi 0, %s57
            %p54 = scmp.ge.s32.totalorder %s53, 1
            %s58 = sphi %s0, %s0
            %s59 = sphi %s2, %s2
          $region27: #{reverse.5} parent=23 // loop_header_branch
            %56 = sbr.rel (%p54) target = $region31
          $region28: #{reverse.5} parent=23 // loop_body
            %v60 = vld [vmem:[%s58] sm:$0xff]
            %61 = vst [vmem:[%s59] sm:$0xff] %v60
            %v62 = vld [vmem:[%s58 + $0x8] sm:$0xff]
            %63 = vst [vmem:[%s59 + $0x10] sm:$0xff] %v62
            %v64 = vld [vmem:[%s58 + $0x10] sm:$0xff]
            %65 = vst [vmem:[%s59 + $0x20] sm:$0xff] %v64
            %v66 = vld [vmem:[%s58 + $0x18] sm:$0xff]
            %67 = vst [vmem:[%s59 + $0x30] sm:$0xff] %v66
            %v68 = vld [vmem:[%s58 + $0x20] sm:$0xff]
            %69 = vst [vmem:[%s59 + $0x40] sm:$0xff] %v68
            %v70 = vld [vmem:[%s58 + $0x28] sm:$0xff]
            %71 = vst [vmem:[%s59 + $0x50] sm:$0xff] %v70
            %v72 = vld [vmem:[%s58 + $0x30] sm:$0xff]
            %73 = vst [vmem:[%s59 + $0x60] sm:$0xff] %v72
            %v74 = vld [vmem:[%s58 + $0x38] sm:$0xff]
            %75 = vst [vmem:[%s59 + $0x70] sm:$0xff] %v74
            %v76 = vld [vmem:[%s58 + $0x40] sm:$0xff]
            %77 = vst [vmem:[%s59 + $0x80] sm:$0xff] %v76
            %v78 = vld [vmem:[%s58 + $0x48] sm:$0xff]
            %79 = vst [vmem:[%s59 + $0x90] sm:$0xff] %v78
            %v80 = vld [vmem:[%s58 + $0x50] sm:$0xff]
            %81 = vst [vmem:[%s59 + $0xa0] sm:$0xff] %v80
            %v82 = vld [vmem:[%s58 + $0x58] sm:$0xff]
            %83 = vst [vmem:[%s59 + $0xb0] sm:$0xff] %v82
            %v84 = vld [vmem:[%s58 + $0x60] sm:$0xff]
            %85 = vst [vmem:[%s59 + $0xc0] sm:$0xff] %v84
            %v86 = vld [vmem:[%s58 + $0x68] sm:$0xff]
            %87 = vst [vmem:[%s59 + $0xd0] sm:$0xff] %v86
            %v88 = vld [vmem:[%s58 + $0x70] sm:$0xff]
            %89 = vst [vmem:[%s59 + $0xe0] sm:$0xff] %v88
            %v90 = vld [vmem:[%s58 + $0x78] sm:$0xff]
            %91 = vst [vmem:[%s59 + $0xf0] sm:$0xff] %v90
          $region29: #{reverse.5} parent=23 // loop_footer
            %s57 = sadd.s32 1, %s53
          $region30: #{reverse.5} parent=23 // loop_footer_branch
            %52 = sbr.rel target = $region26
          $region31: #{reverse.5} parent=23 // loop_exit
            _
        $region24: #{reverse.5} parent=8 // pred_fallthru
          _
        // Predicated region
        $region32: #{reverse.5} parent=8 // pred_check
          _
        $region33: #{reverse.5} parent=8 // pred_check_branch
          %93 = sbr.rel target = $region35
        $region34: #{reverse.5} parent=8 // pred_region
          _
        $region35: #{reverse.5} parent=8 // pred_fallthru
          _
      $region9: #{reverse.5} parent=4 // pred_fallthru
        _
      // Predicated region
      $region10: #{reverse.5} parent=4 // pred_check
        _
      $region11: #{reverse.5} parent=4 // pred_check_branch
        %8 = sbr.rel target = $region13
      $region12: #{reverse.5} parent=4 // pred_region
        loop: start=0, step=1, limit=1
        $region14: #{reverse.5} parent=12 // loop_pre_header
          _
        $region15: #{reverse.5} parent=12 // loop_header
          %s11 = sphi 0, %s15
          %p12 = scmp.ge.s32.totalorder %s11, 1
          %s16 = sphi %s0, %s0
          %s17 = sphi %s2, %s2
        $region16: #{reverse.5} parent=12 // loop_header_branch
          %14 = sbr.rel (%p12) target = $region20
        $region17: #{reverse.5} parent=12 // loop_body
          %v18 = vld [vmem:[%s16] sm:$0xff]
          %19 = vst [vmem:[%s17] sm:$0xff] %v18
          %v20 = vld [vmem:[%s16 + $0x8] sm:$0xff]
          %21 = vst [vmem:[%s17 + $0x10] sm:$0xff] %v20
          %v22 = vld [vmem:[%s16 + $0x10] sm:$0xff]
          %23 = vst [vmem:[%s17 + $0x20] sm:$0xff] %v22
          %v24 = vld [vmem:[%s16 + $0x18] sm:$0xff]
          %25 = vst [vmem:[%s17 + $0x30] sm:$0xff] %v24
          %v26 = vld [vmem:[%s16 + $0x20] sm:$0xff]
          %27 = vst [vmem:[%s17 + $0x40] sm:$0xff] %v26
          %v28 = vld [vmem:[%s16 + $0x28] sm:$0xff]
          %29 = vst [vmem:[%s17 + $0x50] sm:$0xff] %v28
          %v30 = vld [vmem:[%s16 + $0x30] sm:$0xff]
          %31 = vst [vmem:[%s17 + $0x60] sm:$0xff] %v30
          %v32 = vld [vmem:[%s16 + $0x38] sm:$0xff]
          %33 = vst [vmem:[%s17 + $0x70] sm:$0xff] %v32
          %v34 = vld [vmem:[%s16 + $0x40] sm:$0xff]
          %35 = vst [vmem:[%s17 + $0x80] sm:$0xff] %v34
          %v36 = vld [vmem:[%s16 + $0x48] sm:$0xff]
          %37 = vst [vmem:[%s17 + $0x90] sm:$0xff] %v36
          %v38 = vld [vmem:[%s16 + $0x50] sm:$0xff]
          %39 = vst [vmem:[%s17 + $0xa0] sm:$0xff] %v38
          %v40 = vld [vmem:[%s16 + $0x58] sm:$0xff]
          %41 = vst [vmem:[%s17 + $0xb0] sm:$0xff] %v40
          %v42 = vld [vmem:[%s16 + $0x60] sm:$0xff]
          %43 = vst [vmem:[%s17 + $0xc0] sm:$0xff] %v42
          %v44 = vld [vmem:[%s16 + $0x68] sm:$0xff]
          %45 = vst [vmem:[%s17 + $0xd0] sm:$0xff] %v44
          %v46 = vld [vmem:[%s16 + $0x70] sm:$0xff]
          %47 = vst [vmem:[%s17 + $0xe0] sm:$0xff] %v46
          %v48 = vld [vmem:[%s16 + $0x78] sm:$0xff]
          %49 = vst [vmem:[%s17 + $0xf0] sm:$0xff] %v48
        $region18: #{reverse.5} parent=12 // loop_footer
          %s15 = sadd.s32 1, %s11
        $region19: #{reverse.5} parent=12 // loop_footer_branch
          %10 = sbr.rel target = $region15
        $region20: #{reverse.5} parent=12 // loop_exit
          _
      $region13: #{reverse.5} parent=4 // pred_fallthru
        _
    $region5: #{reverse.5} parent=1 // pred_fallthru
      _
    %94 = vnop
    %s95 = scalar_lea.vmem [#allocation0], 7
    %v96 = vld [vmem:[%s95] ss:$-1 sm:$0xff]
    %v97 = vrot.slane %v96, 1
    %98 = vst [vmem:[#allocation1] sm:$0xff] %v97
    %s99 = scalar_lea.vmem [#allocation0], 8
    %s100 = scalar_lea.vmem %s99, 7 [#allocation0]
    %v101 = vld [vmem:[%s100] ss:$-1 sm:$0xff]
    %v102 = vrot.slane %v101, 1
    %v103 = vlaneseq
    %v104 = vshrl.u32 %v103, 7
    %vm105 = vcmp.lt.s32.totalorder %v104, 7
    %106 = vst.msk [vmem:[#allocation1] sm:$0xff] %vm105, %v102
    %s107 = scalar_lea.vmem [#allocation1], 8
    %s108 = scalar_lea.vmem [#allocation0], 16
    %s109 = scalar_lea.vmem %s108, 7 [#allocation0]
    %v110 = vld [vmem:[%s109] ss:$-1 sm:$0xff]
    %v111 = vrot.slane %v110, 1
    %112 = vst [vmem:[%s107] sm:$0xff] %v111
    %s113 = scalar_lea.vmem %s108, 8 [#allocation0]
    %s114 = scalar_lea.vmem %s113, 7 [#allocation0]
    %v115 = vld [vmem:[%s114] ss:$-1 sm:$0xff]
    %v116 = vrot.slane %v115, 1
    %v117 = vlaneseq
    %v118 = vshrl.u32 %v117, 7
    %vm119 = vcmp.lt.s32.totalorder %v118, 7
    %120 = vst.msk [vmem:[%s107] sm:$0xff] %vm119, %v116
    %s121 = scalar_lea.vmem [#allocation1], 16
    %s122 = scalar_lea.vmem [#allocation0], 32
    %s123 = scalar_lea.vmem %s122, 7 [#allocation0]
    %v124 = vld [vmem:[%s123] ss:$-1 sm:$0xff]
    %v125 = vrot.slane %v124, 1
    %126 = vst [vmem:[%s121] sm:$0xff] %v125
    %s127 = scalar_lea.vmem %s122, 8 [#allocation0]
    %s128 = scalar_lea.vmem %s127, 7 [#allocation0]
    %v129 = vld [vmem:[%s128] ss:$-1 sm:$0xff]
    %v130 = vrot.slane %v129, 1
    %v131 = vlaneseq
    %v132 = vshrl.u32 %v131, 7
    %vm133 = vcmp.lt.s32.totalorder %v132, 7
    %134 = vst.msk [vmem:[%s121] sm:$0xff] %vm133, %v130
    %s135 = scalar_lea.vmem [#allocation1], 24
    %s136 = scalar_lea.vmem [#allocation0], 48
    %s137 = scalar_lea.vmem %s136, 7 [#allocation0]
    %v138 = vld [vmem:[%s137] ss:$-1 sm:$0xff]
    %v139 = vrot.slane %v138, 1
    %140 = vst [vmem:[%s135] sm:$0xff] %v139
    %s141 = scalar_lea.vmem %s136, 8 [#allocation0]
    %s142 = scalar_lea.vmem %s141, 7 [#allocation0]
    %v143 = vld [vmem:[%s142] ss:$-1 sm:$0xff]
    %v144 = vrot.slane %v143, 1
    %v145 = vlaneseq
    %v146 = vshrl.u32 %v145, 7
    %vm147 = vcmp.lt.s32.totalorder %v146, 7
    %148 = vst.msk [vmem:[%s135] sm:$0xff] %vm147, %v144
    %s149 = scalar_lea.vmem [#allocation1], 32
    %s150 = scalar_lea.vmem [#allocation0], 64
    %s151 = scalar_lea.vmem %s150, 7 [#allocation0]
    %v152 = vld [vmem:[%s151] ss:$-1 sm:$0xff]
    %v153 = vrot.slane %v152, 1
    %154 = vst [vmem:[%s149] sm:$0xff] %v153
    %s155 = scalar_lea.vmem %s150, 8 [#allocation0]
    %s156 = scalar_lea.vmem %s155, 7 [#allocation0]
    %v157 = vld [vmem:[%s156] ss:$-1 sm:$0xff]
    %v158 = vrot.slane %v157, 1
    %v159 = vlaneseq
    %v160 = vshrl.u32 %v159, 7
    %vm161 = vcmp.lt.s32.totalorder %v160, 7
    %162 = vst.msk [vmem:[%s149] sm:$0xff] %vm161, %v158
    %s163 = scalar_lea.vmem [#allocation1], 40
    %s164 = scalar_lea.vmem [#allocation0], 80
    %s165 = scalar_lea.vmem %s164, 7 [#allocation0]
    %v166 = vld [vmem:[%s165] ss:$-1 sm:$0xff]
    %v167 = vrot.slane %v166, 1
    %168 = vst [vmem:[%s163] sm:$0xff] %v167
    %s169 = scalar_lea.vmem %s164, 8 [#allocation0]
    %s170 = scalar_lea.vmem %s169, 7 [#allocation0]
    %v171 = vld [vmem:[%s170] ss:$-1 sm:$0xff]
    %v172 = vrot.slane %v171, 1
    %v173 = vlaneseq
    %v174 = vshrl.u32 %v173, 7
    %vm175 = vcmp.lt.s32.totalorder %v174, 7
    %176 = vst.msk [vmem:[%s163] sm:$0xff] %vm175, %v172
    %s177 = scalar_lea.vmem [#allocation1], 48
    %s178 = scalar_lea.vmem [#allocation0], 96
    %s179 = scalar_lea.vmem %s178, 7 [#allocation0]
    %v180 = vld [vmem:[%s179] ss:$-1 sm:$0xff]
    %v181 = vrot.slane %v180, 1
    %182 = vst [vmem:[%s177] sm:$0xff] %v181
    %s183 = scalar_lea.vmem %s178, 8 [#allocation0]
    %s184 = scalar_lea.vmem %s183, 7 [#allocation0]
    %v185 = vld [vmem:[%s184] ss:$-1 sm:$0xff]
    %v186 = vrot.slane %v185, 1
    %v187 = vlaneseq
    %v188 = vshrl.u32 %v187, 7
    %vm189 = vcmp.lt.s32.totalorder %v188, 7
    %190 = vst.msk [vmem:[%s177] sm:$0xff] %vm189, %v186
    %s191 = scalar_lea.vmem [#allocation1], 56
    %s192 = scalar_lea.vmem [#allocation0], 112
    %s193 = scalar_lea.vmem %s192, 7 [#allocation0]
    %v194 = vld [vmem:[%s193] ss:$-1 sm:$0xff]
    %v195 = vrot.slane %v194, 1
    %196 = vst [vmem:[%s191] sm:$0xff] %v195
    %s197 = scalar_lea.vmem %s192, 8 [#allocation0]
    %s198 = scalar_lea.vmem %s197, 7 [#allocation0]
    %v199 = vld [vmem:[%s198] ss:$-1 sm:$0xff]
    %v200 = vrot.slane %v199, 1
    %v201 = vlaneseq
    %v202 = vshrl.u32 %v201, 7
    %vm203 = vcmp.lt.s32.totalorder %v202, 7
    %204 = vst.msk [vmem:[%s191] sm:$0xff] %vm203, %v200
    %s205 = scalar_lea.vmem [#allocation1], 64
    %s206 = scalar_lea.vmem [#allocation0], 128
    %s207 = scalar_lea.vmem %s206, 7 [#allocation0]
    %v208 = vld [vmem:[%s207] ss:$-1 sm:$0xff]
    %v209 = vrot.slane %v208, 1
    %210 = vst [vmem:[%s205] sm:$0xff] %v209
    %s211 = scalar_lea.vmem %s206, 8 [#allocation0]
    %s212 = scalar_lea.vmem %s211, 7 [#allocation0]
    %v213 = vld [vmem:[%s212] ss:$-1 sm:$0xff]
    %v214 = vrot.slane %v213, 1
    %v215 = vlaneseq
    %v216 = vshrl.u32 %v215, 7
    %vm217 = vcmp.lt.s32.totalorder %v216, 7
    %218 = vst.msk [vmem:[%s205] sm:$0xff] %vm217, %v214
    %s219 = scalar_lea.vmem [#allocation1], 72
    %s220 = scalar_lea.vmem [#allocation0], 144
    %s221 = scalar_lea.vmem %s220, 7 [#allocation0]
    %v222 = vld [vmem:[%s221] ss:$-1 sm:$0xff]
    %v223 = vrot.slane %v222, 1
    %224 = vst [vmem:[%s219] sm:$0xff] %v223
    %s225 = scalar_lea.vmem %s220, 8 [#allocation0]
    %s226 = scalar_lea.vmem %s225, 7 [#allocation0]
    %v227 = vld [vmem:[%s226] ss:$-1 sm:$0xff]
    %v228 = vrot.slane %v227, 1
    %v229 = vlaneseq
    %v230 = vshrl.u32 %v229, 7
    %vm231 = vcmp.lt.s32.totalorder %v230, 7
    %232 = vst.msk [vmem:[%s219] sm:$0xff] %vm231, %v228
    %s233 = scalar_lea.vmem [#allocation1], 80
    %s234 = scalar_lea.vmem [#allocation0], 160
    %s235 = scalar_lea.vmem %s234, 7 [#allocation0]
    %v236 = vld [vmem:[%s235] ss:$-1 sm:$0xff]
    %v237 = vrot.slane %v236, 1
    %238 = vst [vmem:[%s233] sm:$0xff] %v237
    %s239 = scalar_lea.vmem %s234, 8 [#allocation0]
    %s240 = scalar_lea.vmem %s239, 7 [#allocation0]
    %v241 = vld [vmem:[%s240] ss:$-1 sm:$0xff]
    %v242 = vrot.slane %v241, 1
    %v243 = vlaneseq
    %v244 = vshrl.u32 %v243, 7
    %vm245 = vcmp.lt.s32.totalorder %v244, 7
    %246 = vst.msk [vmem:[%s233] sm:$0xff] %vm245, %v242
    %s247 = scalar_lea.vmem [#allocation1], 88
    %s248 = scalar_lea.vmem [#allocation0], 176
    %s249 = scalar_lea.vmem %s248, 7 [#allocation0]
    %v250 = vld [vmem:[%s249] ss:$-1 sm:$0xff]
    %v251 = vrot.slane %v250, 1
    %252 = vst [vmem:[%s247] sm:$0xff] %v251
    %s253 = scalar_lea.vmem %s248, 8 [#allocation0]
    %s254 = scalar_lea.vmem %s253, 7 [#allocation0]
    %v255 = vld [vmem:[%s254] ss:$-1 sm:$0xff]
    %v256 = vrot.slane %v255, 1
    %v257 = vlaneseq
    %v258 = vshrl.u32 %v257, 7
    %vm259 = vcmp.lt.s32.totalorder %v258, 7
    %260 = vst.msk [vmem:[%s247] sm:$0xff] %vm259, %v256
    %s261 = scalar_lea.vmem [#allocation1], 96
    %s262 = scalar_lea.vmem [#allocation0], 192
    %s263 = scalar_lea.vmem %s262, 7 [#allocation0]
    %v264 = vld [vmem:[%s263] ss:$-1 sm:$0xff]
    %v265 = vrot.slane %v264, 1
    %266 = vst [vmem:[%s261] sm:$0xff] %v265
    %s267 = scalar_lea.vmem %s262, 8 [#allocation0]
    %s268 = scalar_lea.vmem %s267, 7 [#allocation0]
    %v269 = vld [vmem:[%s268] ss:$-1 sm:$0xff]
    %v270 = vrot.slane %v269, 1
    %v271 = vlaneseq
    %v272 = vshrl.u32 %v271, 7
    %vm273 = vcmp.lt.s32.totalorder %v272, 7
    %274 = vst.msk [vmem:[%s261] sm:$0xff] %vm273, %v270
    %s275 = scalar_lea.vmem [#allocation1], 104
    %s276 = scalar_lea.vmem [#allocation0], 208
    %s277 = scalar_lea.vmem %s276, 7 [#allocation0]
    %v278 = vld [vmem:[%s277] ss:$-1 sm:$0xff]
    %v279 = vrot.slane %v278, 1
    %280 = vst [vmem:[%s275] sm:$0xff] %v279
    %s281 = scalar_lea.vmem %s276, 8 [#allocation0]
    %s282 = scalar_lea.vmem %s281, 7 [#allocation0]
    %v283 = vld [vmem:[%s282] ss:$-1 sm:$0xff]
    %v284 = vrot.slane %v283, 1
    %v285 = vlaneseq
    %v286 = vshrl.u32 %v285, 7
    %vm287 = vcmp.lt.s32.totalorder %v286, 7
    %288 = vst.msk [vmem:[%s275] sm:$0xff] %vm287, %v284
    %s289 = scalar_lea.vmem [#allocation1], 112
    %s290 = scalar_lea.vmem [#allocation0], 224
    %s291 = scalar_lea.vmem %s290, 7 [#allocation0]
    %v292 = vld [vmem:[%s291] ss:$-1 sm:$0xff]
    %v293 = vrot.slane %v292, 1
    %294 = vst [vmem:[%s289] sm:$0xff] %v293
    %s295 = scalar_lea.vmem %s290, 8 [#allocation0]
    %s296 = scalar_lea.vmem %s295, 7 [#allocation0]
    %v297 = vld [vmem:[%s296] ss:$-1 sm:$0xff]
    %v298 = vrot.slane %v297, 1
    %v299 = vlaneseq
    %v300 = vshrl.u32 %v299, 7
    %vm301 = vcmp.lt.s32.totalorder %v300, 7
    %302 = vst.msk [vmem:[%s289] sm:$0xff] %vm301, %v298
    %s303 = scalar_lea.vmem [#allocation1], 120
    %s304 = scalar_lea.vmem [#allocation0], 240
    %s305 = scalar_lea.vmem %s304, 7 [#allocation0]
    %v306 = vld [vmem:[%s305] ss:$-1 sm:$0xff]
    %v307 = vrot.slane %v306, 1
    %308 = vst [vmem:[%s303] sm:$0xff] %v307
    %s309 = scalar_lea.vmem %s304, 8 [#allocation0]
    %s310 = scalar_lea.vmem %s309, 7 [#allocation0]
    %v311 = vld [vmem:[%s310] ss:$-1 sm:$0xff]
    %v312 = vrot.slane %v311, 1
    %v313 = vlaneseq
    %v314 = vshrl.u32 %v313, 7
    %vm315 = vcmp.lt.s32.totalorder %v314, 7
    %316 = vst.msk [vmem:[%s303] sm:$0xff] %vm315, %v312
    // Predicated region
    $region36: #{reverse.5} parent=1 // pred_check
      _
    $region37: #{reverse.5} parent=1 // pred_check_branch
      %318 = sbr.rel (0) target = $region39
    $region38: #{reverse.5} parent=1 // pred_region
      // Predicated region
      $region40: #{reverse.5} parent=38 // pred_check
        _
      $region41: #{reverse.5} parent=38 // pred_check_branch
        %320 = sbr.rel (0) target = $region43
      $region42: #{reverse.5} parent=38 // pred_region
        // Predicated region
        $region55: #{reverse.5} parent=42 // pred_check
          _
        $region56: #{reverse.5} parent=42 // pred_check_branch
          %365 = sbr.rel (0) target = $region58
        $region57: #{reverse.5} parent=42 // pred_region
          loop: start=0, step=1, limit=1
          $region59: #{reverse.5} parent=57 // loop_pre_header
            _
          $region60: #{reverse.5} parent=57 // loop_header
            %s367 = sphi 0, %s371
            %p368 = scmp.ge.s32.totalorder %s367, 1
            %s372 = sphi [#allocation1], [#allocation1]
            %s373 = sphi %s1, %s1
          $region61: #{reverse.5} parent=57 // loop_header_branch
            %370 = sbr.rel (%p368) target = $region65
          $region62: #{reverse.5} parent=57 // loop_body
            %v374 = vld [vmem:[%s372] sm:$0xff]
            %375 = vst [vmem:[%s373] sm:$0xff] %v374
            %v376 = vld [vmem:[%s372 + $0x8] sm:$0xff]
            %377 = vst [vmem:[%s373 + $0x8] sm:$0xff] %v376
            %v378 = vld [vmem:[%s372 + $0x10] sm:$0xff]
            %379 = vst [vmem:[%s373 + $0x10] sm:$0xff] %v378
            %v380 = vld [vmem:[%s372 + $0x18] sm:$0xff]
            %381 = vst [vmem:[%s373 + $0x18] sm:$0xff] %v380
            %v382 = vld [vmem:[%s372 + $0x20] sm:$0xff]
            %383 = vst [vmem:[%s373 + $0x20] sm:$0xff] %v382
            %v384 = vld [vmem:[%s372 + $0x28] sm:$0xff]
            %385 = vst [vmem:[%s373 + $0x28] sm:$0xff] %v384
            %v386 = vld [vmem:[%s372 + $0x30] sm:$0xff]
            %387 = vst [vmem:[%s373 + $0x30] sm:$0xff] %v386
            %v388 = vld [vmem:[%s372 + $0x38] sm:$0xff]
            %389 = vst [vmem:[%s373 + $0x38] sm:$0xff] %v388
            %v390 = vld [vmem:[%s372 + $0x40] sm:$0xff]
            %391 = vst [vmem:[%s373 + $0x40] sm:$0xff] %v390
            %v392 = vld [vmem:[%s372 + $0x48] sm:$0xff]
            %393 = vst [vmem:[%s373 + $0x48] sm:$0xff] %v392
            %v394 = vld [vmem:[%s372 + $0x50] sm:$0xff]
            %395 = vst [vmem:[%s373 + $0x50] sm:$0xff] %v394
            %v396 = vld [vmem:[%s372 + $0x58] sm:$0xff]
            %397 = vst [vmem:[%s373 + $0x58] sm:$0xff] %v396
            %v398 = vld [vmem:[%s372 + $0x60] sm:$0xff]
            %399 = vst [vmem:[%s373 + $0x60] sm:$0xff] %v398
            %v400 = vld [vmem:[%s372 + $0x68] sm:$0xff]
            %401 = vst [vmem:[%s373 + $0x68] sm:$0xff] %v400
            %v402 = vld [vmem:[%s372 + $0x70] sm:$0xff]
            %403 = vst [vmem:[%s373 + $0x70] sm:$0xff] %v402
            %v404 = vld [vmem:[%s372 + $0x78] sm:$0xff]
            %405 = vst [vmem:[%s373 + $0x78] sm:$0xff] %v404
          $region63: #{reverse.5} parent=57 // loop_footer
            %s371 = sadd.s32 1, %s367
          $region64: #{reverse.5} parent=57 // loop_footer_branch
            %366 = sbr.rel target = $region60
          $region65: #{reverse.5} parent=57 // loop_exit
            _
        $region58: #{reverse.5} parent=42 // pred_fallthru
          _
        // Predicated region
        $region66: #{reverse.5} parent=42 // pred_check
          _
        $region67: #{reverse.5} parent=42 // pred_check_branch
          %407 = sbr.rel target = $region69
        $region68: #{reverse.5} parent=42 // pred_region
          _
        $region69: #{reverse.5} parent=42 // pred_fallthru
          _
      $region43: #{reverse.5} parent=38 // pred_fallthru
        _
      // Predicated region
      $region44: #{reverse.5} parent=38 // pred_check
        _
      $region45: #{reverse.5} parent=38 // pred_check_branch
        %322 = sbr.rel target = $region47
      $region46: #{reverse.5} parent=38 // pred_region
        loop: start=0, step=1, limit=1
        $region48: #{reverse.5} parent=46 // loop_pre_header
          _
        $region49: #{reverse.5} parent=46 // loop_header
          %s325 = sphi 0, %s329
          %p326 = scmp.ge.s32.totalorder %s325, 1
          %s330 = sphi [#allocation1], [#allocation1]
          %s331 = sphi %s1, %s1
        $region50: #{reverse.5} parent=46 // loop_header_branch
          %328 = sbr.rel (%p326) target = $region54
        $region51: #{reverse.5} parent=46 // loop_body
          %v332 = vld [vmem:[%s330] sm:$0xff]
          %333 = vst [vmem:[%s331] sm:$0xff] %v332
          %v334 = vld [vmem:[%s330 + $0x8] sm:$0xff]
          %335 = vst [vmem:[%s331 + $0x8] sm:$0xff] %v334
          %v336 = vld [vmem:[%s330 + $0x10] sm:$0xff]
          %337 = vst [vmem:[%s331 + $0x10] sm:$0xff] %v336
          %v338 = vld [vmem:[%s330 + $0x18] sm:$0xff]
          %339 = vst [vmem:[%s331 + $0x18] sm:$0xff] %v338
          %v340 = vld [vmem:[%s330 + $0x20] sm:$0xff]
          %341 = vst [vmem:[%s331 + $0x20] sm:$0xff] %v340
          %v342 = vld [vmem:[%s330 + $0x28] sm:$0xff]
          %343 = vst [vmem:[%s331 + $0x28] sm:$0xff] %v342
          %v344 = vld [vmem:[%s330 + $0x30] sm:$0xff]
          %345 = vst [vmem:[%s331 + $0x30] sm:$0xff] %v344
          %v346 = vld [vmem:[%s330 + $0x38] sm:$0xff]
          %347 = vst [vmem:[%s331 + $0x38] sm:$0xff] %v346
          %v348 = vld [vmem:[%s330 + $0x40] sm:$0xff]
          %349 = vst [vmem:[%s331 + $0x40] sm:$0xff] %v348
          %v350 = vld [vmem:[%s330 + $0x48] sm:$0xff]
          %351 = vst [vmem:[%s331 + $0x48] sm:$0xff] %v350
          %v352 = vld [vmem:[%s330 + $0x50] sm:$0xff]
          %353 = vst [vmem:[%s331 + $0x50] sm:$0xff] %v352
          %v354 = vld [vmem:[%s330 + $0x58] sm:$0xff]
          %355 = vst [vmem:[%s331 + $0x58] sm:$0xff] %v354
          %v356 = vld [vmem:[%s330 + $0x60] sm:$0xff]
          %357 = vst [vmem:[%s331 + $0x60] sm:$0xff] %v356
          %v358 = vld [vmem:[%s330 + $0x68] sm:$0xff]
          %359 = vst [vmem:[%s331 + $0x68] sm:$0xff] %v358
          %v360 = vld [vmem:[%s330 + $0x70] sm:$0xff]
          %361 = vst [vmem:[%s331 + $0x70] sm:$0xff] %v360
          %v362 = vld [vmem:[%s330 + $0x78] sm:$0xff]
          %363 = vst [vmem:[%s331 + $0x78] sm:$0xff] %v362
        $region52: #{reverse.5} parent=46 // loop_footer
          %s329 = sadd.s32 1, %s325
        $region53: #{reverse.5} parent=46 // loop_footer_branch
          %324 = sbr.rel target = $region49
        $region54: #{reverse.5} parent=46 // loop_exit
          _
      $region47: #{reverse.5} parent=38 // pred_fallthru
        _
    $region39: #{reverse.5} parent=1 // pred_fallthru
      _
    %408 = vnop

// kernel: fft_res_block.5
$region0: #{fft_res_block.5}
  #allocation0 [shape = 'u32[]', space=smem, size = 0x4, offset = 0x4, fixed_abs, tag = 'smem constant byte address 0x4 - core index']
  #allocation1 [shape = 'u32[144,128]{1,0:T(1,128)}', space=vmem, size = 0x12000, scoped, tag = 'internal scratch']
  %s0 = inlined_call_operand.vmem [shape: f32[2,8,256], index: 0, kind: input, shape index: {}]
  %s1 = inlined_call_operand.vmem [shape: f32[8,1], index: 1, kind: input, shape index: {}]
  %s2 = inlined_call_operand.vmem [shape: f32[8,1], index: 2, kind: input, shape index: {}]
  %s3 = inlined_call_operand.vmem [shape: f32[2,8,256], index: 3, kind: output, shape index: {}]
  %s4 = sld [smem:[#allocation0]]
  $region22: #{fft_res_block.5} parent=0
    _
  %s6 = ssub.s32 1, %s4
  %s7 = scalar_select 0, %s6, %s4
  // Predicated region
  $region2: #{fft_res_block.5} parent=0 // pred_check
    _
  $region3: #{fft_res_block.5} parent=0 // pred_check_branch
    %9 = sbr.rel (0) target = $region5
  $region4: #{fft_res_block.5} parent=0 // pred_region
    _
  $region5: #{fft_res_block.5} parent=0 // pred_fallthru
    _
  // Predicated region
  $region6: #{fft_res_block.5} parent=0 // pred_check
    _
  $region7: #{fft_res_block.5} parent=0 // pred_check_branch
    %11 = sbr.rel (0) target = $region9
  $region8: #{fft_res_block.5} parent=0 // pred_region
    _
  $region9: #{fft_res_block.5} parent=0 // pred_fallthru
    _
  // Predicated region
  $region10: #{fft_res_block.5} parent=0 // pred_check
    _
  $region11: #{fft_res_block.5} parent=0 // pred_check_branch
    %13 = sbr.rel (0) target = $region13
  $region12: #{fft_res_block.5} parent=0 // pred_region
    _
  $region13: #{fft_res_block.5} parent=0 // pred_fallthru
    _
  %v14 = vld [vmem:[%s0] sm:$0xff]
  %v15 = vld [vmem:[%s0 + $0x8] sm:$0xff]
  %v16 = vld [vmem:[%s0 + $0x10] sm:$0xff]
  %v17 = vld [vmem:[%s0 + $0x18] sm:$0xff]
  %v18 = vadd.f32 %v14, %v15
  %19 = vadd.xlane.f32.xlu0 %v18
  %v20 = vpop.xlane.xlu0 %19
  %v21 = vadd.f32 %v16, %v17
  %22 = vadd.xlane.f32.xlu0 %v21
  %v23 = vpop.xlane.xlu0 %22
  %v24 = vadd.f32 %v20, %v23
  %v25 = vrcp.pop 512.0
  %v26 = vmul.f32 %v24, %v25
  %v27 = vsub.f32 %v14, %v26
  %v28 = vsub.f32 %v15, %v26
  %v29 = vsub.f32 %v16, %v26
  %v30 = vsub.f32 %v17, %v26
  %v31 = vmul.f32 %v27, %v27
  %v32 = vmul.f32 %v28, %v28
  %v33 = vmul.f32 %v29, %v29
  %v34 = vmul.f32 %v30, %v30
  %v35 = vadd.f32 %v31, %v32
  %36 = vadd.xlane.f32.xlu0 %v35
  %v37 = vpop.xlane.xlu0 %36
  %v38 = vadd.f32 %v33, %v34
  %39 = vadd.xlane.f32.xlu0 %v38
  %v40 = vpop.xlane.xlu0 %39
  %v41 = vadd.f32 %v37, %v40
  %v42 = vmul.f32 %v41, %v25
  %v43 = vadd.f32 %v42, 1e-05
  %v44 = vrsqrt.pop %v43
  %v45 = vmul.f32 %v27, %v44
  %v46 = vmul.f32 %v28, %v44
  %v47 = vmul.f32 %v29, %v44
  %v48 = vmul.f32 %v30, %v44
  %v49 = vld [vmem:[%s1] sm:$0xff]
  %51 = vset.pattern.permute.xlu0 0
  %52 = vperm.xlu0 %51, %v49
  %v53 = vpop.permute.xlu0 %52
  %v55 = vmul.f32 %v45, %v53
  %v56 = vmul.f32 %v46, %v53
  %v57 = vmul.f32 %v47, %v53
  %v58 = vmul.f32 %v48, %v53
  %v59 = vld [vmem:[%s2] sm:$0xff]
  %61 = vset.pattern.permute.xlu0 0
  %62 = vperm.xlu0 %61, %v59
  %v63 = vpop.permute.xlu0 %62
  %v65 = vadd.f32 %v55, %v63
  %v66 = vadd.f32 %v56, %v63
  %v67 = vadd.f32 %v57, %v63
  %v68 = vadd.f32 %v58, %v63
  %v69 = vmax.f32 %v65, 0.0
  %v70 = vmax.f32 %v66, 0.0
  %v71 = vmax.f32 %v67, 0.0
  %v72 = vmax.f32 %v68, 0.0
  %73 = vst [vmem:[%s3] sm:$0xff] %v69
  %74 = vst [vmem:[%s3 + $0x8] sm:$0xff] %v70
  %75 = vst [vmem:[%s3 + $0x10] sm:$0xff] %v71
  %76 = vst [vmem:[%s3 + $0x18] sm:$0xff] %v72
  // Predicated region
  $region14: #{fft_res_block.5} parent=0 // pred_check
    _
  $region15: #{fft_res_block.5} parent=0 // pred_check_branch
    %78 = sbr.rel (0) target = $region17
  $region16: #{fft_res_block.5} parent=0 // pred_region
    _
  $region17: #{fft_res_block.5} parent=0 // pred_fallthru
    _
  // Predicated region
  $region18: #{fft_res_block.5} parent=0 // pred_check
    _
  $region19: #{fft_res_block.5} parent=0 // pred_check_branch
    %80 = sbr.rel (0) target = $region21
  $region20: #{fft_res_block.5} parent=0 // pred_region
    _
  $region21: #{fft_res_block.5} parent=0 // pred_fallthru
    _

// kernel: fft_res_block.6
$region0: #{fft_res_block.6}
  #allocation0 [shape = 'u32[]', space=smem, size = 0x4, offset = 0x4, fixed_abs, tag = 'smem constant byte address 0x4 - core index']
  #allocation1 [shape = 'u32[144,128]{1,0:T(1,128)}', space=vmem, size = 0x12000, scoped, tag = 'internal scratch']
  %s0 = inlined_call_operand.vmem [shape: f32[2,8,256], index: 0, kind: input, shape index: {}]
  %s1 = inlined_call_operand.vmem [shape: f32[2,8,256], index: 1, kind: input, shape index: {}]
  %s2 = inlined_call_operand.vmem [shape: f32[8,8,256], index: 2, kind: input, shape index: {}]
  %s3 = inlined_call_operand.vmem [shape: f32[8,8,256], index: 3, kind: input, shape index: {}]
  %s4 = inlined_call_operand.vmem [shape: f32[2,8,256], index: 4, kind: output, shape index: {0}]
  %s5 = inlined_call_operand.vmem [shape: f32[2,8,256], index: 5, kind: output, shape index: {1}]
  %6 = xla_tuple %s4, %s5
  %s7 = sld [smem:[#allocation0]]
  $region61: #{fft_res_block.6} parent=0
    _
  %s9 = ssub.s32 1, %s7
  %s10 = scalar_select 0, %s9, %s7
  loop: start=0, step=1, limit=4
  $region2: #{fft_res_block.6} parent=0 // loop_pre_header
    _
  $region3: #{fft_res_block.6} parent=0 // loop_header
    %s12 = sphi 0, %s16
    %p13 = scmp.ge.s32.totalorder %s12, 4
    %s19 = sphi 0, %s45
    %s20 = sphi 0, %s41
    %s21 = sphi 0, %s37
    %s22 = sphi 0, %s33
    %s23 = sphi 0, %s19
    %s24 = sphi 0, %s20
    %s25 = sphi 0, %s21
    %s26 = sphi 0, %s22
    %s27 = sphi 0, %s23
    %s28 = sphi 0, %s24
    %s29 = sphi 0, %s25
    %s30 = sphi 0, %s26
    %s52 = sphi 0, %s54
    %s55 = sphi 0, %s52
    %s56 = sphi 0, %s55
    %s72 = sphi 0, %s56
    %s82 = sphi 0, %s84
    %s85 = sphi 0, %s82
    %s86 = sphi 0, %s85
    %s102 = sphi 0, %s86
    %s112 = sphi 0, %s114
    %s115 = sphi 0, %s112
    %s116 = sphi 0, %s115
    %s132 = sphi 0, %s116
    %s142 = sphi 0, %s144
    %s145 = sphi 0, %s142
    %s146 = sphi 0, %s145
    %s162 = sphi 0, %s146
    %s172 = sphi 0, %s174
    %s175 = sphi 0, %s172
    %s176 = sphi 0, %s175
    %s192 = sphi 0, %s176
    %s202 = sphi 0, %s204
    %s205 = sphi 0, %s202
    %s206 = sphi 0, %s205
    %s222 = sphi 0, %s206
  $region4: #{fft_res_block.6} parent=0 // loop_header_branch
    %15 = sbr.rel (%p13) target = $region8
  $region5: #{fft_res_block.6} parent=0 // loop_body
    %s17 = ssub.s32 %s12, 1
    %s18 = ssub.s32 %s12, 2
    %s31 = sadd.s32 1, %s22
    %p32 = scmp.ge.s32.totalorder %s31, 1
    %s33 = scalar_select %p32, 0, %s31
    %s34 = sadd.s32 1, %s21
    %s35 = scalar_select %p32, %s34, %s21
    %p36 = scmp.ge.s32.totalorder %s35, 1
    %s37 = scalar_select %p36, 0, %s35
    %s38 = sadd.s32 1, %s20
    %s39 = scalar_select %p36, %s38, %s20
    %p40 = scmp.ge.s32.totalorder %s39, 1
    %s41 = scalar_select %p40, 0, %s39
    %s42 = sadd.s32 1, %s19
    %s43 = scalar_select %p40, %s42, %s19
    %p44 = scmp.ge.s32.totalorder %s43, 2
    %s45 = scalar_select %p44, 0, %s43
    %s46 = ssub.s32 %s19, %s45
    %s47 = ssub.s32 %s22, %s33
    %s48 = sor.u32 %s46, %s47
    %s49 = ssub.s32 %s21, %s37
    %s50 = sor.u32 %s48, %s49
    %p51 = scmp.eq.s32.totalorder %s50, 0
    %s53 = sadd.s32 %s52, 1
    %s54 = scalar_select %p51, %s52, %s53
    %p57 = pneg %p51
    %p58 = scmp.eq.s32.totalorder %s12, 1
    %p59 = por %p57, %p58
    %p60 = scmp.ne.s32.totalorder %s52, %s55
    %p61 = scmp.eq.s32.totalorder %s12, 0
    %p62 = por %p60, %p61
    %p63 = scmp.ne.s32.totalorder %s52, %s55
    %p64 = scmp.eq.s32.totalorder %s17, 1
    %p65 = por %p63, %p64
    %p66 = scmp.ne.s32.totalorder %s55, %s56
    %p67 = scmp.eq.s32.totalorder %s17, 0
    %p68 = por %p66, %p67
    %p69 = scmp.ne.s32.totalorder %s55, %s56
    %p70 = scmp.eq.s32.totalorder %s18, 1
    %p71 = por %p69, %p70
    %p73 = scmp.ne.s32.totalorder %s56, %s72
    %p74 = scmp.eq.s32.totalorder %s18, 0
    %p75 = por %p73, %p74
    %s76 = ssub.s32 %s19, %s45
    %s77 = ssub.s32 %s22, %s33
    %s78 = sor.u32 %s76, %s77
    %s79 = ssub.s32 %s21, %s37
    %s80 = sor.u32 %s78, %s79
    %p81 = scmp.eq.s32.totalorder %s80, 0
    %s83 = sadd.s32 %s82, 1
    %s84 = scalar_select %p81, %s82, %s83
    %p87 = pneg %p81
    %p88 = scmp.eq.s32.totalorder %s12, 1
    %p89 = por %p87, %p88
    %p90 = scmp.ne.s32.totalorder %s82, %s85
    %p91 = scmp.eq.s32.totalorder %s12, 0
    %p92 = por %p90, %p91
    %p93 = scmp.ne.s32.totalorder %s82, %s85
    %p94 = scmp.eq.s32.totalorder %s17, 1
    %p95 = por %p93, %p94
    %p96 = scmp.ne.s32.totalorder %s85, %s86
    %p97 = scmp.eq.s32.totalorder %s17, 0
    %p98 = por %p96, %p97
    %p99 = scmp.ne.s32.totalorder %s85, %s86
    %p100 = scmp.eq.s32.totalorder %s18, 1
    %p101 = por %p99, %p100
    %p103 = scmp.ne.s32.totalorder %s86, %s102
    %p104 = scmp.eq.s32.totalorder %s18, 0
    %p105 = por %p103, %p104
    %s106 = ssub.s32 %s22, %s33
    %s107 = ssub.s32 %s20, %s41
    %s108 = sor.u32 %s106, %s107
    %s109 = ssub.s32 %s21, %s37
    %s110 = sor.u32 %s108, %s109
    %p111 = scmp.eq.s32.totalorder %s110, 0
    %s113 = sadd.s32 %s112, 1
    %s114 = scalar_select %p111, %s112, %s113
    %p117 = pneg %p111
    %p118 = scmp.eq.s32.totalorder %s12, 1
    %p119 = por %p117, %p118
    %p120 = scmp.ne.s32.totalorder %s112, %s115
    %p121 = scmp.eq.s32.totalorder %s12, 0
    %p122 = por %p120, %p121
    %p123 = scmp.ne.s32.totalorder %s112, %s115
    %p124 = scmp.eq.s32.totalorder %s17, 1
    %p125 = por %p123, %p124
    %p126 = scmp.ne.s32.totalorder %s115, %s116
    %p127 = scmp.eq.s32.totalorder %s17, 0
    %p128 = por %p126, %p127
    %p129 = scmp.ne.s32.totalorder %s115, %s116
    %p130 = scmp.eq.s32.totalorder %s18, 1
    %p131 = por %p129, %p130
    %p133 = scmp.ne.s32.totalorder %s116, %s132
    %p134 = scmp.eq.s32.totalorder %s18, 0
    %p135 = por %p133, %p134
    %s136 = ssub.s32 %s22, %s33
    %s137 = ssub.s32 %s20, %s41
    %s138 = sor.u32 %s136, %s137
    %s139 = ssub.s32 %s21, %s37
    %s140 = sor.u32 %s138, %s139
    %p141 = scmp.eq.s32.totalorder %s140, 0
    %s143 = sadd.s32 %s142, 1
    %s144 = scalar_select %p141, %s142, %s143
    %p147 = pneg %p141
    %p148 = scmp.eq.s32.totalorder %s12, 1
    %p149 = por %p147, %p148
    %p150 = scmp.ne.s32.totalorder %s142, %s145
    %p151 = scmp.eq.s32.totalorder %s12, 0
    %p152 = por %p150, %p151
    %p153 = scmp.ne.s32.totalorder %s142, %s145
    %p154 = scmp.eq.s32.totalorder %s17, 1
    %p155 = por %p153, %p154
    %p156 = scmp.ne.s32.totalorder %s145, %s146
    %p157 = scmp.eq.s32.totalorder %s17, 0
    %p158 = por %p156, %p157
    %p159 = scmp.ne.s32.totalorder %s145, %s146
    %p160 = scmp.eq.s32.totalorder %s18, 1
    %p161 = por %p159, %p160
    %p163 = scmp.ne.s32.totalorder %s146, %s162
    %p164 = scmp.eq.s32.totalorder %s18, 0
    %p165 = por %p163, %p164
    %s166 = ssub.s32 %s19, %s45
    %s167 = ssub.s32 %s20, %s41
    %s168 = sor.u32 %s166, %s167
    %s169 = ssub.s32 %s21, %s37
    %s170 = sor.u32 %s168, %s169
    %p171 = scmp.eq.s32.totalorder %s170, 0
    %s173 = sadd.s32 %s172, 1
    %s174 = scalar_select %p171, %s172, %s173
    %p177 = pneg %p171
    %p178 = scmp.eq.s32.totalorder %s12, 1
    %p179 = por %p177, %p178
    %p180 = scmp.ne.s32.totalorder %s172, %s175
    %p181 = scmp.eq.s32.totalorder %s12, 0
    %p182 = por %p180, %p181
    %p183 = scmp.ne.s32.totalorder %s172, %s175
    %p184 = scmp.eq.s32.totalorder %s17, 1
    %p185 = por %p183, %p184
    %p186 = scmp.ne.s32.totalorder %s175, %s176
    %p187 = scmp.eq.s32.totalorder %s17, 0
    %p188 = por %p186, %p187
    %p189 = scmp.ne.s32.totalorder %s175, %s176
    %p190 = scmp.eq.s32.totalorder %s18, 1
    %p191 = por %p189, %p190
    %p193 = scmp.ne.s32.totalorder %s176, %s192
    %p194 = scmp.eq.s32.totalorder %s18, 0
    %p195 = por %p193, %p194
    %s196 = ssub.s32 %s19, %s45
    %s197 = ssub.s32 %s20, %s41
    %s198 = sor.u32 %s196, %s197
    %s199 = ssub.s32 %s21, %s37
    %s200 = sor.u32 %s198, %s199
    %p201 = scmp.eq.s32.totalorder %s200, 0
    %s203 = sadd.s32 %s202, 1
    %s204 = scalar_select %p201, %s202, %s203
    %p207 = pneg %p201
    %p208 = scmp.eq.s32.totalorder %s12, 1
    %p209 = por %p207, %p208
    %p210 = scmp.ne.s32.totalorder %s202, %s205
    %p211 = scmp.eq.s32.totalorder %s12, 0
    %p212 = por %p210, %p211
    %p213 = scmp.ne.s32.totalorder %s202, %s205
    %p214 = scmp.eq.s32.totalorder %s17, 1
    %p215 = por %p213, %p214
    %p216 = scmp.ne.s32.totalorder %s205, %s206
    %p217 = scmp.eq.s32.totalorder %s17, 0
    %p218 = por %p216, %p217
    %p219 = scmp.ne.s32.totalorder %s205, %s206
    %p220 = scmp.eq.s32.totalorder %s18, 1
    %p221 = por %p219, %p220
    %p223 = scmp.ne.s32.totalorder %s206, %s222
    %p224 = scmp.eq.s32.totalorder %s18, 0
    %p225 = por %p223, %p224
    %p226 = scmp.le.s32.totalorder 1, %s12
    %p227 = scmp.lt.s32.totalorder %s12, 3
    %p228 = pnand %p226, %p227
    %p229 = pneg %p228
    // Predicated region
    $region9: #{fft_res_block.6} parent=5 // pred_check
      _
    $region10: #{fft_res_block.6} parent=5 // pred_check_branch
      %231 = sbr.rel (%p228) target = $region12
    $region11: #{fft_res_block.6} parent=5 // pred_region
      %s232 = ssub.s32 %s12, 1
      // Predicated region
      $region13: #{fft_res_block.6} parent=11 // pred_check
        %p233 = pneg %p128
      $region14: #{fft_res_block.6} parent=11 // pred_check_branch
        %235 = sbr.rel (%p233) target = $region16
      $region15: #{fft_res_block.6} parent=11 // pred_region
        %s236 = smul.u32 8, %s26
        %s237 = smul.u32 2, %s25
        %p238 = scmp.lt.s32.totalorder %s236, 7
        %s239 = scalar_select %p238, %s236, 7
        %p240 = scmp.lt.s32.totalorder %s24, 0
        %s241 = scalar_select %p240, %s24, 0
        %p242 = scmp.lt.s32.totalorder %s237, 1
        %s243 = scalar_select %p242, %s237, 1
        %s244 = smul.addr %s241, 2
        %s245 = sadd.s32 %s243, %s244
        %s246 = smul.addr %s239, 2
        %s247 = sadd.s32 %s245, %s246
        %s248 = smul.addr %s247, 8
        %s249 = scalar_lea.vmem %s2, %s248
        %s250 = smul.u32 8, %s26
        %s251 = smul.u32 2, %s25
      $region16: #{fft_res_block.6} parent=11 // pred_fallthru
        _
      // Predicated region
      $region17: #{fft_res_block.6} parent=11 // pred_check
        %p252 = pneg %p158
      $region18: #{fft_res_block.6} parent=11 // pred_check_branch
        %254 = sbr.rel (%p252) target = $region20
      $region19: #{fft_res_block.6} parent=11 // pred_region
        %s255 = smul.u32 8, %s26
        %s256 = smul.u32 2, %s25
        %p257 = scmp.lt.s32.totalorder %s255, 7
        %s258 = scalar_select %p257, %s255, 7
        %p259 = scmp.lt.s32.totalorder %s24, 0
        %s260 = scalar_select %p259, %s24, 0
        %p261 = scmp.lt.s32.totalorder %s256, 1
        %s262 = scalar_select %p261, %s256, 1
        %s263 = smul.addr %s260, 2
        %s264 = sadd.s32 %s262, %s263
        %s265 = smul.addr %s258, 2
        %s266 = sadd.s32 %s264, %s265
        %s267 = smul.addr %s266, 8
        %s268 = scalar_lea.vmem %s3, %s267
        %s269 = smul.u32 8, %s26
        %s270 = smul.u32 2, %s25
      $region20: #{fft_res_block.6} parent=11 // pred_fallthru
        _
    $region12: #{fft_res_block.6} parent=5 // pred_fallthru
      _
    %p271 = scmp.lt.s32.totalorder %s12, 2
    // Predicated region
    $region21: #{fft_res_block.6} parent=5 // pred_check
      %p272 = pneg %p271
    $region22: #{fft_res_block.6} parent=5 // pred_check_branch
      %274 = sbr.rel (%p272) target = $region24
    $region23: #{fft_res_block.6} parent=5 // pred_region
      // Predicated region
      $region25: #{fft_res_block.6} parent=23 // pred_check
        %p275 = pneg %p62
      $region26: #{fft_res_block.6} parent=23 // pred_check_branch
        %277 = sbr.rel (%p275) target = $region28
      $region27: #{fft_res_block.6} parent=23 // pred_region
        %s278 = smul.u32 2, %s21
        %p279 = scmp.lt.s32.totalorder %s19, 1
        %s280 = scalar_select %p279, %s19, 1
        %p281 = scmp.lt.s32.totalorder %s22, 0
        %s282 = scalar_select %p281, %s22, 0
        %p283 = scmp.lt.s32.totalorder %s278, 1
        %s284 = scalar_select %p283, %s278, 1
        %s285 = smul.addr %s282, 2
        %s286 = sadd.s32 %s284, %s285
        %s287 = smul.addr %s280, 2
        %s288 = sadd.s32 %s286, %s287
        %s289 = smul.addr %s288, 8
        %s290 = scalar_lea.vmem %s0, %s289
        %s291 = smul.u32 2, %s21
      $region28: #{fft_res_block.6} parent=23 // pred_fallthru
        _
      // Predicated region
      $region29: #{fft_res_block.6} parent=23 // pred_check
        %p292 = pneg %p92
      $region30: #{fft_res_block.6} parent=23 // pred_check_branch
        %294 = sbr.rel (%p292) target = $region32
      $region31: #{fft_res_block.6} parent=23 // pred_region
        %s295 = smul.u32 2, %s21
        %p296 = scmp.lt.s32.totalorder %s19, 1
        %s297 = scalar_select %p296, %s19, 1
        %p298 = scmp.lt.s32.totalorder %s22, 0
        %s299 = scalar_select %p298, %s22, 0
        %p300 = scmp.lt.s32.totalorder %s295, 1
        %s301 = scalar_select %p300, %s295, 1
        %s302 = smul.addr %s299, 2
        %s303 = sadd.s32 %s301, %s302
        %s304 = smul.addr %s297, 2
        %s305 = sadd.s32 %s303, %s304
        %s306 = smul.addr %s305, 8
        %s307 = scalar_lea.vmem %s1, %s306
        %s308 = smul.u32 2, %s21
      $region32: #{fft_res_block.6} parent=23 // pred_fallthru
        _
    $region24: #{fft_res_block.6} parent=5 // pred_fallthru
      _
    %p309 = scmp.le.s32.totalorder 1, %s12
    %p310 = scmp.lt.s32.totalorder %s12, 3
    %p311 = pnand %p309, %p310
    %p312 = pneg %p311
    // Predicated region
    $region33: #{fft_res_block.6} parent=5 // pred_check
      _
    $region34: #{fft_res_block.6} parent=5 // pred_check_branch
      %314 = sbr.rel (%p311) target = $region36
    $region35: #{fft_res_block.6} parent=5 // pred_region
      %s315 = ssub.s32 %s12, 1
      %s316 = smul.u32 2, %s25
      %p317 = scmp.lt.s32.totalorder %s23, 1
      %s318 = scalar_select %p317, %s23, 1
      %p319 = scmp.lt.s32.totalorder %s26, 0
      %s320 = scalar_select %p319, %s26, 0
      %p321 = scmp.lt.s32.totalorder %s316, 1
      %s322 = scalar_select %p321, %s316, 1
      %s323 = smul.addr %s320, 2
      %s324 = sadd.s32 %s322, %s323
      %s325 = smul.addr %s318, 2
      %s326 = sadd.s32 %s324, %s325
      %s327 = smul.addr %s326, 8
      %s328 = scalar_lea.vmem %s0, %s327
      %p329 = pneg %p68
      %p330 = pneg %p65
      %s331 = smul.u32 2, %s25
      %p332 = scmp.lt.s32.totalorder %s23, 1
      %s333 = scalar_select %p332, %s23, 1
      %p334 = scmp.lt.s32.totalorder %s26, 0
      %s335 = scalar_select %p334, %s26, 0
      %p336 = scmp.lt.s32.totalorder %s331, 1
      %s337 = scalar_select %p336, %s331, 1
      %s338 = smul.addr %s335, 2
      %s339 = sadd.s32 %s337, %s338
      %s340 = smul.addr %s333, 2
      %s341 = sadd.s32 %s339, %s340
      %s342 = smul.addr %s341, 8
      %s343 = scalar_lea.vmem %s1, %s342
      %p344 = pneg %p98
      %p345 = pneg %p95
      %s346 = smul.u32 8, %s26
      %s347 = smul.u32 2, %s25
      %p348 = scmp.lt.s32.totalorder %s346, 7
      %s349 = scalar_select %p348, %s346, 7
      %p350 = scmp.lt.s32.totalorder %s24, 0
      %s351 = scalar_select %p350, %s24, 0
      %p352 = scmp.lt.s32.totalorder %s347, 1
      %s353 = scalar_select %p352, %s347, 1
      %s354 = smul.addr %s351, 2
      %s355 = sadd.s32 %s353, %s354
      %s356 = smul.addr %s349, 2
      %s357 = sadd.s32 %s355, %s356
      %s358 = smul.addr %s357, 8
      %s359 = scalar_lea.vmem %s2, %s358
      %p360 = pneg %p128
      %p361 = pneg %p125
      %s362 = smul.u32 8, %s26
      %s363 = smul.u32 2, %s25
      %p364 = scmp.lt.s32.totalorder %s362, 7
      %s365 = scalar_select %p364, %s362, 7
      %p366 = scmp.lt.s32.totalorder %s24, 0
      %s367 = scalar_select %p366, %s24, 0
      %p368 = scmp.lt.s32.totalorder %s363, 1
      %s369 = scalar_select %p368, %s363, 1
      %s370 = smul.addr %s367, 2
      %s371 = sadd.s32 %s369, %s370
      %s372 = smul.addr %s365, 2
      %s373 = sadd.s32 %s371, %s372
      %s374 = smul.addr %s373, 8
      %s375 = scalar_lea.vmem %s3, %s374
      %p376 = pneg %p158
      %p377 = pneg %p155
      %p378 = pneg %p188
      %p379 = pneg %p185
      %s380 = smul.u32 2, %s25
      %p381 = scmp.lt.s32.totalorder %s23, 1
      %s382 = scalar_select %p381, %s23, 1
      %p383 = scmp.lt.s32.totalorder %s24, 0
      %s384 = scalar_select %p383, %s24, 0
      %p385 = scmp.lt.s32.totalorder %s380, 1
      %s386 = scalar_select %p385, %s380, 1
      %s387 = smul.addr %s384, 2
      %s388 = sadd.s32 %s386, %s387
      %s389 = smul.addr %s382, 2
      %s390 = sadd.s32 %s388, %s389
      %s391 = smul.addr %s390, 8
      %s392 = scalar_lea.vmem %s4, %s391
      %p393 = pneg %p218
      %p394 = pneg %p215
      %s395 = smul.u32 2, %s25
      %p396 = scmp.lt.s32.totalorder %s23, 1
      %s397 = scalar_select %p396, %s23, 1
      %p398 = scmp.lt.s32.totalorder %s24, 0
      %s399 = scalar_select %p398, %s24, 0
      %p400 = scmp.lt.s32.totalorder %s395, 1
      %s401 = scalar_select %p400, %s395, 1
      %s402 = smul.addr %s399, 2
      %s403 = sadd.s32 %s401, %s402
      %s404 = smul.addr %s397, 2
      %s405 = sadd.s32 %s403, %s404
      %s406 = smul.addr %s405, 8
      %s407 = scalar_lea.vmem %s5, %s406
      %s408 = smul.u32 2, %s25
      %p409 = scmp.lt.s32.totalorder %s23, 1
      %s410 = scalar_select %p409, %s23, 1
      %p411 = scmp.lt.s32.totalorder %s26, 0
      %s412 = scalar_select %p411, %s26, 0
      %p413 = scmp.lt.s32.totalorder %s408, 1
      %s414 = scalar_select %p413, %s408, 1
      %s415 = smul.addr %s412, 2
      %s416 = sadd.s32 %s414, %s415
      %s417 = smul.addr %s410, 2
      %s418 = sadd.s32 %s416, %s417
      %s419 = smul.addr %s418, 8
      %s420 = scalar_lea.vmem %s0, %s419
      %s421 = smul.u32 2, %s25
      %s422 = smul.u32 2, %s25
      %p423 = scmp.lt.s32.totalorder %s23, 1
      %s424 = scalar_select %p423, %s23, 1
      %p425 = scmp.lt.s32.totalorder %s26, 0
      %s426 = scalar_select %p425, %s26, 0
      %p427 = scmp.lt.s32.totalorder %s422, 1
      %s428 = scalar_select %p427, %s422, 1
      %s429 = smul.addr %s426, 2
      %s430 = sadd.s32 %s428, %s429
      %s431 = smul.addr %s424, 2
      %s432 = sadd.s32 %s430, %s431
      %s433 = smul.addr %s432, 8
      %s434 = scalar_lea.vmem %s1, %s433
      %s435 = smul.u32 2, %s25
      %s436 = smul.u32 8, %s26
      %s437 = smul.u32 2, %s25
      %p438 = scmp.lt.s32.totalorder %s436, 7
      %s439 = scalar_select %p438, %s436, 7
      %p440 = scmp.lt.s32.totalorder %s24, 0
      %s441 = scalar_select %p440, %s24, 0
      %p442 = scmp.lt.s32.totalorder %s437, 1
      %s443 = scalar_select %p442, %s437, 1
      %s444 = smul.addr %s441, 2
      %s445 = sadd.s32 %s443, %s444
      %s446 = smul.addr %s439, 2
      %s447 = sadd.s32 %s445, %s446
      %s448 = smul.addr %s447, 8
      %s449 = scalar_lea.vmem %s2, %s448
      %s450 = smul.u32 8, %s26
      %s451 = smul.u32 2, %s25
      %s452 = smul.u32 8, %s26
      %s453 = smul.u32 2, %s25
      %p454 = scmp.lt.s32.totalorder %s452, 7
      %s455 = scalar_select %p454, %s452, 7
      %p456 = scmp.lt.s32.totalorder %s24, 0
      %s457 = scalar_select %p456, %s24, 0
      %p458 = scmp.lt.s32.totalorder %s453, 1
      %s459 = scalar_select %p458, %s453, 1
      %s460 = smul.addr %s457, 2
      %s461 = sadd.s32 %s459, %s460
      %s462 = smul.addr %s455, 2
      %s463 = sadd.s32 %s461, %s462
      %s464 = smul.addr %s463, 8
      %s465 = scalar_lea.vmem %s3, %s464
      %s466 = smul.u32 8, %s26
      %s467 = smul.u32 2, %s25
      %s468 = smul.u32 2, %s25
      %p469 = scmp.lt.s32.totalorder %s23, 1
      %s470 = scalar_select %p469, %s23, 1
      %p471 = scmp.lt.s32.totalorder %s24, 0
      %s472 = scalar_select %p471, %s24, 0
      %p473 = scmp.lt.s32.totalorder %s468, 1
      %s474 = scalar_select %p473, %s468, 1
      %s475 = smul.addr %s472, 2
      %s476 = sadd.s32 %s474, %s475
      %s477 = smul.addr %s470, 2
      %s478 = sadd.s32 %s476, %s477
      %s479 = smul.addr %s478, 8
      %s480 = scalar_lea.vmem %s4, %s479
      %s481 = smul.u32 2, %s25
      %s482 = smul.u32 2, %s25
      %p483 = scmp.lt.s32.totalorder %s23, 1
      %s484 = scalar_select %p483, %s23, 1
      %p485 = scmp.lt.s32.totalorder %s24, 0
      %s486 = scalar_select %p485, %s24, 0
      %p487 = scmp.lt.s32.totalorder %s482, 1
      %s488 = scalar_select %p487, %s482, 1
      %s489 = smul.addr %s486, 2
      %s490 = sadd.s32 %s488, %s489
      %s491 = smul.addr %s484, 2
      %s492 = sadd.s32 %s490, %s491
      %s493 = smul.addr %s492, 8
      %s494 = scalar_lea.vmem %s5, %s493
      %s495 = smul.u32 2, %s25
      %p496 = scmp.eq.s32.totalorder %s26, 0
      // Predicated region
      $region37: #{fft_res_block.6} parent=35 // pred_check
        %p497 = pneg %p496
      $region38: #{fft_res_block.6} parent=35 // pred_check_branch
        %499 = sbr.rel (%p497) target = $region40
      $region39: #{fft_res_block.6} parent=35 // pred_region
        %500 = vst [vmem:[%s480] sm:$0xff] 0.0
        %501 = vst [vmem:[%s480 + $0x8] sm:$0xff] 0.0
        %502 = vst [vmem:[%s494] sm:$0xff] 0.0
        %503 = vst [vmem:[%s494 + $0x8] sm:$0xff] 0.0
      $region40: #{fft_res_block.6} parent=35 // pred_fallthru
        _
      %v504 = vld [vmem:[%s420] sm:$0xff]
      %v505 = vld [vmem:[%s420 + $0x8] sm:$0xff]
      %v506 = vld [vmem:[%s434] sm:$0xff]
      %v507 = vld [vmem:[%s434 + $0x8] sm:$0xff]
      %v508 = vld [vmem:[%s449] sm:$0xff]
      %v509 = vld [vmem:[%s449 + $0x8] sm:$0xff]
      %v510 = vld [vmem:[%s465] sm:$0xff]
      %v511 = vld [vmem:[%s465 + $0x8] sm:$0xff]
      %v512 = vlaneseq
      %v513 = vshrl.u32 %v512, 7
      %v514 = vsub.s32 0, %v513
      %v515 = vrot.slane %v504, %v514
      %v516 = vlaneseq
      %v517 = vshrl.u32 %v516, 7
      %v518 = vsub.s32 0, %v517
      %v519 = vrot.slane %v505, %v518
      %v520 = vmul.f32 %v515, %v508
      %v521 = vmul.f32 %v519, %v509
      %v522 = vlaneseq
      %v523 = vshrl.u32 %v522, 7
      %v524 = vsub.s32 0, %v523
      %v525 = vrot.slane %v506, %v524
      %v526 = vlaneseq
      %v527 = vshrl.u32 %v526, 7
      %v528 = vsub.s32 0, %v527
      %v529 = vrot.slane %v507, %v528
      %v530 = vmul.f32 %v525, %v510
      %v531 = vmul.f32 %v529, %v511
      %v532 = vsub.f32 %v520, %v530
      %v533 = vsub.f32 %v521, %v531
      %v534 = vmul.f32 %v515, %v510
      %v535 = vmul.f32 %v519, %v511
      %v536 = vmul.f32 %v525, %v508
      %v537 = vmul.f32 %v529, %v509
      %v538 = vadd.f32 %v534, %v536
      %v539 = vadd.f32 %v535, %v537
      %s540 = scalar_lea.vmem %s449, 16
      %v541 = vld [vmem:[%s540] sm:$0xff]
      %v542 = vld [vmem:[%s540 + $0x8] sm:$0xff]
      %s543 = scalar_lea.vmem %s465, 16
      %v544 = vld [vmem:[%s543] sm:$0xff]
      %v545 = vld [vmem:[%s543 + $0x8] sm:$0xff]
      %v546 = vlaneseq
      %v547 = vshrl.u32 %v546, 7
      %v548 = vsub.s32 1, %v547
      %v549 = vrot.slane %v504, %v548
      %v550 = vlaneseq
      %v551 = vshrl.u32 %v550, 7
      %v552 = vsub.s32 1, %v551
      %v553 = vrot.slane %v505, %v552
      %v554 = vmul.f32 %v549, %v541
      %v555 = vmul.f32 %v553, %v542
      %v556 = vlaneseq
      %v557 = vshrl.u32 %v556, 7
      %v558 = vsub.s32 1, %v557
      %v559 = vrot.slane %v506, %v558
      %v560 = vlaneseq
      %v561 = vshrl.u32 %v560, 7
      %v562 = vsub.s32 1, %v561
      %v563 = vrot.slane %v507, %v562
      %v564 = vmul.f32 %v559, %v544
      %v565 = vmul.f32 %v563, %v545
      %v566 = vsub.f32 %v554, %v564
      %v567 = vsub.f32 %v555, %v565
      %v568 = vmul.f32 %v549, %v544
      %v569 = vmul.f32 %v553, %v545
      %v570 = vmul.f32 %v559, %v541
      %v571 = vmul.f32 %v563, %v542
      %v572 = vadd.f32 %v568, %v570
      %v573 = vadd.f32 %v569, %v571
      %v574 = vadd.f32 %v532, %v566
      %v575 = vadd.f32 %v533, %v567
      %v576 = vadd.f32 %v538, %v572
      %v577 = vadd.f32 %v539, %v573
      %s578 = scalar_lea.vmem %s449, 32
      %v579 = vld [vmem:[%s578] sm:$0xff]
      %v580 = vld [vmem:[%s578 + $0x8] sm:$0xff]
      %s581 = scalar_lea.vmem %s465, 32
      %v582 = vld [vmem:[%s581] sm:$0xff]
      %v583 = vld [vmem:[%s581 + $0x8] sm:$0xff]
      %v584 = vlaneseq
      %v585 = vshrl.u32 %v584, 7
      %v586 = vsub.s32 2, %v585
      %v587 = vrot.slane %v504, %v586
      %v588 = vlaneseq
      %v589 = vshrl.u32 %v588, 7
      %v590 = vsub.s32 2, %v589
      %v591 = vrot.slane %v505, %v590
      %v592 = vmul.f32 %v587, %v579
      %v593 = vmul.f32 %v591, %v580
      %v594 = vlaneseq
      %v595 = vshrl.u32 %v594, 7
      %v596 = vsub.s32 2, %v595
      %v597 = vrot.slane %v506, %v596
      %v598 = vlaneseq
      %v599 = vshrl.u32 %v598, 7
      %v600 = vsub.s32 2, %v599
      %v601 = vrot.slane %v507, %v600
      %v602 = vmul.f32 %v597, %v582
      %v603 = vmul.f32 %v601, %v583
      %v604 = vsub.f32 %v592, %v602
      %v605 = vsub.f32 %v593, %v603
      %v606 = vmul.f32 %v587, %v582
      %v607 = vmul.f32 %v591, %v583
      %v608 = vmul.f32 %v597, %v579
      %v609 = vmul.f32 %v601, %v580
      %v610 = vadd.f32 %v606, %v608
      %v611 = vadd.f32 %v607, %v609
      %v612 = vadd.f32 %v574, %v604
      %v613 = vadd.f32 %v575, %v605
      %v614 = vadd.f32 %v576, %v610
      %v615 = vadd.f32 %v577, %v611
      %s616 = scalar_lea.vmem %s449, 48
      %v617 = vld [vmem:[%s616] sm:$0xff]
      %v618 = vld [vmem:[%s616 + $0x8] sm:$0xff]
      %s619 = scalar_lea.vmem %s465, 48
      %v620 = vld [vmem:[%s619] sm:$0xff]
      %v621 = vld [vmem:[%s619 + $0x8] sm:$0xff]
      %v622 = vlaneseq
      %v623 = vshrl.u32 %v622, 7
      %v624 = vsub.s32 3, %v623
      %v625 = vrot.slane %v504, %v624
      %v626 = vlaneseq
      %v627 = vshrl.u32 %v626, 7
      %v628 = vsub.s32 3, %v627
      %v629 = vrot.slane %v505, %v628
      %v630 = vmul.f32 %v625, %v617
      %v631 = vmul.f32 %v629, %v618
      %v632 = vlaneseq
      %v633 = vshrl.u32 %v632, 7
      %v634 = vsub.s32 3, %v633
      %v635 = vrot.slane %v506, %v634
      %v636 = vlaneseq
      %v637 = vshrl.u32 %v636, 7
      %v638 = vsub.s32 3, %v637
      %v639 = vrot.slane %v507, %v638
      %v640 = vmul.f32 %v635, %v620
      %v641 = vmul.f32 %v639, %v621
      %v642 = vsub.f32 %v630, %v640
      %v643 = vsub.f32 %v631, %v641
      %v644 = vmul.f32 %v625, %v620
      %v645 = vmul.f32 %v629, %v621
      %v646 = vmul.f32 %v635, %v617
      %v647 = vmul.f32 %v639, %v618
      %v648 = vadd.f32 %v644, %v646
      %v649 = vadd.f32 %v645, %v647
      %v650 = vadd.f32 %v612, %v642
      %v651 = vadd.f32 %v613, %v643
      %v652 = vadd.f32 %v614, %v648
      %v653 = vadd.f32 %v615, %v649
      %s654 = scalar_lea.vmem %s449, 64
      %v655 = vld [vmem:[%s654] sm:$0xff]
      %v656 = vld [vmem:[%s654 + $0x8] sm:$0xff]
      %s657 = scalar_lea.vmem %s465, 64
      %v658 = vld [vmem:[%s657] sm:$0xff]
      %v659 = vld [vmem:[%s657 + $0x8] sm:$0xff]
      %v660 = vlaneseq
      %v661 = vshrl.u32 %v660, 7
      %v662 = vsub.s32 4, %v661
      %v663 = vrot.slane %v504, %v662
      %v664 = vlaneseq
      %v665 = vshrl.u32 %v664, 7
      %v666 = vsub.s32 4, %v665
      %v667 = vrot.slane %v505, %v666
      %v668 = vmul.f32 %v663, %v655
      %v669 = vmul.f32 %v667, %v656
      %v670 = vlaneseq
      %v671 = vshrl.u32 %v670, 7
      %v672 = vsub.s32 4, %v671
      %v673 = vrot.slane %v506, %v672
      %v674 = vlaneseq
      %v675 = vshrl.u32 %v674, 7
      %v676 = vsub.s32 4, %v675
      %v677 = vrot.slane %v507, %v676
      %v678 = vmul.f32 %v673, %v658
      %v679 = vmul.f32 %v677, %v659
      %v680 = vsub.f32 %v668, %v678
      %v681 = vsub.f32 %v669, %v679
      %v682 = vmul.f32 %v663, %v658
      %v683 = vmul.f32 %v667, %v659
      %v684 = vmul.f32 %v673, %v655
      %v685 = vmul.f32 %v677, %v656
      %v686 = vadd.f32 %v682, %v684
      %v687 = vadd.f32 %v683, %v685
      %v688 = vadd.f32 %v650, %v680
      %v689 = vadd.f32 %v651, %v681
      %v690 = vadd.f32 %v652, %v686
      %v691 = vadd.f32 %v653, %v687
      %s692 = scalar_lea.vmem %s449, 80
      %v693 = vld [vmem:[%s692] sm:$0xff]
      %v694 = vld [vmem:[%s692 + $0x8] sm:$0xff]
      %s695 = scalar_lea.vmem %s465, 80
      %v696 = vld [vmem:[%s695] sm:$0xff]
      %v697 = vld [vmem:[%s695 + $0x8] sm:$0xff]
      %v698 = vlaneseq
      %v699 = vshrl.u32 %v698, 7
      %v700 = vsub.s32 5, %v699
      %v701 = vrot.slane %v504, %v700
      %v702 = vlaneseq
      %v703 = vshrl.u32 %v702, 7
      %v704 = vsub.s32 5, %v703
      %v705 = vrot.slane %v505, %v704
      %v706 = vmul.f32 %v701, %v693
      %v707 = vmul.f32 %v705, %v694
      %v708 = vlaneseq
      %v709 = vshrl.u32 %v708, 7
      %v710 = vsub.s32 5, %v709
      %v711 = vrot.slane %v506, %v710
      %v712 = vlaneseq
      %v713 = vshrl.u32 %v712, 7
      %v714 = vsub.s32 5, %v713
      %v715 = vrot.slane %v507, %v714
      %v716 = vmul.f32 %v711, %v696
      %v717 = vmul.f32 %v715, %v697
      %v718 = vsub.f32 %v706, %v716
      %v719 = vsub.f32 %v707, %v717
      %v720 = vmul.f32 %v701, %v696
      %v721 = vmul.f32 %v705, %v697
      %v722 = vmul.f32 %v711, %v693
      %v723 = vmul.f32 %v715, %v694
      %v724 = vadd.f32 %v720, %v722
      %v725 = vadd.f32 %v721, %v723
      %v726 = vadd.f32 %v688, %v718
      %v727 = vadd.f32 %v689, %v719
      %v728 = vadd.f32 %v690, %v724
      %v729 = vadd.f32 %v691, %v725
      %s730 = scalar_lea.vmem %s449, 96
      %v731 = vld [vmem:[%s730] sm:$0xff]
      %v732 = vld [vmem:[%s730 + $0x8] sm:$0xff]
      %s733 = scalar_lea.vmem %s465, 96
      %v734 = vld [vmem:[%s733] sm:$0xff]
      %v735 = vld [vmem:[%s733 + $0x8] sm:$0xff]
      %v736 = vlaneseq
      %v737 = vshrl.u32 %v736, 7
      %v738 = vsub.s32 6, %v737
      %v739 = vrot.slane %v504, %v738
      %v740 = vlaneseq
      %v741 = vshrl.u32 %v740, 7
      %v742 = vsub.s32 6, %v741
      %v743 = vrot.slane %v505, %v742
      %v744 = vmul.f32 %v739, %v731
      %v745 = vmul.f32 %v743, %v732
      %v746 = vlaneseq
      %v747 = vshrl.u32 %v746, 7
      %v748 = vsub.s32 6, %v747
      %v749 = vrot.slane %v506, %v748
      %v750 = vlaneseq
      %v751 = vshrl.u32 %v750, 7
      %v752 = vsub.s32 6, %v751
      %v753 = vrot.slane %v507, %v752
      %v754 = vmul.f32 %v749, %v734
      %v755 = vmul.f32 %v753, %v735
      %v756 = vsub.f32 %v744, %v754
      %v757 = vsub.f32 %v745, %v755
      %v758 = vmul.f32 %v739, %v734
      %v759 = vmul.f32 %v743, %v735
      %v760 = vmul.f32 %v749, %v731
      %v761 = vmul.f32 %v753, %v732
      %v762 = vadd.f32 %v758, %v760
      %v763 = vadd.f32 %v759, %v761
      %v764 = vadd.f32 %v726, %v756
      %v765 = vadd.f32 %v727, %v757
      %v766 = vadd.f32 %v728, %v762
      %v767 = vadd.f32 %v729, %v763
      %s768 = scalar_lea.vmem %s449, 112
      %v769 = vld [vmem:[%s768] sm:$0xff]
      %v770 = vld [vmem:[%s768 + $0x8] sm:$0xff]
      %s771 = scalar_lea.vmem %s465, 112
      %v772 = vld [vmem:[%s771] sm:$0xff]
      %v773 = vld [vmem:[%s771 + $0x8] sm:$0xff]
      %v774 = vlaneseq
      %v775 = vshrl.u32 %v774, 7
      %v776 = vsub.s32 7, %v775
      %v777 = vrot.slane %v504, %v776
      %v778 = vlaneseq
      %v779 = vshrl.u32 %v778, 7
      %v780 = vsub.s32 7, %v779
      %v781 = vrot.slane %v505, %v780
      %v782 = vmul.f32 %v777, %v769
      %v783 = vmul.f32 %v781, %v770
      %v784 = vlaneseq
      %v785 = vshrl.u32 %v784, 7
      %v786 = vsub.s32 7, %v785
      %v787 = vrot.slane %v506, %v786
      %v788 = vlaneseq
      %v789 = vshrl.u32 %v788, 7
      %v790 = vsub.s32 7, %v789
      %v791 = vrot.slane %v507, %v790
      %v792 = vmul.f32 %v787, %v772
      %v793 = vmul.f32 %v791, %v773
      %v794 = vsub.f32 %v782, %v792
      %v795 = vsub.f32 %v783, %v793
      %v796 = vmul.f32 %v777, %v772
      %v797 = vmul.f32 %v781, %v773
      %v798 = vmul.f32 %v787, %v769
      %v799 = vmul.f32 %v791, %v770
      %v800 = vadd.f32 %v796, %v798
      %v801 = vadd.f32 %v797, %v799
      %v802 = vadd.f32 %v764, %v794
      %v803 = vadd.f32 %v765, %v795
      %v804 = vadd.f32 %v766, %v800
      %v805 = vadd.f32 %v767, %v801
      %v806 = vld [vmem:[%s480] sm:$0xff]
      %v807 = vld [vmem:[%s480 + $0x8] sm:$0xff]
      %v808 = vadd.f32 %v806, %v802
      %v809 = vadd.f32 %v807, %v803
      %810 = vst [vmem:[%s480] sm:$0xff] %v808
      %811 = vst [vmem:[%s480 + $0x8] sm:$0xff] %v809
      %v812 = vld [vmem:[%s494] sm:$0xff]
      %v813 = vld [vmem:[%s494 + $0x8] sm:$0xff]
      %v814 = vadd.f32 %v812, %v804
      %v815 = vadd.f32 %v813, %v805
      %816 = vst [vmem:[%s494] sm:$0xff] %v814
      %817 = vst [vmem:[%s494 + $0x8] sm:$0xff] %v815
      %s818 = smul.u32 2, %s25
      %p819 = scmp.lt.s32.totalorder %s23, 1
      %s820 = scalar_select %p819, %s23, 1
      %p821 = scmp.lt.s32.totalorder %s24, 0
      %s822 = scalar_select %p821, %s24, 0
      %p823 = scmp.lt.s32.totalorder %s818, 1
      %s824 = scalar_select %p823, %s818, 1
      %s825 = smul.addr %s822, 2
      %s826 = sadd.s32 %s824, %s825
      %s827 = smul.addr %s820, 2
      %s828 = sadd.s32 %s826, %s827
      %s829 = smul.addr %s828, 8
      %s830 = scalar_lea.vmem %s4, %s829
      %s831 = smul.u32 2, %s25
      %p832 = scmp.lt.s32.totalorder %s23, 1
      %s833 = scalar_select %p832, %s23, 1
      %p834 = scmp.lt.s32.totalorder %s24, 0
      %s835 = scalar_select %p834, %s24, 0
      %p836 = scmp.lt.s32.totalorder %s831, 1
      %s837 = scalar_select %p836, %s831, 1
      %s838 = smul.addr %s835, 2
      %s839 = sadd.s32 %s837, %s838
      %s840 = smul.addr %s833, 2
      %s841 = sadd.s32 %s839, %s840
      %s842 = smul.addr %s841, 8
      %s843 = scalar_lea.vmem %s5, %s842
      // Predicated region
      $region41: #{fft_res_block.6} parent=35 // pred_check
        %p844 = pneg %p185
      $region42: #{fft_res_block.6} parent=35 // pred_check_branch
        %846 = sbr.rel (%p844) target = $region44
      $region43: #{fft_res_block.6} parent=35 // pred_region
        %s847 = smul.u32 2, %s25
      $region44: #{fft_res_block.6} parent=35 // pred_fallthru
        _
      // Predicated region
      $region45: #{fft_res_block.6} parent=35 // pred_check
        %p848 = pneg %p215
      $region46: #{fft_res_block.6} parent=35 // pred_check_branch
        %850 = sbr.rel (%p848) target = $region48
      $region47: #{fft_res_block.6} parent=35 // pred_region
        %s851 = smul.u32 2, %s25
      $region48: #{fft_res_block.6} parent=35 // pred_fallthru
        _
    $region36: #{fft_res_block.6} parent=5 // pred_fallthru
      _
    %p852 = scmp.le.s32.totalorder 2, %s12
    // Predicated region
    $region49: #{fft_res_block.6} parent=5 // pred_check
      %p853 = pneg %p852
    $region50: #{fft_res_block.6} parent=5 // pred_check_branch
      %855 = sbr.rel (%p853) target = $region52
    $region51: #{fft_res_block.6} parent=5 // pred_region
      %s856 = ssub.s32 %s12, 2
      // Predicated region
      $region53: #{fft_res_block.6} parent=51 // pred_check
        %p857 = pneg %p191
      $region54: #{fft_res_block.6} parent=51 // pred_check_branch
        %859 = sbr.rel (%p857) target = $region56
      $region55: #{fft_res_block.6} parent=51 // pred_region
        %s860 = smul.u32 2, %s29
        %p861 = scmp.lt.s32.totalorder %s27, 1
        %s862 = scalar_select %p861, %s27, 1
        %p863 = scmp.lt.s32.totalorder %s28, 0
        %s864 = scalar_select %p863, %s28, 0
        %p865 = scmp.lt.s32.totalorder %s860, 1
        %s866 = scalar_select %p865, %s860, 1
        %s867 = smul.addr %s864, 2
        %s868 = sadd.s32 %s866, %s867
        %s869 = smul.addr %s862, 2
        %s870 = sadd.s32 %s868, %s869
        %s871 = smul.addr %s870, 8
        %s872 = scalar_lea.vmem %s4, %s871
      $region56: #{fft_res_block.6} parent=51 // pred_fallthru
        _
      // Predicated region
      $region57: #{fft_res_block.6} parent=51 // pred_check
        %p873 = pneg %p221
      $region58: #{fft_res_block.6} parent=51 // pred_check_branch
        %875 = sbr.rel (%p873) target = $region60
      $region59: #{fft_res_block.6} parent=51 // pred_region
        %s876 = smul.u32 2, %s29
        %p877 = scmp.lt.s32.totalorder %s27, 1
        %s878 = scalar_select %p877, %s27, 1
        %p879 = scmp.lt.s32.totalorder %s28, 0
        %s880 = scalar_select %p879, %s28, 0
        %p881 = scmp.lt.s32.totalorder %s876, 1
        %s882 = scalar_select %p881, %s876, 1
        %s883 = smul.addr %s880, 2
        %s884 = sadd.s32 %s882, %s883
        %s885 = smul.addr %s878, 2
        %s886 = sadd.s32 %s884, %s885
        %s887 = smul.addr %s886, 8
        %s888 = scalar_lea.vmem %s5, %s887
      $region60: #{fft_res_block.6} parent=51 // pred_fallthru
        _
    $region52: #{fft_res_block.6} parent=5 // pred_fallthru
      _
  $region6: #{fft_res_block.6} parent=0 // loop_footer
    %s16 = sadd.s32 1, %s12
  $region7: #{fft_res_block.6} parent=0 // loop_footer_branch
    %11 = sbr.rel target = $region3
  $region8: #{fft_res_block.6} parent=0 // loop_exit
    _

// kernel: fft_res_block.7
$region0: #{fft_res_block.7}
  #allocation0 [shape = 'u32[]', space=smem, size = 0x4, offset = 0x4, fixed_abs, tag = 'smem constant byte address 0x4 - core index']
  #allocation1 [shape = 'u32[144,128]{1,0:T(1,128)}', space=vmem, size = 0x12000, scoped, tag = 'internal scratch']
  %s0 = inlined_call_operand.vmem [shape: f32[2,8,256], index: 0, kind: input, shape index: {}]
  %s1 = inlined_call_operand.vmem [shape: f32[2,4,256], index: 1, kind: input, shape index: {}]
  %s2 = inlined_call_operand.vmem [shape: f32[4,8,1], index: 2, kind: input, shape index: {}]
  %s3 = inlined_call_operand.vmem [shape: f32[8,1], index: 3, kind: input, shape index: {}]
  %s4 = inlined_call_operand.vmem [shape: f32[8,1], index: 4, kind: input, shape index: {}]
  %s5 = inlined_call_operand.vmem [shape: f32[8,1], index: 5, kind: input, shape index: {}]
  %s6 = inlined_call_operand.vmem [shape: f32[2,8,256], index: 6, kind: output, shape index: {}]
  %s7 = sld [smem:[#allocation0]]
  $region34: #{fft_res_block.7} parent=0
    _
  %s9 = ssub.s32 1, %s7
  %s10 = scalar_select 0, %s9, %s7
  // Predicated region
  $region2: #{fft_res_block.7} parent=0 // pred_check
    _
  $region3: #{fft_res_block.7} parent=0 // pred_check_branch
    %12 = sbr.rel (0) target = $region5
  $region4: #{fft_res_block.7} parent=0 // pred_region
    _
  $region5: #{fft_res_block.7} parent=0 // pred_fallthru
    _
  // Predicated region
  $region6: #{fft_res_block.7} parent=0 // pred_check
    _
  $region7: #{fft_res_block.7} parent=0 // pred_check_branch
    %14 = sbr.rel (0) target = $region9
  $region8: #{fft_res_block.7} parent=0 // pred_region
    _
  $region9: #{fft_res_block.7} parent=0 // pred_fallthru
    _
  // Predicated region
  $region10: #{fft_res_block.7} parent=0 // pred_check
    _
  $region11: #{fft_res_block.7} parent=0 // pred_check_branch
    %16 = sbr.rel (0) target = $region13
  $region12: #{fft_res_block.7} parent=0 // pred_region
    _
  $region13: #{fft_res_block.7} parent=0 // pred_fallthru
    _
  // Predicated region
  $region14: #{fft_res_block.7} parent=0 // pred_check
    _
  $region15: #{fft_res_block.7} parent=0 // pred_check_branch
    %18 = sbr.rel (0) target = $region17
  $region16: #{fft_res_block.7} parent=0 // pred_region
    _
  $region17: #{fft_res_block.7} parent=0 // pred_fallthru
    _
  // Predicated region
  $region18: #{fft_res_block.7} parent=0 // pred_check
    _
  $region19: #{fft_res_block.7} parent=0 // pred_check_branch
    %20 = sbr.rel (0) target = $region21
  $region20: #{fft_res_block.7} parent=0 // pred_region
    _
  $region21: #{fft_res_block.7} parent=0 // pred_fallthru
    _
  // Predicated region
  $region22: #{fft_res_block.7} parent=0 // pred_check
    _
  $region23: #{fft_res_block.7} parent=0 // pred_check_branch
    %22 = sbr.rel (0) target = $region25
  $region24: #{fft_res_block.7} parent=0 // pred_region
    _
  $region25: #{fft_res_block.7} parent=0 // pred_fallthru
    _
  %v23 = vld [vmem:[%s0] sm:$0xff]
  %v24 = vld [vmem:[%s0 + $0x8] sm:$0xff]
  %v25 = vld [vmem:[%s0 + $0x10] sm:$0xff]
  %v26 = vld [vmem:[%s0 + $0x18] sm:$0xff]
  %v27 = vadd.f32 %v23, %v24
  %28 = vadd.xlane.f32.xlu0 %v27
  %v29 = vpop.xlane.xlu0 %28
  %v30 = vadd.f32 %v25, %v26
  %31 = vadd.xlane.f32.xlu0 %v30
  %v32 = vpop.xlane.xlu0 %31
  %v33 = vadd.f32 %v29, %v32
  %v34 = vrcp.pop 512.0
  %v35 = vmul.f32 %v33, %v34
  %v36 = vsub.f32 %v23, %v35
  %v37 = vsub.f32 %v24, %v35
  %v38 = vsub.f32 %v25, %v35
  %v39 = vsub.f32 %v26, %v35
  %v40 = vmul.f32 %v36, %v36
  %v41 = vmul.f32 %v37, %v37
  %v42 = vmul.f32 %v38, %v38
  %v43 = vmul.f32 %v39, %v39
  %v44 = vadd.f32 %v40, %v41
  %45 = vadd.xlane.f32.xlu0 %v44
  %v46 = vpop.xlane.xlu0 %45
  %v47 = vadd.f32 %v42, %v43
  %48 = vadd.xlane.f32.xlu0 %v47
  %v49 = vpop.xlane.xlu0 %48
  %v50 = vadd.f32 %v46, %v49
  %v51 = vmul.f32 %v50, %v34
  %v52 = vadd.f32 %v51, 1e-05
  %v53 = vrsqrt.pop %v52
  %v54 = vmul.f32 %v36, %v53
  %v55 = vmul.f32 %v37, %v53
  %v56 = vmul.f32 %v38, %v53
  %v57 = vmul.f32 %v39, %v53
  %v58 = vld [vmem:[%s4] sm:$0xff]
  %60 = vset.pattern.permute.xlu0 0
  %61 = vperm.xlu0 %60, %v58
  %v62 = vpop.permute.xlu0 %61
  %v64 = vmul.f32 %v54, %v62
  %v65 = vmul.f32 %v55, %v62
  %v66 = vmul.f32 %v56, %v62
  %v67 = vmul.f32 %v57, %v62
  %v68 = vld [vmem:[%s5] sm:$0xff]
  %70 = vset.pattern.permute.xlu0 0
  %71 = vperm.xlu0 %70, %v68
  %v72 = vpop.permute.xlu0 %71
  %v74 = vadd.f32 %v64, %v72
  %v75 = vadd.f32 %v65, %v72
  %v76 = vadd.f32 %v66, %v72
  %v77 = vadd.f32 %v67, %v72
  %v78 = vld [vmem:[%s1] sm:$0xff]
  %v79 = vld [vmem:[%s1 + $0x8] sm:$0xff]
  %v80 = vld [vmem:[%s2] sm:$0xff]
  %82 = vset.pattern.permute.xlu0 0
  %83 = vperm.xlu0 %82, %v80
  %v84 = vpop.permute.xlu0 %83
  %v88 = vlaneseq
  %v89 = vshrl.u32 %v88, 7
  %v90 = vsub.s32 0, %v89
  %v91 = vrot.slane %v78, %v90
  %v92 = vlaneseq
  %v93 = vshrl.u32 %v92, 7
  %v94 = vsub.s32 4, %v93
  %v95 = vrot.slane %v78, %v94
  %v96 = vlaneseq
  %v97 = vshrl.u32 %v96, 7
  %v98 = vsub.s32 0, %v97
  %v99 = vrot.slane %v79, %v98
  %v100 = vlaneseq
  %v101 = vshrl.u32 %v100, 7
  %v102 = vsub.s32 4, %v101
  %v103 = vrot.slane %v79, %v102
  %v108 = vlaneseq
  %v109 = vshrl.u32 %v108, 7
  %v110 = vsub.s32 0, %v109
  %v111 = vrot.slane %v91, %v110
  %v112 = vlaneseq
  %v113 = vshrl.u32 %v112, 7
  %v114 = vsub.s32 0, %v113
  %v115 = vrot.slane %v95, %v114
  %v116 = vlaneseq
  %v117 = vshrl.u32 %v116, 7
  %v118 = vsub.s32 0, %v117
  %v119 = vrot.slane %v99, %v118
  %v120 = vlaneseq
  %v121 = vshrl.u32 %v120, 7
  %v122 = vsub.s32 0, %v121
  %v123 = vrot.slane %v103, %v122
  %v124 = vmul.f32 %v84, %v111
  %v125 = vmul.f32 %v84, %v115
  %v126 = vmul.f32 %v84, %v119
  %v127 = vmul.f32 %v84, %v123
  %s128 = scalar_lea.vmem %s2, 8
  %v129 = vld [vmem:[%s128] sm:$0xff]
  %131 = vset.pattern.permute.xlu0 0
  %132 = vperm.xlu0 %131, %v129
  %v133 = vpop.permute.xlu0 %132
  %v135 = vlaneseq
  %v136 = vshrl.u32 %v135, 7
  %v137 = vsub.s32 1, %v136
  %v138 = vrot.slane %v78, %v137
  %v139 = vlaneseq
  %v140 = vshrl.u32 %v139, 7
  %v141 = vsub.s32 5, %v140
  %v142 = vrot.slane %v78, %v141
  %v143 = vlaneseq
  %v144 = vshrl.u32 %v143, 7
  %v145 = vsub.s32 1, %v144
  %v146 = vrot.slane %v79, %v145
  %v147 = vlaneseq
  %v148 = vshrl.u32 %v147, 7
  %v149 = vsub.s32 5, %v148
  %v150 = vrot.slane %v79, %v149
  %v155 = vlaneseq
  %v156 = vshrl.u32 %v155, 7
  %v157 = vsub.s32 1, %v156
  %v158 = vrot.slane %v138, %v157
  %v159 = vlaneseq
  %v160 = vshrl.u32 %v159, 7
  %v161 = vsub.s32 1, %v160
  %v162 = vrot.slane %v142, %v161
  %v163 = vlaneseq
  %v164 = vshrl.u32 %v163, 7
  %v165 = vsub.s32 1, %v164
  %v166 = vrot.slane %v146, %v165
  %v167 = vlaneseq
  %v168 = vshrl.u32 %v167, 7
  %v169 = vsub.s32 1, %v168
  %v170 = vrot.slane %v150, %v169
  %v171 = vmul.f32 %v133, %v158
  %v172 = vmul.f32 %v133, %v162
  %v173 = vmul.f32 %v133, %v166
  %v174 = vmul.f32 %v133, %v170
  %v175 = vadd.f32 %v124, %v171
  %v176 = vadd.f32 %v125, %v172
  %v177 = vadd.f32 %v126, %v173
  %v178 = vadd.f32 %v127, %v174
  %s179 = scalar_lea.vmem %s2, 16
  %v180 = vld [vmem:[%s179] sm:$0xff]
  %182 = vset.pattern.permute.xlu0 0
  %183 = vperm.xlu0 %182, %v180
  %v184 = vpop.permute.xlu0 %183
  %v186 = vlaneseq
  %v187 = vshrl.u32 %v186, 7
  %v188 = vsub.s32 2, %v187
  %v189 = vrot.slane %v78, %v188
  %v190 = vlaneseq
  %v191 = vshrl.u32 %v190, 7
  %v192 = vsub.s32 6, %v191
  %v193 = vrot.slane %v78, %v192
  %v194 = vlaneseq
  %v195 = vshrl.u32 %v194, 7
  %v196 = vsub.s32 2, %v195
  %v197 = vrot.slane %v79, %v196
  %v198 = vlaneseq
  %v199 = vshrl.u32 %v198, 7
  %v200 = vsub.s32 6, %v199
  %v201 = vrot.slane %v79, %v200
  %v206 = vlaneseq
  %v207 = vshrl.u32 %v206, 7
  %v208 = vsub.s32 2, %v207
  %v209 = vrot.slane %v189, %v208
  %v210 = vlaneseq
  %v211 = vshrl.u32 %v210, 7
  %v212 = vsub.s32 2, %v211
  %v213 = vrot.slane %v193, %v212
  %v214 = vlaneseq
  %v215 = vshrl.u32 %v214, 7
  %v216 = vsub.s32 2, %v215
  %v217 = vrot.slane %v197, %v216
  %v218 = vlaneseq
  %v219 = vshrl.u32 %v218, 7
  %v220 = vsub.s32 2, %v219
  %v221 = vrot.slane %v201, %v220
  %v222 = vmul.f32 %v184, %v209
  %v223 = vmul.f32 %v184, %v213
  %v224 = vmul.f32 %v184, %v217
  %v225 = vmul.f32 %v184, %v221
  %v226 = vadd.f32 %v175, %v222
  %v227 = vadd.f32 %v176, %v223
  %v228 = vadd.f32 %v177, %v224
  %v229 = vadd.f32 %v178, %v225
  %s230 = scalar_lea.vmem %s2, 24
  %v231 = vld [vmem:[%s230] sm:$0xff]
  %233 = vset.pattern.permute.xlu0 0
  %234 = vperm.xlu0 %233, %v231
  %v235 = vpop.permute.xlu0 %234
  %v237 = vlaneseq
  %v238 = vshrl.u32 %v237, 7
  %v239 = vsub.s32 3, %v238
  %v240 = vrot.slane %v78, %v239
  %v241 = vlaneseq
  %v242 = vshrl.u32 %v241, 7
  %v243 = vsub.s32 7, %v242
  %v244 = vrot.slane %v78, %v243
  %v245 = vlaneseq
  %v246 = vshrl.u32 %v245, 7
  %v247 = vsub.s32 3, %v246
  %v248 = vrot.slane %v79, %v247
  %v249 = vlaneseq
  %v250 = vshrl.u32 %v249, 7
  %v251 = vsub.s32 7, %v250
  %v252 = vrot.slane %v79, %v251
  %v257 = vlaneseq
  %v258 = vshrl.u32 %v257, 7
  %v259 = vsub.s32 3, %v258
  %v260 = vrot.slane %v240, %v259
  %v261 = vlaneseq
  %v262 = vshrl.u32 %v261, 7
  %v263 = vsub.s32 3, %v262
  %v264 = vrot.slane %v244, %v263
  %v265 = vlaneseq
  %v266 = vshrl.u32 %v265, 7
  %v267 = vsub.s32 3, %v266
  %v268 = vrot.slane %v248, %v267
  %v269 = vlaneseq
  %v270 = vshrl.u32 %v269, 7
  %v271 = vsub.s32 3, %v270
  %v272 = vrot.slane %v252, %v271
  %v273 = vmul.f32 %v235, %v260
  %v274 = vmul.f32 %v235, %v264
  %v275 = vmul.f32 %v235, %v268
  %v276 = vmul.f32 %v235, %v272
  %v277 = vadd.f32 %v226, %v273
  %v278 = vadd.f32 %v227, %v274
  %v279 = vadd.f32 %v228, %v275
  %v280 = vadd.f32 %v229, %v276
  %v281 = vld [vmem:[%s3] sm:$0xff]
  %283 = vset.pattern.permute.xlu0 0
  %284 = vperm.xlu0 %283, %v281
  %v285 = vpop.permute.xlu0 %284
  %v287 = vadd.f32 %v277, %v285
  %v288 = vadd.f32 %v278, %v285
  %v289 = vadd.f32 %v279, %v285
  %v290 = vadd.f32 %v280, %v285
  %v291 = vadd.f32 %v74, %v287
  %v292 = vadd.f32 %v75, %v288
  %v293 = vadd.f32 %v76, %v289
  %v294 = vadd.f32 %v77, %v290
  %v295 = vmax.f32 %v291, 0.0
  %v296 = vmax.f32 %v292, 0.0
  %v297 = vmax.f32 %v293, 0.0
  %v298 = vmax.f32 %v294, 0.0
  %299 = vst [vmem:[%s6] sm:$0xff] %v295
  %300 = vst [vmem:[%s6 + $0x8] sm:$0xff] %v296
  %301 = vst [vmem:[%s6 + $0x10] sm:$0xff] %v297
  %302 = vst [vmem:[%s6 + $0x18] sm:$0xff] %v298
  // Predicated region
  $region26: #{fft_res_block.7} parent=0 // pred_check
    _
  $region27: #{fft_res_block.7} parent=0 // pred_check_branch
    %304 = sbr.rel (0) target = $region29
  $region28: #{fft_res_block.7} parent=0 // pred_region
    _
  $region29: #{fft_res_block.7} parent=0 // pred_fallthru
    _
  // Predicated region
  $region30: #{fft_res_block.7} parent=0 // pred_check
    _
  $region31: #{fft_res_block.7} parent=0 // pred_check_branch
    %306 = sbr.rel (0) target = $region33
  $region32: #{fft_res_block.7} parent=0 // pred_region
    _
  $region33: #{fft_res_block.7} parent=0 // pred_fallthru
    _

</llo_original>
